<compile_context>
chip_gen: v7x
topology: tpu7x:2x2x1
jax: 0.10.0
libtpu: 0.0.40
codegen_flags: <defaults>
</compile_context>

<pallas_src>
import jax
import jax.numpy as jnp
from jax.experimental import pallas as pl
from jax.experimental.pallas import tpu as pltpu

FP = 128  # padded feature lanes  (in_feats   -> 128)
HP = 128  # padded hidden lanes   (hid_feats  -> 128)
CP = 128  # padded output lanes   (num_celltype -> 128)


# ----------------------------------------------------------------------------
# Fused Pallas kernel: entire CellFateNet forward
# ----------------------------------------------------------------------------
def _fused_kernel(x_ref, isrc_ref, idst_ref, idstr_ref, tsrc_ref, tdst_ref, tdstr_ref,
                  wi1a_ref, wi1b_ref, bi1_ref, wi2_ref, bi2_ref,      # interaction MLP
                  wn1a_ref, wn1b_ref, bn1_ref, wn2_ref, bn2_ref,      # inplane node MLP
                  wt1a_ref, wt1b_ref, bt1_ref, wt2_ref, bt2_ref,      # time edge MLP
                  wu1a_ref, wu1b_ref, bu1_ref, wu2_ref, bu2_ref,      # time node MLP
                  wo1_ref, bo1_ref, wo2_ref, bo2_ref,                 # decode MLP
                  o_ref):
    f32 = jnp.float32
    x = x_ref[...]                       # [2N, FP] stacked node table (t0 rows then t1 rows)
    nn_rows = x.shape[0]                 # 2N
    n1 = nn_rows // 2                    # N

    # MLP on a concat of two feature groups, expressed with a split first layer:
    #   MLP(concat(a, b)) = relu(a @ W1[:F] + b @ W1[F:] + b1) @ W2 + b2
    def mlp2(a, b, w1a, w1b, b1, w2, b2):
        h = jnp.dot(a, w1a[...], preferred_element_type=f32)
        h = h + jnp.dot(b, w1b[...], preferred_element_type=f32)
        h = jnp.maximum(h + b1[...], 0.0)                 # Dropout == identity (eval)
        return jnp.dot(h, w2[...], preferred_element_type=f32) + b2[...]

    # ---------------- in-plane ('interaction') pass, both time points batched ----
    ei = isrc_ref.shape[0]                                           # 2E edges
    lanes_i = jax.lax.broadcasted_iota(jnp.int32, (ei, nn_rows), 1)
    sel_src = (lanes_i == isrc_ref[...]).astype(f32)                 # [2E, 2N] gather one-hot
    sel_dst = (lanes_i == idst_ref[...]).astype(f32)
    x_src = jnp.dot(sel_src, x, preferred_element_type=f32)          # edges.src features
    x_dst = jnp.dot(sel_dst, x, preferred_element_type=f32)          # edges.dst features
    e_i = mlp2(x_src, x_dst, wi1a_ref, wi1b_ref, bi1_ref, wi2_ref, bi2_ref)   # [2E, FP]

    rows_i = jax.lax.broadcasted_iota(jnp.int32, (nn_rows, ei), 0)
    agg_i = (rows_i == idstr_ref[...]).astype(f32)                   # [2N, 2E] dst incidence
    ipem = jnp.dot(agg_i, e_i, preferred_element_type=f32)           # fn.copy_e + fn.sum

    cur = mlp2(x, ipem, wn1a_ref, wn1b_ref, bn1_ref, wn2_ref, bn2_ref)        # [2N, FP]

    # ---------------- out-of-plane ('time') pass: t0 -> t1 -----------------------
    et = tsrc_ref.shape[0]
    lanes_t = jax.lax.broadcasted_iota(jnp.int32, (et, nn_rows), 1)
    sel_ts = (lanes_t == tsrc_ref[...]).astype(f32)                  # gathers t0 rows of cur
    sel_td = (lanes_t == tdst_ref[...]).astype(f32)                  # gathers t1 rows of cur
    c_src = jnp.dot(sel_ts, cur, preferred_element_type=f32)
    c_dst = jnp.dot(sel_td, cur, preferred_element_type=f32)
    e_t = mlp2(c_src, c_dst, wt1a_ref, wt1b_ref, bt1_ref, wt2_ref, bt2_ref)   # [ET, FP]

    rows_t = jax.lax.broadcasted_iota(jnp.int32, (n1, et), 0)
    agg_t = (rows_t == tdstr_ref[...]).astype(f32)                   # [N, ET] (local t1 dst)
    opem = jnp.dot(agg_t, e_t, preferred_element_type=f32)           # [N, FP]

    cur_t1 = cur[n1:, :]                                             # t1 half (tile-aligned)
    out_t1 = mlp2(cur_t1, opem, wu1a_ref, wu1b_ref, bu1_ref, wu2_ref, bu2_ref)

    # ---------------- decode last time point -------------------------------------
    h = jnp.maximum(jnp.dot(out_t1, wo1_ref[...], preferred_element_type=f32)
                    + bo1_ref[...], 0.0)
    o_ref[...] = jnp.dot(h, wo2_ref[...], preferred_element_type=f32) + bo2_ref[...]


# ----------------------------------------------------------------------------
# One-time preparation (padding to 128 lanes, split-W1, index layout)
# ----------------------------------------------------------------------------
def _pad2(a, rows, cols):
    out = jnp.zeros((rows, cols), jnp.float32)
    return out.at[: a.shape[0], : a.shape[1]].set(a)


def prepare_params(params, in_feats):
    def split_pad(p):
        w1, b1, w2, b2 = p["w1"], p["b1"], p["w2"], p["b2"]
        return (_pad2(w1[:in_feats], FP, HP), _pad2(w1[in_feats:], FP, HP),
                _pad2(b1, 1, HP), _pad2(w2, HP, FP), _pad2(b2, 1, FP))

    out_p = params["output"]
    return (
        *split_pad(params["interaction"]),
        *split_pad(params["nodemodel"]),
        *split_pad(params["time"]),
        *split_pad(params["time_nodemodel"]),
        _pad2(out_p["w1"], FP, HP), _pad2(out_p["b1"], 1, HP),
        _pad2(out_p["w2"], HP, CP), _pad2(out_p["b2"], 1, CP),
    )


def prepare_graph(int_edges, time_edges, time_set, num_nodes):
    # Specialized to len(time_set) == 2 (this instantiation): stacked node table
    # has t0 rows [0, N) and t1 rows [N, 2N).
    n = num_nodes
    i_src, i_dst = [], []
    for t_idx, t in enumerate(time_set):
        s, d = int_edges[t]
        i_src.append(s.astype(jnp.int32) + t_idx * n)
        i_dst.append(d.astype(jnp.int32) + t_idx * n)
    isrc = jnp.concatenate(i_src)
    idst = jnp.concatenate(i_dst)
    ts, td = time_edges[0]
    tsrc = ts.astype(jnp.int32)               # t0 global row ids
    tdst = td.astype(jnp.int32) + n           # t1 global row ids
    tdst_local = td.astype(jnp.int32)         # t1-local ids for aggregation
    return (isrc.reshape(-1, 1), idst.reshape(-1, 1), idst.reshape(1, -1),
            tsrc.reshape(-1, 1), tdst.reshape(-1, 1), tdst_local.reshape(1, -1))


def prepare_node_feats(node_feats, time_set):
    x = jnp.concatenate([node_feats[t].astype(jnp.float32) for t in time_set], axis=0)
    return _pad2(x, x.shape[0], FP)


# ----------------------------------------------------------------------------
# Forward = one fused pallas_call
# ----------------------------------------------------------------------------
def cellfatenet_forward(x_pad, idx_arrays, w_prepped, num_celltype):
    # NOTE: encode() is computed in the reference forward but never consumed when
    # NoSelfInfo=0 and skip=0, so it is intentionally not launched (dead work).
    n = x_pad.shape[0] // 2
    inputs = (x_pad, *idx_arrays, *w_prepped)

    def full_spec(a):
        nd = len(a.shape)
        return pl.BlockSpec(a.shape, lambda i, _nd=nd: (0,) * _nd)

    out_pad = pl.pallas_call(
        _fused_kernel,
        grid=(1,),
        in_specs=[full_spec(a) for a in inputs],
        out_specs=pl.BlockSpec((n, CP), lambda i: (0, 0)),
        out_shape=jax.ShapeDtypeStruct((n, CP), jnp.float32),
        compiler_params=pltpu.CompilerParams(dimension_semantics=("arbitrary",)),
    )(*inputs)
    return out_pad[:, :num_celltype]


# ----------------------------------------------------------------------------
# Parameter init (deterministic, PyTorch-Linear-style uniform bounds)
# ----------------------------------------------------------------------------
def init_linear(key, in_dim, out_dim):
    k1, k2 = jax.random.split(key)
    bound = 1.0 / (in_dim ** 0.5)
    w = jax.random.uniform(k1, (in_dim, out_dim), jnp.float32, -bound, bound)
    b = jax.random.uniform(k2, (1, out_dim), jnp.float32, -bound, bound)
    return w, b


def init_mlp(key, in_dim, hid, out_dim):
    k1, k2 = jax.random.split(key)
    w1, b1 = init_linear(k1, in_dim, hid)
    w2, b2 = init_linear(k2, hid, out_dim)
    return dict(w1=w1, b1=b1, w2=w2, b2=b2)


# ----------------------------------------------------------------------------
# Pure-JAX (unfused, unpadded) reference of the same forward, for sanity check
# ----------------------------------------------------------------------------
def reference_forward(params, node_feats, int_edges, time_edges, time_set):
    def mlp(x, p):
        h = jnp.maximum(x @ p["w1"] + p["b1"], 0.0)
        return h @ p["w2"] + p["b2"]

    n = node_feats[time_set[0]].shape[0]
    cur = {t: node_feats[t] for t in time_set}
    new = {}
    for t in time_set:                                   # in_plane = 1
        src, dst = int_edges[t]
        e = mlp(jnp.concatenate([cur[t][src], cur[t][dst]], axis=1), params["interaction"])
        agg = jnp.zeros((n, e.shape[1]), jnp.float32).at[dst].add(e)
        new[t] = mlp(jnp.concatenate([cur[t], agg], axis=1), params["nodemodel"])
    cur = new
    out = dict(cur)                                      # len(time_set)-1 = 1 iteration
    src, dst = time_edges[0]
    e = mlp(jnp.concatenate([out[time_set[0]][src], out[time_set[1]][dst]], axis=1),
            params["time"])
    agg = jnp.zeros((n, e.shape[1]), jnp.float32).at[dst].add(e)
    out_t1 = mlp(jnp.concatenate([out[time_set[1]], agg], axis=1), params["time_nodemodel"])
    return mlp(out_t1, params["output"])


# ----------------------------------------------------------------------------
if __name__ == "__main__":
    key = jax.random.PRNGKey(0)

    N = 16                       # nodes per time point
    input_size = in_feats = 16   # equal, required for skip=0 shape consistency
    hid_feats = 32
    num_celltype = 4
    time_set = ("t0", "t1")

    keys = jax.random.split(key, 8)
    params = dict(
        # fc_encode exists in the module but its output is unused at this config
        # (NoSelfInfo=0, skip=0) -> not fed to the kernel.
        encode=init_mlp(keys[0], input_size, hid_feats, in_feats),
        interaction=init_mlp(keys[1], 2 * in_feats, hid_feats, in_feats),
        nodemodel=init_mlp(keys[2], 2 * in_feats, hid_feats, in_feats),
        time=init_mlp(keys[3], 2 * in_feats, hid_feats, in_feats),
        time_nodemodel=init_mlp(keys[4], 2 * in_feats, hid_feats, in_feats),
        output=init_mlp(keys[5], in_feats, hid_feats, num_celltype),
    )

    feat_keys = jax.random.split(keys[6], len(time_set))
    node_feats = {t: jax.random.normal(k, (N, input_size), jnp.float32)
                  for t, k in zip(time_set, feat_keys)}

    # Deterministic synthetic graph:
    #   interaction edges (within each time point): ring, i -> i+1 and i -> i-1
    idx = jnp.arange(N)
    int_src = jnp.concatenate([idx, idx])
    int_dst = jnp.concatenate([(idx + 1) % N, (idx - 1) % N])
    int_edges = {t: (int_src, int_dst) for t in time_set}
    #   time edges t0 -> t1: node i connects to nodes i and i+1 of the next time point
    time_edges = [(jnp.concatenate([idx, idx]), jnp.concatenate([idx, (idx + 1) % N]))]

    # One-time preparation (padding / weight splitting / index layouts).
    w_prepped = prepare_params(params, in_feats)
    idx_arrays = prepare_graph(int_edges, time_edges, time_set, N)
    x_pad = prepare_node_feats(node_feats, time_set)

    out = cellfatenet_forward(x_pad, idx_arrays, w_prepped, num_celltype)
    out = jax.block_until_ready(out)

    ref = reference_forward(params, node_feats, int_edges, time_edges, time_set)
    assert out.shape == (N, num_celltype) and out.dtype == jnp.float32
    assert bool(jnp.allclose(out, ref, atol=1e-1, rtol=1e-1)), \
        float(jnp.max(jnp.abs(out - ref)))
    print("KERNEL_OK")
</pallas_src>

<mosaic_0001>
module attributes {stable_mosaic.version = 11 : i64} {
  func.func @_fused_kernel(%arg0: i32, %arg1: memref<32x128xf32, #tpu.memory_space<vmem>>, %arg2: memref<64x1xi32, #tpu.memory_space<vmem>>, %arg3: memref<64x1xi32, #tpu.memory_space<vmem>>, %arg4: memref<1x64xi32, #tpu.memory_space<vmem>>, %arg5: memref<32x1xi32, #tpu.memory_space<vmem>>, %arg6: memref<32x1xi32, #tpu.memory_space<vmem>>, %arg7: memref<1x32xi32, #tpu.memory_space<vmem>>, %arg8: memref<128x128xf32, #tpu.memory_space<vmem>>, %arg9: memref<128x128xf32, #tpu.memory_space<vmem>>, %arg10: memref<1x128xf32, #tpu.memory_space<vmem>>, %arg11: memref<128x128xf32, #tpu.memory_space<vmem>>, %arg12: memref<1x128xf32, #tpu.memory_space<vmem>>, %arg13: memref<128x128xf32, #tpu.memory_space<vmem>>, %arg14: memref<128x128xf32, #tpu.memory_space<vmem>>, %arg15: memref<1x128xf32, #tpu.memory_space<vmem>>, %arg16: memref<128x128xf32, #tpu.memory_space<vmem>>, %arg17: memref<1x128xf32, #tpu.memory_space<vmem>>, %arg18: memref<128x128xf32, #tpu.memory_space<vmem>>, %arg19: memref<128x128xf32, #tpu.memory_space<vmem>>, %arg20: memref<1x128xf32, #tpu.memory_space<vmem>>, %arg21: memref<128x128xf32, #tpu.memory_space<vmem>>, %arg22: memref<1x128xf32, #tpu.memory_space<vmem>>, %arg23: memref<128x128xf32, #tpu.memory_space<vmem>>, %arg24: memref<128x128xf32, #tpu.memory_space<vmem>>, %arg25: memref<1x128xf32, #tpu.memory_space<vmem>>, %arg26: memref<128x128xf32, #tpu.memory_space<vmem>>, %arg27: memref<1x128xf32, #tpu.memory_space<vmem>>, %arg28: memref<128x128xf32, #tpu.memory_space<vmem>>, %arg29: memref<1x128xf32, #tpu.memory_space<vmem>>, %arg30: memref<128x128xf32, #tpu.memory_space<vmem>>, %arg31: memref<1x128xf32, #tpu.memory_space<vmem>>, %arg32: memref<16x128xf32, #tpu.memory_space<vmem>>) attributes {dimension_semantics = [#tpu.dimension_semantics<arbitrary>], iteration_bounds = array<i64: 1>, scalar_prefetch = 0 : i64, scratch_operands = 0 : i64, tpu.core_type = #tpu.core_type<tc>, window_params = [{pipeline_mode = #tpu.pipeline_mode<synchronous>, transform_indices = @transform_0, window_bounds = array<i64: 32, 128>}, {pipeline_mode = #tpu.pipeline_mode<synchronous>, transform_indices = @transform_1, window_bounds = array<i64: 64, 1>}, {pipeline_mode = #tpu.pipeline_mode<synchronous>, transform_indices = @transform_2, window_bounds = array<i64: 64, 1>}, {pipeline_mode = #tpu.pipeline_mode<synchronous>, transform_indices = @transform_3, window_bounds = array<i64: 1, 64>}, {pipeline_mode = #tpu.pipeline_mode<synchronous>, transform_indices = @transform_4, window_bounds = array<i64: 32, 1>}, {pipeline_mode = #tpu.pipeline_mode<synchronous>, transform_indices = @transform_5, window_bounds = array<i64: 32, 1>}, {pipeline_mode = #tpu.pipeline_mode<synchronous>, transform_indices = @transform_6, window_bounds = array<i64: 1, 32>}, {pipeline_mode = #tpu.pipeline_mode<synchronous>, transform_indices = @transform_7, window_bounds = array<i64: 128, 128>}, {pipeline_mode = #tpu.pipeline_mode<synchronous>, transform_indices = @transform_8, window_bounds = array<i64: 128, 128>}, {pipeline_mode = #tpu.pipeline_mode<synchronous>, transform_indices = @transform_9, window_bounds = array<i64: 1, 128>}, {pipeline_mode = #tpu.pipeline_mode<synchronous>, transform_indices = @transform_10, window_bounds = array<i64: 128, 128>}, {pipeline_mode = #tpu.pipeline_mode<synchronous>, transform_indices = @transform_11, window_bounds = array<i64: 1, 128>}, {pipeline_mode = #tpu.pipeline_mode<synchronous>, transform_indices = @transform_12, window_bounds = array<i64: 128, 128>}, {pipeline_mode = #tpu.pipeline_mode<synchronous>, transform_indices = @transform_13, window_bounds = array<i64: 128, 128>}, {pipeline_mode = #tpu.pipeline_mode<synchronous>, transform_indices = @transform_14, window_bounds = array<i64: 1, 128>}, {pipeline_mode = #tpu.pipeline_mode<synchronous>, transform_indices = @transform_15, window_bounds = array<i64: 128, 128>}, {pipeline_mode = #tpu.pipeline_mode<synchronous>, transform_indices = @transform_16, window_bounds = array<i64: 1, 128>}, {pipeline_mode = #tpu.pipeline_mode<synchronous>, transform_indices = @transform_17, window_bounds = array<i64: 128, 128>}, {pipeline_mode = #tpu.pipeline_mode<synchronous>, transform_indices = @transform_18, window_bounds = array<i64: 128, 128>}, {pipeline_mode = #tpu.pipeline_mode<synchronous>, transform_indices = @transform_19, window_bounds = array<i64: 1, 128>}, {pipeline_mode = #tpu.pipeline_mode<synchronous>, transform_indices = @transform_20, window_bounds = array<i64: 128, 128>}, {pipeline_mode = #tpu.pipeline_mode<synchronous>, transform_indices = @transform_21, window_bounds = array<i64: 1, 128>}, {pipeline_mode = #tpu.pipeline_mode<synchronous>, transform_indices = @transform_22, window_bounds = array<i64: 128, 128>}, {pipeline_mode = #tpu.pipeline_mode<synchronous>, transform_indices = @transform_23, window_bounds = array<i64: 128, 128>}, {pipeline_mode = #tpu.pipeline_mode<synchronous>, transform_indices = @transform_24, window_bounds = array<i64: 1, 128>}, {pipeline_mode = #tpu.pipeline_mode<synchronous>, transform_indices = @transform_25, window_bounds = array<i64: 128, 128>}, {pipeline_mode = #tpu.pipeline_mode<synchronous>, transform_indices = @transform_26, window_bounds = array<i64: 1, 128>}, {pipeline_mode = #tpu.pipeline_mode<synchronous>, transform_indices = @transform_27, window_bounds = array<i64: 128, 128>}, {pipeline_mode = #tpu.pipeline_mode<synchronous>, transform_indices = @transform_28, window_bounds = array<i64: 1, 128>}, {pipeline_mode = #tpu.pipeline_mode<synchronous>, transform_indices = @transform_29, window_bounds = array<i64: 128, 128>}, {pipeline_mode = #tpu.pipeline_mode<synchronous>, transform_indices = @transform_30, window_bounds = array<i64: 1, 128>}, {pipeline_mode = #tpu.pipeline_mode<synchronous>, transform_indices = @transform_31, window_bounds = array<i64: 16, 128>}]} {
    %c0 = arith.constant 0 : index
    %c0_0 = arith.constant 0 : index
    %0 = vector.load %arg1[%c0, %c0_0] : memref<32x128xf32, #tpu.memory_space<vmem>>, vector<32x128xf32>
    %1 = tpu.iota {dimensions = array<i32: 1>} : vector<64x32xi32>
    %c0_1 = arith.constant 0 : index
    %c0_2 = arith.constant 0 : index
    %2 = vector.load %arg2[%c0_1, %c0_2] : memref<64x1xi32, #tpu.memory_space<vmem>>, vector<64x1xi32>
    %3 = vector.broadcast %2 : vector<64x1xi32> to vector<64x32xi32>
    %4 = arith.cmpi eq, %1, %3 : vector<64x32xi32>
    %5 = arith.extui %4 : vector<64x32xi1> to vector<64x32xi32>
    %6 = arith.sitofp %5 : vector<64x32xi32> to vector<64x32xf32>
    %c0_3 = arith.constant 0 : index
    %c0_4 = arith.constant 0 : index
    %7 = vector.load %arg3[%c0_3, %c0_4] : memref<64x1xi32, #tpu.memory_space<vmem>>, vector<64x1xi32>
    %8 = vector.broadcast %7 : vector<64x1xi32> to vector<64x32xi32>
    %9 = arith.cmpi eq, %1, %8 : vector<64x32xi32>
    %10 = arith.extui %9 : vector<64x32xi1> to vector<64x32xi32>
    %11 = arith.sitofp %10 : vector<64x32xi32> to vector<64x32xf32>
    %cst = arith.constant dense<0.000000e+00> : vector<64x128xf32>
    %12 = tpu.matmul %6, %0, %cst {dimension_numbers = #tpu.dot_dimension_numbers<[1], [0], [0], [1], [0, 0, 1, 1], [], []>} : vector<64x32xf32>, vector<32x128xf32>, vector<64x128xf32> -> vector<64x128xf32>
    %cst_5 = arith.constant dense<0.000000e+00> : vector<64x128xf32>
    %13 = tpu.matmul %11, %0, %cst_5 {dimension_numbers = #tpu.dot_dimension_numbers<[1], [0], [0], [1], [0, 0, 1, 1], [], []>} : vector<64x32xf32>, vector<32x128xf32>, vector<64x128xf32> -> vector<64x128xf32>
    %c0_6 = arith.constant 0 : index
    %c0_7 = arith.constant 0 : index
    %14 = vector.load %arg8[%c0_6, %c0_7] : memref<128x128xf32, #tpu.memory_space<vmem>>, vector<128x128xf32>
    %cst_8 = arith.constant dense<0.000000e+00> : vector<64x128xf32>
    %15 = tpu.matmul %12, %14, %cst_8 {dimension_numbers = #tpu.dot_dimension_numbers<[1], [0], [0], [1], [0, 0, 1, 1], [], []>} : vector<64x128xf32>, vector<128x128xf32>, vector<64x128xf32> -> vector<64x128xf32>
    %c0_9 = arith.constant 0 : index
    %c0_10 = arith.constant 0 : index
    %16 = vector.load %arg9[%c0_9, %c0_10] : memref<128x128xf32, #tpu.memory_space<vmem>>, vector<128x128xf32>
    %cst_11 = arith.constant dense<0.000000e+00> : vector<64x128xf32>
    %17 = tpu.matmul %13, %16, %cst_11 {dimension_numbers = #tpu.dot_dimension_numbers<[1], [0], [0], [1], [0, 0, 1, 1], [], []>} : vector<64x128xf32>, vector<128x128xf32>, vector<64x128xf32> -> vector<64x128xf32>
    %18 = arith.addf %15, %17 : vector<64x128xf32>
    %c0_12 = arith.constant 0 : index
    %c0_13 = arith.constant 0 : index
    %19 = vector.load %arg10[%c0_12, %c0_13] : memref<1x128xf32, #tpu.memory_space<vmem>>, vector<1x128xf32>
    %20 = vector.broadcast %19 : vector<1x128xf32> to vector<64x128xf32>
    %21 = arith.addf %18, %20 : vector<64x128xf32>
    %cst_14 = arith.constant 0.000000e+00 : f32
    %22 = vector.broadcast %cst_14 : f32 to vector<64x128xf32>
    %23 = arith.maximumf %21, %22 : vector<64x128xf32>
    %c0_15 = arith.constant 0 : index
    %c0_16 = arith.constant 0 : index
    %24 = vector.load %arg11[%c0_15, %c0_16] : memref<128x128xf32, #tpu.memory_space<vmem>>, vector<128x128xf32>
    %cst_17 = arith.constant dense<0.000000e+00> : vector<64x128xf32>
    %25 = tpu.matmul %23, %24, %cst_17 {dimension_numbers = #tpu.dot_dimension_numbers<[1], [0], [0], [1], [0, 0, 1, 1], [], []>} : vector<64x128xf32>, vector<128x128xf32>, vector<64x128xf32> -> vector<64x128xf32>
    %c0_18 = arith.constant 0 : index
    %c0_19 = arith.constant 0 : index
    %26 = vector.load %arg12[%c0_18, %c0_19] : memref<1x128xf32, #tpu.memory_space<vmem>>, vector<1x128xf32>
    %27 = vector.broadcast %26 : vector<1x128xf32> to vector<64x128xf32>
    %28 = arith.addf %25, %27 : vector<64x128xf32>
    %29 = tpu.iota {dimensions = array<i32: 0>} : vector<32x64xi32>
    %c0_20 = arith.constant 0 : index
    %c0_21 = arith.constant 0 : index
    %30 = vector.load %arg4[%c0_20, %c0_21] : memref<1x64xi32, #tpu.memory_space<vmem>>, vector<1x64xi32>
    %31 = vector.broadcast %30 : vector<1x64xi32> to vector<32x64xi32>
    %32 = arith.cmpi eq, %29, %31 : vector<32x64xi32>
    %33 = arith.extui %32 : vector<32x64xi1> to vector<32x64xi32>
    %34 = arith.sitofp %33 : vector<32x64xi32> to vector<32x64xf32>
    %cst_22 = arith.constant dense<0.000000e+00> : vector<32x128xf32>
    %35 = tpu.matmul %34, %28, %cst_22 {dimension_numbers = #tpu.dot_dimension_numbers<[1], [0], [0], [1], [0, 0, 1, 1], [], []>} : vector<32x64xf32>, vector<64x128xf32>, vector<32x128xf32> -> vector<32x128xf32>
    %c0_23 = arith.constant 0 : index
    %c0_24 = arith.constant 0 : index
    %36 = vector.load %arg13[%c0_23, %c0_24] : memref<128x128xf32, #tpu.memory_space<vmem>>, vector<128x128xf32>
    %cst_25 = arith.constant dense<0.000000e+00> : vector<32x128xf32>
    %37 = tpu.matmul %0, %36, %cst_25 {dimension_numbers = #tpu.dot_dimension_numbers<[1], [0], [0], [1], [0, 0, 1, 1], [], []>} : vector<32x128xf32>, vector<128x128xf32>, vector<32x128xf32> -> vector<32x128xf32>
    %c0_26 = arith.constant 0 : index
    %c0_27 = arith.constant 0 : index
    %38 = vector.load %arg14[%c0_26, %c0_27] : memref<128x128xf32, #tpu.memory_space<vmem>>, vector<128x128xf32>
    %cst_28 = arith.constant dense<0.000000e+00> : vector<32x128xf32>
    %39 = tpu.matmul %35, %38, %cst_28 {dimension_numbers = #tpu.dot_dimension_numbers<[1], [0], [0], [1], [0, 0, 1, 1], [], []>} : vector<32x128xf32>, vector<128x128xf32>, vector<32x128xf32> -> vector<32x128xf32>
    %40 = arith.addf %37, %39 : vector<32x128xf32>
    %c0_29 = arith.constant 0 : index
    %c0_30 = arith.constant 0 : index
    %41 = vector.load %arg15[%c0_29, %c0_30] : memref<1x128xf32, #tpu.memory_space<vmem>>, vector<1x128xf32>
    %42 = vector.broadcast %41 : vector<1x128xf32> to vector<32x128xf32>
    %43 = arith.addf %40, %42 : vector<32x128xf32>
    %cst_31 = arith.constant 0.000000e+00 : f32
    %44 = vector.broadcast %cst_31 : f32 to vector<32x128xf32>
    %45 = arith.maximumf %43, %44 : vector<32x128xf32>
    %c0_32 = arith.constant 0 : index
    %c0_33 = arith.constant 0 : index
    %46 = vector.load %arg16[%c0_32, %c0_33] : memref<128x128xf32, #tpu.memory_space<vmem>>, vector<128x128xf32>
    %cst_34 = arith.constant dense<0.000000e+00> : vector<32x128xf32>
    %47 = tpu.matmul %45, %46, %cst_34 {dimension_numbers = #tpu.dot_dimension_numbers<[1], [0], [0], [1], [0, 0, 1, 1], [], []>} : vector<32x128xf32>, vector<128x128xf32>, vector<32x128xf32> -> vector<32x128xf32>
    %c0_35 = arith.constant 0 : index
    %c0_36 = arith.constant 0 : index
    %48 = vector.load %arg17[%c0_35, %c0_36] : memref<1x128xf32, #tpu.memory_space<vmem>>, vector<1x128xf32>
    %49 = vector.broadcast %48 : vector<1x128xf32> to vector<32x128xf32>
    %50 = arith.addf %47, %49 : vector<32x128xf32>
    %51 = tpu.iota {dimensions = array<i32: 1>} : vector<32x32xi32>
    %c0_37 = arith.constant 0 : index
    %c0_38 = arith.constant 0 : index
    %52 = vector.load %arg5[%c0_37, %c0_38] : memref<32x1xi32, #tpu.memory_space<vmem>>, vector<32x1xi32>
    %53 = vector.broadcast %52 : vector<32x1xi32> to vector<32x32xi32>
    %54 = arith.cmpi eq, %51, %53 : vector<32x32xi32>
    %55 = arith.extui %54 : vector<32x32xi1> to vector<32x32xi32>
    %56 = arith.sitofp %55 : vector<32x32xi32> to vector<32x32xf32>
    %c0_39 = arith.constant 0 : index
    %c0_40 = arith.constant 0 : index
    %57 = vector.load %arg6[%c0_39, %c0_40] : memref<32x1xi32, #tpu.memory_space<vmem>>, vector<32x1xi32>
    %58 = vector.broadcast %57 : vector<32x1xi32> to vector<32x32xi32>
    %59 = arith.cmpi eq, %51, %58 : vector<32x32xi32>
    %60 = arith.extui %59 : vector<32x32xi1> to vector<32x32xi32>
    %61 = arith.sitofp %60 : vector<32x32xi32> to vector<32x32xf32>
    %cst_41 = arith.constant dense<0.000000e+00> : vector<32x128xf32>
    %62 = tpu.matmul %56, %50, %cst_41 {dimension_numbers = #tpu.dot_dimension_numbers<[1], [0], [0], [1], [0, 0, 1, 1], [], []>} : vector<32x32xf32>, vector<32x128xf32>, vector<32x128xf32> -> vector<32x128xf32>
    %cst_42 = arith.constant dense<0.000000e+00> : vector<32x128xf32>
    %63 = tpu.matmul %61, %50, %cst_42 {dimension_numbers = #tpu.dot_dimension_numbers<[1], [0], [0], [1], [0, 0, 1, 1], [], []>} : vector<32x32xf32>, vector<32x128xf32>, vector<32x128xf32> -> vector<32x128xf32>
    %c0_43 = arith.constant 0 : index
    %c0_44 = arith.constant 0 : index
    %64 = vector.load %arg18[%c0_43, %c0_44] : memref<128x128xf32, #tpu.memory_space<vmem>>, vector<128x128xf32>
    %cst_45 = arith.constant dense<0.000000e+00> : vector<32x128xf32>
    %65 = tpu.matmul %62, %64, %cst_45 {dimension_numbers = #tpu.dot_dimension_numbers<[1], [0], [0], [1], [0, 0, 1, 1], [], []>} : vector<32x128xf32>, vector<128x128xf32>, vector<32x128xf32> -> vector<32x128xf32>
    %c0_46 = arith.constant 0 : index
    %c0_47 = arith.constant 0 : index
    %66 = vector.load %arg19[%c0_46, %c0_47] : memref<128x128xf32, #tpu.memory_space<vmem>>, vector<128x128xf32>
    %cst_48 = arith.constant dense<0.000000e+00> : vector<32x128xf32>
    %67 = tpu.matmul %63, %66, %cst_48 {dimension_numbers = #tpu.dot_dimension_numbers<[1], [0], [0], [1], [0, 0, 1, 1], [], []>} : vector<32x128xf32>, vector<128x128xf32>, vector<32x128xf32> -> vector<32x128xf32>
    %68 = arith.addf %65, %67 : vector<32x128xf32>
    %c0_49 = arith.constant 0 : index
    %c0_50 = arith.constant 0 : index
    %69 = vector.load %arg20[%c0_49, %c0_50] : memref<1x128xf32, #tpu.memory_space<vmem>>, vector<1x128xf32>
    %70 = vector.broadcast %69 : vector<1x128xf32> to vector<32x128xf32>
    %71 = arith.addf %68, %70 : vector<32x128xf32>
    %cst_51 = arith.constant 0.000000e+00 : f32
    %72 = vector.broadcast %cst_51 : f32 to vector<32x128xf32>
    %73 = arith.maximumf %71, %72 : vector<32x128xf32>
    %c0_52 = arith.constant 0 : index
    %c0_53 = arith.constant 0 : index
    %74 = vector.load %arg21[%c0_52, %c0_53] : memref<128x128xf32, #tpu.memory_space<vmem>>, vector<128x128xf32>
    %cst_54 = arith.constant dense<0.000000e+00> : vector<32x128xf32>
    %75 = tpu.matmul %73, %74, %cst_54 {dimension_numbers = #tpu.dot_dimension_numbers<[1], [0], [0], [1], [0, 0, 1, 1], [], []>} : vector<32x128xf32>, vector<128x128xf32>, vector<32x128xf32> -> vector<32x128xf32>
    %c0_55 = arith.constant 0 : index
    %c0_56 = arith.constant 0 : index
    %76 = vector.load %arg22[%c0_55, %c0_56] : memref<1x128xf32, #tpu.memory_space<vmem>>, vector<1x128xf32>
    %77 = vector.broadcast %76 : vector<1x128xf32> to vector<32x128xf32>
    %78 = arith.addf %75, %77 : vector<32x128xf32>
    %79 = tpu.iota {dimensions = array<i32: 0>} : vector<16x32xi32>
    %c0_57 = arith.constant 0 : index
    %c0_58 = arith.constant 0 : index
    %80 = vector.load %arg7[%c0_57, %c0_58] : memref<1x32xi32, #tpu.memory_space<vmem>>, vector<1x32xi32>
    %81 = vector.broadcast %80 : vector<1x32xi32> to vector<16x32xi32>
    %82 = arith.cmpi eq, %79, %81 : vector<16x32xi32>
    %83 = arith.extui %82 : vector<16x32xi1> to vector<16x32xi32>
    %84 = arith.sitofp %83 : vector<16x32xi32> to vector<16x32xf32>
    %cst_59 = arith.constant dense<0.000000e+00> : vector<16x128xf32>
    %85 = tpu.matmul %84, %78, %cst_59 {dimension_numbers = #tpu.dot_dimension_numbers<[1], [0], [0], [1], [0, 0, 1, 1], [], []>} : vector<16x32xf32>, vector<32x128xf32>, vector<16x128xf32> -> vector<16x128xf32>
    %86 = vector.extract_strided_slice %50 {offsets = [16, 0], sizes = [16, 128], strides = [1, 1]} : vector<32x128xf32> to vector<16x128xf32>
    %c0_60 = arith.constant 0 : index
    %c0_61 = arith.constant 0 : index
    %87 = vector.load %arg23[%c0_60, %c0_61] : memref<128x128xf32, #tpu.memory_space<vmem>>, vector<128x128xf32>
    %cst_62 = arith.constant dense<0.000000e+00> : vector<16x128xf32>
    %88 = tpu.matmul %86, %87, %cst_62 {dimension_numbers = #tpu.dot_dimension_numbers<[1], [0], [0], [1], [0, 0, 1, 1], [], []>} : vector<16x128xf32>, vector<128x128xf32>, vector<16x128xf32> -> vector<16x128xf32>
    %c0_63 = arith.constant 0 : index
    %c0_64 = arith.constant 0 : index
    %89 = vector.load %arg24[%c0_63, %c0_64] : memref<128x128xf32, #tpu.memory_space<vmem>>, vector<128x128xf32>
    %cst_65 = arith.constant dense<0.000000e+00> : vector<16x128xf32>
    %90 = tpu.matmul %85, %89, %cst_65 {dimension_numbers = #tpu.dot_dimension_numbers<[1], [0], [0], [1], [0, 0, 1, 1], [], []>} : vector<16x128xf32>, vector<128x128xf32>, vector<16x128xf32> -> vector<16x128xf32>
    %91 = arith.addf %88, %90 : vector<16x128xf32>
    %c0_66 = arith.constant 0 : index
    %c0_67 = arith.constant 0 : index
    %92 = vector.load %arg25[%c0_66, %c0_67] : memref<1x128xf32, #tpu.memory_space<vmem>>, vector<1x128xf32>
    %93 = vector.broadcast %92 : vector<1x128xf32> to vector<16x128xf32>
    %94 = arith.addf %91, %93 : vector<16x128xf32>
    %cst_68 = arith.constant 0.000000e+00 : f32
    %95 = vector.broadcast %cst_68 : f32 to vector<16x128xf32>
    %96 = arith.maximumf %94, %95 : vector<16x128xf32>
    %c0_69 = arith.constant 0 : index
    %c0_70 = arith.constant 0 : index
    %97 = vector.load %arg26[%c0_69, %c0_70] : memref<128x128xf32, #tpu.memory_space<vmem>>, vector<128x128xf32>
    %cst_71 = arith.constant dense<0.000000e+00> : vector<16x128xf32>
    %98 = tpu.matmul %96, %97, %cst_71 {dimension_numbers = #tpu.dot_dimension_numbers<[1], [0], [0], [1], [0, 0, 1, 1], [], []>} : vector<16x128xf32>, vector<128x128xf32>, vector<16x128xf32> -> vector<16x128xf32>
    %c0_72 = arith.constant 0 : index
    %c0_73 = arith.constant 0 : index
    %99 = vector.load %arg27[%c0_72, %c0_73] : memref<1x128xf32, #tpu.memory_space<vmem>>, vector<1x128xf32>
    %100 = vector.broadcast %99 : vector<1x128xf32> to vector<16x128xf32>
    %101 = arith.addf %98, %100 : vector<16x128xf32>
    %c0_74 = arith.constant 0 : index
    %c0_75 = arith.constant 0 : index
    %102 = vector.load %arg28[%c0_74, %c0_75] : memref<128x128xf32, #tpu.memory_space<vmem>>, vector<128x128xf32>
    %cst_76 = arith.constant dense<0.000000e+00> : vector<16x128xf32>
    %103 = tpu.matmul %101, %102, %cst_76 {dimension_numbers = #tpu.dot_dimension_numbers<[1], [0], [0], [1], [0, 0, 1, 1], [], []>} : vector<16x128xf32>, vector<128x128xf32>, vector<16x128xf32> -> vector<16x128xf32>
    %c0_77 = arith.constant 0 : index
    %c0_78 = arith.constant 0 : index
    %104 = vector.load %arg29[%c0_77, %c0_78] : memref<1x128xf32, #tpu.memory_space<vmem>>, vector<1x128xf32>
    %105 = vector.broadcast %104 : vector<1x128xf32> to vector<16x128xf32>
    %106 = arith.addf %103, %105 : vector<16x128xf32>
    %cst_79 = arith.constant 0.000000e+00 : f32
    %107 = vector.broadcast %cst_79 : f32 to vector<16x128xf32>
    %108 = arith.maximumf %106, %107 : vector<16x128xf32>
    %c0_80 = arith.constant 0 : index
    %c0_81 = arith.constant 0 : index
    %109 = vector.load %arg30[%c0_80, %c0_81] : memref<128x128xf32, #tpu.memory_space<vmem>>, vector<128x128xf32>
    %cst_82 = arith.constant dense<0.000000e+00> : vector<16x128xf32>
    %110 = tpu.matmul %108, %109, %cst_82 {dimension_numbers = #tpu.dot_dimension_numbers<[1], [0], [0], [1], [0, 0, 1, 1], [], []>} : vector<16x128xf32>, vector<128x128xf32>, vector<16x128xf32> -> vector<16x128xf32>
    %c0_83 = arith.constant 0 : index
    %c0_84 = arith.constant 0 : index
    %111 = vector.load %arg31[%c0_83, %c0_84] : memref<1x128xf32, #tpu.memory_space<vmem>>, vector<1x128xf32>
    %112 = vector.broadcast %111 : vector<1x128xf32> to vector<16x128xf32>
    %113 = arith.addf %110, %112 : vector<16x128xf32>
    %c0_85 = arith.constant 0 : index
    %c0_86 = arith.constant 0 : index
    %114 = vector.load %arg32[%c0_85, %c0_86] : memref<16x128xf32, #tpu.memory_space<vmem>>, vector<16x128xf32>
    tpu.vector_store %arg32[%c0_85, %c0_86], %113 {strides = array<i32>} : memref<16x128xf32, #tpu.memory_space<vmem>>, vector<16x128xf32>,
    return
  }
  func.func @transform_0(%arg0: i32) -> (i32, i32) {
    %c0_i32 = arith.constant 0 : i32
    %c0_i32_0 = arith.constant 0 : i32
    %c0_i32_1 = arith.constant 0 : i32
    return %c0_i32, %c0_i32_0 : i32, i32
  }
  func.func @transform_1(%arg0: i32) -> (i32, i32) {
    %c0_i32 = arith.constant 0 : i32
    %c0_i32_0 = arith.constant 0 : i32
    %c0_i32_1 = arith.constant 0 : i32
    return %c0_i32, %c0_i32_0 : i32, i32
  }
  func.func @transform_2(%arg0: i32) -> (i32, i32) {
    %c0_i32 = arith.constant 0 : i32
    %c0_i32_0 = arith.constant 0 : i32
    %c0_i32_1 = arith.constant 0 : i32
    return %c0_i32, %c0_i32_0 : i32, i32
  }
  func.func @transform_3(%arg0: i32) -> (i32, i32) {
    %c0_i32 = arith.constant 0 : i32
    %c0_i32_0 = arith.constant 0 : i32
    %c0_i32_1 = arith.constant 0 : i32
    return %c0_i32, %c0_i32_0 : i32, i32
  }
  func.func @transform_4(%arg0: i32) -> (i32, i32) {
    %c0_i32 = arith.constant 0 : i32
    %c0_i32_0 = arith.constant 0 : i32
    %c0_i32_1 = arith.constant 0 : i32
    return %c0_i32, %c0_i32_0 : i32, i32
  }
  func.func @transform_5(%arg0: i32) -> (i32, i32) {
    %c0_i32 = arith.constant 0 : i32
    %c0_i32_0 = arith.constant 0 : i32
    %c0_i32_1 = arith.constant 0 : i32
    return %c0_i32, %c0_i32_0 : i32, i32
  }
  func.func @transform_6(%arg0: i32) -> (i32, i32) {
    %c0_i32 = arith.constant 0 : i32
    %c0_i32_0 = arith.constant 0 : i32
    %c0_i32_1 = arith.constant 0 : i32
    return %c0_i32, %c0_i32_0 : i32, i32
  }
  func.func @transform_7(%arg0: i32) -> (i32, i32) {
    %c0_i32 = arith.constant 0 : i32
    %c0_i32_0 = arith.constant 0 : i32
    %c0_i32_1 = arith.constant 0 : i32
    return %c0_i32, %c0_i32_0 : i32, i32
  }
  func.func @transform_8(%arg0: i32) -> (i32, i32) {
    %c0_i32 = arith.constant 0 : i32
    %c0_i32_0 = arith.constant 0 : i32
    %c0_i32_1 = arith.constant 0 : i32
    return %c0_i32, %c0_i32_0 : i32, i32
  }
  func.func @transform_9(%arg0: i32) -> (i32, i32) {
    %c0_i32 = arith.constant 0 : i32
    %c0_i32_0 = arith.constant 0 : i32
    %c0_i32_1 = arith.constant 0 : i32
    return %c0_i32, %c0_i32_0 : i32, i32
  }
  func.func @transform_10(%arg0: i32) -> (i32, i32) {
    %c0_i32 = arith.constant 0 : i32
    %c0_i32_0 = arith.constant 0 : i32
    %c0_i32_1 = arith.constant 0 : i32
    return %c0_i32, %c0_i32_0 : i32, i32
  }
  func.func @transform_11(%arg0: i32) -> (i32, i32) {
    %c0_i32 = arith.constant 0 : i32
    %c0_i32_0 = arith.constant 0 : i32
    %c0_i32_1 = arith.constant 0 : i32
    return %c0_i32, %c0_i32_0 : i32, i32
  }
  func.func @transform_12(%arg0: i32) -> (i32, i32) {
    %c0_i32 = arith.constant 0 : i32
    %c0_i32_0 = arith.constant 0 : i32
    %c0_i32_1 = arith.constant 0 : i32
    return %c0_i32, %c0_i32_0 : i32, i32
  }
  func.func @transform_13(%arg0: i32) -> (i32, i32) {
    %c0_i32 = arith.constant 0 : i32
    %c0_i32_0 = arith.constant 0 : i32
    %c0_i32_1 = arith.constant 0 : i32
    return %c0_i32, %c0_i32_0 : i32, i32
  }
  func.func @transform_14(%arg0: i32) -> (i32, i32) {
    %c0_i32 = arith.constant 0 : i32
    %c0_i32_0 = arith.constant 0 : i32
    %c0_i32_1 = arith.constant 0 : i32
    return %c0_i32, %c0_i32_0 : i32, i32
  }
  func.func @transform_15(%arg0: i32) -> (i32, i32) {
    %c0_i32 = arith.constant 0 : i32
    %c0_i32_0 = arith.constant 0 : i32
    %c0_i32_1 = arith.constant 0 : i32
    return %c0_i32, %c0_i32_0 : i32, i32
  }
  func.func @transform_16(%arg0: i32) -> (i32, i32) {
    %c0_i32 = arith.constant 0 : i32
    %c0_i32_0 = arith.constant 0 : i32
    %c0_i32_1 = arith.constant 0 : i32
    return %c0_i32, %c0_i32_0 : i32, i32
  }
  func.func @transform_17(%arg0: i32) -> (i32, i32) {
    %c0_i32 = arith.constant 0 : i32
    %c0_i32_0 = arith.constant 0 : i32
    %c0_i32_1 = arith.constant 0 : i32
    return %c0_i32, %c0_i32_0 : i32, i32
  }
  func.func @transform_18(%arg0: i32) -> (i32, i32) {
    %c0_i32 = arith.constant 0 : i32
    %c0_i32_0 = arith.constant 0 : i32
    %c0_i32_1 = arith.constant 0 : i32
    return %c0_i32, %c0_i32_0 : i32, i32
  }
  func.func @transform_19(%arg0: i32) -> (i32, i32) {
    %c0_i32 = arith.constant 0 : i32
    %c0_i32_0 = arith.constant 0 : i32
    %c0_i32_1 = arith.constant 0 : i32
    return %c0_i32, %c0_i32_0 : i32, i32
  }
  func.func @transform_20(%arg0: i32) -> (i32, i32) {
    %c0_i32 = arith.constant 0 : i32
    %c0_i32_0 = arith.constant 0 : i32
    %c0_i32_1 = arith.constant 0 : i32
    return %c0_i32, %c0_i32_0 : i32, i32
  }
  func.func @transform_21(%arg0: i32) -> (i32, i32) {
    %c0_i32 = arith.constant 0 : i32
    %c0_i32_0 = arith.constant 0 : i32
    %c0_i32_1 = arith.constant 0 : i32
    return %c0_i32, %c0_i32_0 : i32, i32
  }
  func.func @transform_22(%arg0: i32) -> (i32, i32) {
    %c0_i32 = arith.constant 0 : i32
    %c0_i32_0 = arith.constant 0 : i32
    %c0_i32_1 = arith.constant 0 : i32
    return %c0_i32, %c0_i32_0 : i32, i32
  }
  func.func @transform_23(%arg0: i32) -> (i32, i32) {
    %c0_i32 = arith.constant 0 : i32
    %c0_i32_0 = arith.constant 0 : i32
    %c0_i32_1 = arith.constant 0 : i32
    return %c0_i32, %c0_i32_0 : i32, i32
  }
  func.func @transform_24(%arg0: i32) -> (i32, i32) {
    %c0_i32 = arith.constant 0 : i32
    %c0_i32_0 = arith.constant 0 : i32
    %c0_i32_1 = arith.constant 0 : i32
    return %c0_i32, %c0_i32_0 : i32, i32
  }
  func.func @transform_25(%arg0: i32) -> (i32, i32) {
    %c0_i32 = arith.constant 0 : i32
    %c0_i32_0 = arith.constant 0 : i32
    %c0_i32_1 = arith.constant 0 : i32
    return %c0_i32, %c0_i32_0 : i32, i32
  }
  func.func @transform_26(%arg0: i32) -> (i32, i32) {
    %c0_i32 = arith.constant 0 : i32
    %c0_i32_0 = arith.constant 0 : i32
    %c0_i32_1 = arith.constant 0 : i32
    return %c0_i32, %c0_i32_0 : i32, i32
  }
  func.func @transform_27(%arg0: i32) -> (i32, i32) {
    %c0_i32 = arith.constant 0 : i32
    %c0_i32_0 = arith.constant 0 : i32
    %c0_i32_1 = arith.constant 0 : i32
    return %c0_i32, %c0_i32_0 : i32, i32
  }
  func.func @transform_28(%arg0: i32) -> (i32, i32) {
    %c0_i32 = arith.constant 0 : i32
    %c0_i32_0 = arith.constant 0 : i32
    %c0_i32_1 = arith.constant 0 : i32
    return %c0_i32, %c0_i32_0 : i32, i32
  }
  func.func @transform_29(%arg0: i32) -> (i32, i32) {
    %c0_i32 = arith.constant 0 : i32
    %c0_i32_0 = arith.constant 0 : i32
    %c0_i32_1 = arith.constant 0 : i32
    return %c0_i32, %c0_i32_0 : i32, i32
  }
  func.func @transform_30(%arg0: i32) -> (i32, i32) {
    %c0_i32 = arith.constant 0 : i32
    %c0_i32_0 = arith.constant 0 : i32
    %c0_i32_1 = arith.constant 0 : i32
    return %c0_i32, %c0_i32_0 : i32, i32
  }
  func.func @transform_31(%arg0: i32) -> (i32, i32) {
    %c0_i32 = arith.constant 0 : i32
    %c0_i32_0 = arith.constant 0 : i32
    %c0_i32_1 = arith.constant 0 : i32
    return %c0_i32, %c0_i32_0 : i32, i32
  }
}

</mosaic_0001>

<llo_original>
// kernel: tpu_custom_call.1
$region0: #{tpu_custom_call.1}
  #allocation0 [shape = 'u32[]', space=smem, size = 0x4, offset = 0x4, fixed_abs, tag = 'smem constant byte address 0x4 - core index']
  #allocation1 [shape = 'u32[144,128]{1,0:T(1,128)}', space=vmem, size = 0x12000, scoped, tag = 'internal scratch']
  %s0 = inlined_call_operand.smem [shape: u32[32], index: -1, kind: input, shape index: {}]
  %s1 = sld [smem:[%s0]]
  %s2 = scalar_lea.smem %s0, 1
  %s3 = sld [smem:[%s2]]
  %s4 = scalar_lea.smem %s0, 2
  %s5 = sld [smem:[%s4]]
  %s6 = scalar_lea.smem %s0, 3
  %s7 = sld [smem:[%s6]]
  %s8 = scalar_lea.smem %s0, 4
  %s9 = sld [smem:[%s8]]
  %s10 = scalar_lea.smem %s0, 5
  %s11 = sld [smem:[%s10]]
  %s12 = scalar_lea.smem %s0, 6
  %s13 = sld [smem:[%s12]]
  %s14 = scalar_lea.smem %s0, 7
  %s15 = sld [smem:[%s14]]
  %s16 = scalar_lea.smem %s0, 8
  %s17 = sld [smem:[%s16]]
  %s18 = scalar_lea.smem %s0, 9
  %s19 = sld [smem:[%s18]]
  %s20 = scalar_lea.smem %s0, 10
  %s21 = sld [smem:[%s20]]
  %s22 = scalar_lea.smem %s0, 11
  %s23 = sld [smem:[%s22]]
  %s24 = scalar_lea.smem %s0, 12
  %s25 = sld [smem:[%s24]]
  %s26 = scalar_lea.smem %s0, 13
  %s27 = sld [smem:[%s26]]
  %s28 = scalar_lea.smem %s0, 14
  %s29 = sld [smem:[%s28]]
  %s30 = scalar_lea.smem %s0, 15
  %s31 = sld [smem:[%s30]]
  %s32 = scalar_lea.smem %s0, 16
  %s33 = sld [smem:[%s32]]
  %s34 = scalar_lea.smem %s0, 17
  %s35 = sld [smem:[%s34]]
  %s36 = scalar_lea.smem %s0, 18
  %s37 = sld [smem:[%s36]]
  %s38 = scalar_lea.smem %s0, 19
  %s39 = sld [smem:[%s38]]
  %s40 = scalar_lea.smem %s0, 20
  %s41 = sld [smem:[%s40]]
  %s42 = scalar_lea.smem %s0, 21
  %s43 = sld [smem:[%s42]]
  %s44 = scalar_lea.smem %s0, 22
  %s45 = sld [smem:[%s44]]
  %s46 = scalar_lea.smem %s0, 23
  %s47 = sld [smem:[%s46]]
  %s48 = scalar_lea.smem %s0, 24
  %s49 = sld [smem:[%s48]]
  %s50 = scalar_lea.smem %s0, 25
  %s51 = sld [smem:[%s50]]
  %s52 = scalar_lea.smem %s0, 26
  %s53 = sld [smem:[%s52]]
  %s54 = scalar_lea.smem %s0, 27
  %s55 = sld [smem:[%s54]]
  %s56 = scalar_lea.smem %s0, 28
  %s57 = sld [smem:[%s56]]
  %s58 = scalar_lea.smem %s0, 29
  %s59 = sld [smem:[%s58]]
  %s60 = scalar_lea.smem %s0, 30
  %s61 = sld [smem:[%s60]]
  %s62 = scalar_lea.smem %s0, 31
  %s63 = sld [smem:[%s62]]
  %s64 = sld [smem:[#allocation0]]
  $region210: #{tpu_custom_call.1} parent=0
    _
  %s66 = ssub.s32 1, %s64
  %s67 = scalar_select 0, %s66, %s64
  $region1: #{tpu_custom_call.1} parent=0
    #allocation2 [shape = 'u8[16384]{0}', space=vmem, size = 0x4000, scoped, tag = 'input window, operand 0, single buffered']
    #allocation3 [shape = 's32[1]{0}', space=sflag, size = 0x4, scoped, tag = 'scoped memory for tpu_custom_call.1']
    #allocation4 [shape = 's32[1]{0}', space=sflag, size = 0x4, scoped, tag = 'scoped memory for tpu_custom_call.1']
    #allocation5 [shape = 'u8[512]{0}', space=vmem, size = 0x400, scoped, tag = 'input window, operand 3, single buffered']
    #allocation6 [shape = 's32[1]{0}', space=sflag, size = 0x4, scoped, tag = 'scoped memory for tpu_custom_call.1']
    #allocation7 [shape = 'u8[512]{0}', space=vmem, size = 0x400, scoped, tag = 'input window, operand 6, single buffered']
    #allocation8 [shape = 'u8[65536]{0}', space=vmem, size = 0x10000, scoped, tag = 'input window, operand 8, single buffered']
    #allocation9 [shape = 's32[1]{0}', space=sflag, size = 0x4, scoped, tag = 'scoped memory for tpu_custom_call.1']
    #allocation10 [shape = 'u8[512]{0}', space=vmem, size = 0x400, scoped, tag = 'input window, operand 9, single buffered']
    #allocation11 [shape = 'u8[65536]{0}', space=vmem, size = 0x10000, scoped, tag = 'input window, operand 10, single buffered']
    #allocation12 [shape = 's32[1]{0}', space=sflag, size = 0x4, scoped, tag = 'scoped memory for tpu_custom_call.1']
    #allocation13 [shape = 'u8[512]{0}', space=vmem, size = 0x400, scoped, tag = 'input window, operand 11, single buffered']
    #allocation14 [shape = 'u8[65536]{0}', space=vmem, size = 0x10000, scoped, tag = 'input window, operand 12, single buffered']
    #allocation15 [shape = 's32[1]{0}', space=sflag, size = 0x4, scoped, tag = 'scoped memory for tpu_custom_call.1']
    #allocation16 [shape = 'u8[65536]{0}', space=vmem, size = 0x10000, scoped, tag = 'input window, operand 13, single buffered']
    #allocation17 [shape = 'u8[512]{0}', space=vmem, size = 0x400, scoped, tag = 'input window, operand 14, single buffered']
    #allocation18 [shape = 's32[1]{0}', space=sflag, size = 0x4, scoped, tag = 'scoped memory for tpu_custom_call.1']
    #allocation19 [shape = 'u8[65536]{0}', space=vmem, size = 0x10000, scoped, tag = 'input window, operand 15, single buffered']
    #allocation20 [shape = 'u8[512]{0}', space=vmem, size = 0x400, scoped, tag = 'input window, operand 16, single buffered']
    #allocation21 [shape = 's32[1]{0}', space=sflag, size = 0x4, scoped, tag = 'scoped memory for tpu_custom_call.1']
    #allocation22 [shape = 'u8[65536]{0}', space=vmem, size = 0x10000, scoped, tag = 'input window, operand 18, single buffered']
    #allocation23 [shape = 'u8[65536]{0}', space=vmem, size = 0x10000, scoped, tag = 'input window, operand 20, single buffered']
    #allocation24 [shape = 's32[1]{0}', space=sflag, size = 0x4, scoped, tag = 'scoped memory for tpu_custom_call.1']
    #allocation25 [shape = 'u8[65536]{0}', space=vmem, size = 0x10000, scoped, tag = 'input window, operand 22, single buffered']
    #allocation26 [shape = 'u8[65536]{0}', space=vmem, size = 0x10000, scoped, tag = 'input window, operand 23, single buffered']
    #allocation27 [shape = 's32[1]{0}', space=sflag, size = 0x4, scoped, tag = 'scoped memory for tpu_custom_call.1']
    #allocation28 [shape = 'u8[65536]{0}', space=vmem, size = 0x10000, scoped, tag = 'input window, operand 25, single buffered']
    #allocation29 [shape = 'u8[65536]{0}', space=vmem, size = 0x10000, scoped, tag = 'input window, operand 27, single buffered']
    #allocation30 [shape = 's32[1]{0}', space=sflag, size = 0x4, scoped, tag = 'scoped memory for tpu_custom_call.1']
    #allocation31 [shape = 'u8[65536]{0}', space=vmem, size = 0x10000, scoped, tag = 'input window, operand 29, single buffered']
    #allocation32 [shape = 'u8[8192]{0}', space=vmem, size = 0x2000, scoped, tag = 'output window, operand 0, single buffered']
    %68 = vsyncpa [#allocation3], 0
    %69 = vsyncpa [#allocation6], 0
    %70 = vsyncpa [#allocation9], 0
    %71 = vsyncpa [#allocation12], 0
    %72 = vsyncpa [#allocation15], 0
    %73 = vsyncpa [#allocation18], 0
    %74 = vsyncpa [#allocation21], 0
    %75 = vsyncpa [#allocation24], 0
    %76 = vsyncpa [#allocation27], 0
    %77 = vsyncpa [#allocation30], 0
    %78 = vsyncpa [#allocation4], 0
    // Predicated region
    $region2: #{tpu_custom_call.1} parent=1 // pred_check
      _
    $region3: #{tpu_custom_call.1} parent=1 // pred_check_branch
      %80 = sbr.rel (0) target = $region5
    $region4: #{tpu_custom_call.1} parent=1 // pred_region
      %s82 = ssub.s32 512, 512
      %83 = vsyncadd [#allocation3], %s82
      %s84 = sshll.u32 [#allocation2], 4
      %s85 = int_to_ptr.vmem [resolvable:$true] %s84
      %90 = dma.hbm_to_vmem [thread:$0]  %s1, 512, %s85, [#allocation3], 128, 128, 8
    $region5: #{tpu_custom_call.1} parent=1 // pred_fallthru
      _
    // Predicated region
    $region6: #{tpu_custom_call.1} parent=1 // pred_check
      _
    $region7: #{tpu_custom_call.1} parent=1 // pred_check_branch
      %92 = sbr.rel (0) target = $region9
    $region8: #{tpu_custom_call.1} parent=1 // pred_region
      _
    $region9: #{tpu_custom_call.1} parent=1 // pred_fallthru
      _
    // Predicated region
    $region10: #{tpu_custom_call.1} parent=1 // pred_check
      _
    $region11: #{tpu_custom_call.1} parent=1 // pred_check_branch
      %94 = sbr.rel (0) target = $region13
    $region12: #{tpu_custom_call.1} parent=1 // pred_region
      _
    $region13: #{tpu_custom_call.1} parent=1 // pred_fallthru
      _
    // Predicated region
    $region14: #{tpu_custom_call.1} parent=1 // pred_check
      _
    $region15: #{tpu_custom_call.1} parent=1 // pred_check_branch
      %96 = sbr.rel (0) target = $region17
    $region16: #{tpu_custom_call.1} parent=1 // pred_region
      %s98 = ssub.s32 16, 16
      %99 = vsyncadd [#allocation6], %s98
      %s101 = sshll.u32 [#allocation5], 4
      %s102 = int_to_ptr.vmem [resolvable:$true] %s101
      %104 = dma.hbm_to_vmem [thread:$0]  %s7, 16, %s102, [#allocation6]
    $region17: #{tpu_custom_call.1} parent=1 // pred_fallthru
      _
    // Predicated region
    $region18: #{tpu_custom_call.1} parent=1 // pred_check
      _
    $region19: #{tpu_custom_call.1} parent=1 // pred_check_branch
      %106 = sbr.rel (0) target = $region21
    $region20: #{tpu_custom_call.1} parent=1 // pred_region
      _
    $region21: #{tpu_custom_call.1} parent=1 // pred_fallthru
      _
    // Predicated region
    $region22: #{tpu_custom_call.1} parent=1 // pred_check
      _
    $region23: #{tpu_custom_call.1} parent=1 // pred_check_branch
      %108 = sbr.rel (0) target = $region25
    $region24: #{tpu_custom_call.1} parent=1 // pred_region
      _
    $region25: #{tpu_custom_call.1} parent=1 // pred_fallthru
      _
    // Predicated region
    $region26: #{tpu_custom_call.1} parent=1 // pred_check
      _
    $region27: #{tpu_custom_call.1} parent=1 // pred_check_branch
      %110 = sbr.rel (0) target = $region29
    $region28: #{tpu_custom_call.1} parent=1 // pred_region
      %s112 = ssub.s32 16, 16
      %113 = vsyncadd [#allocation6], %s112
      %s115 = sshll.u32 [#allocation7], 4
      %s116 = int_to_ptr.vmem [resolvable:$true] %s115
      %118 = dma.hbm_to_vmem [thread:$0]  %s13, 16, %s116, [#allocation6]
    $region29: #{tpu_custom_call.1} parent=1 // pred_fallthru
      _
    // Predicated region
    $region30: #{tpu_custom_call.1} parent=1 // pred_check
      _
    $region31: #{tpu_custom_call.1} parent=1 // pred_check_branch
      %120 = sbr.rel (0) target = $region33
    $region32: #{tpu_custom_call.1} parent=1 // pred_region
      _
    $region33: #{tpu_custom_call.1} parent=1 // pred_fallthru
      _
    // Predicated region
    $region34: #{tpu_custom_call.1} parent=1 // pred_check
      _
    $region35: #{tpu_custom_call.1} parent=1 // pred_check_branch
      %122 = sbr.rel (0) target = $region37
    $region36: #{tpu_custom_call.1} parent=1 // pred_region
      %s124 = ssub.s32 2048, 2048
      %125 = vsyncadd [#allocation9], %s124
      %s126 = sshll.u32 [#allocation8], 4
      %s127 = int_to_ptr.vmem [resolvable:$true] %s126
      %132 = dma.hbm_to_vmem [thread:$0]  %s17, 2048, %s127, [#allocation9], 128, 128, 8
    $region37: #{tpu_custom_call.1} parent=1 // pred_fallthru
      _
    // Predicated region
    $region38: #{tpu_custom_call.1} parent=1 // pred_check
      _
    $region39: #{tpu_custom_call.1} parent=1 // pred_check_branch
      %134 = sbr.rel (0) target = $region41
    $region40: #{tpu_custom_call.1} parent=1 // pred_region
      %s136 = ssub.s32 16, 16
      %137 = vsyncadd [#allocation9], %s136
      %s139 = sshll.u32 [#allocation10], 4
      %s140 = int_to_ptr.vmem [resolvable:$true] %s139
      %142 = dma.hbm_to_vmem [thread:$0]  %s19, 16, %s140, [#allocation9]
    $region41: #{tpu_custom_call.1} parent=1 // pred_fallthru
      _
    // Predicated region
    $region42: #{tpu_custom_call.1} parent=1 // pred_check
      _
    $region43: #{tpu_custom_call.1} parent=1 // pred_check_branch
      %144 = sbr.rel (0) target = $region45
    $region44: #{tpu_custom_call.1} parent=1 // pred_region
      %s146 = ssub.s32 2048, 2048
      %147 = vsyncadd [#allocation12], %s146
      %s148 = sshll.u32 [#allocation11], 4
      %s149 = int_to_ptr.vmem [resolvable:$true] %s148
      %154 = dma.hbm_to_vmem [thread:$0]  %s21, 2048, %s149, [#allocation12], 128, 128, 8
    $region45: #{tpu_custom_call.1} parent=1 // pred_fallthru
      _
    // Predicated region
    $region46: #{tpu_custom_call.1} parent=1 // pred_check
      _
    $region47: #{tpu_custom_call.1} parent=1 // pred_check_branch
      %156 = sbr.rel (0) target = $region49
    $region48: #{tpu_custom_call.1} parent=1 // pred_region
      %s158 = ssub.s32 16, 16
      %159 = vsyncadd [#allocation12], %s158
      %s161 = sshll.u32 [#allocation13], 4
      %s162 = int_to_ptr.vmem [resolvable:$true] %s161
      %164 = dma.hbm_to_vmem [thread:$0]  %s23, 16, %s162, [#allocation12]
    $region49: #{tpu_custom_call.1} parent=1 // pred_fallthru
      _
    // Predicated region
    $region50: #{tpu_custom_call.1} parent=1 // pred_check
      _
    $region51: #{tpu_custom_call.1} parent=1 // pred_check_branch
      %166 = sbr.rel (0) target = $region53
    $region52: #{tpu_custom_call.1} parent=1 // pred_region
      %s168 = ssub.s32 2048, 2048
      %169 = vsyncadd [#allocation15], %s168
      %s170 = sshll.u32 [#allocation14], 4
      %s171 = int_to_ptr.vmem [resolvable:$true] %s170
      %176 = dma.hbm_to_vmem [thread:$0]  %s25, 2048, %s171, [#allocation15], 128, 128, 8
    $region53: #{tpu_custom_call.1} parent=1 // pred_fallthru
      _
    // Predicated region
    $region54: #{tpu_custom_call.1} parent=1 // pred_check
      _
    $region55: #{tpu_custom_call.1} parent=1 // pred_check_branch
      %178 = sbr.rel (0) target = $region57
    $region56: #{tpu_custom_call.1} parent=1 // pred_region
      %s180 = ssub.s32 2048, 2048
      %181 = vsyncadd [#allocation15], %s180
      %s182 = sshll.u32 [#allocation16], 4
      %s183 = int_to_ptr.vmem [resolvable:$true] %s182
      %188 = dma.hbm_to_vmem [thread:$0]  %s27, 2048, %s183, [#allocation15], 128, 128, 8
    $region57: #{tpu_custom_call.1} parent=1 // pred_fallthru
      _
    // Predicated region
    $region58: #{tpu_custom_call.1} parent=1 // pred_check
      _
    $region59: #{tpu_custom_call.1} parent=1 // pred_check_branch
      %190 = sbr.rel (0) target = $region61
    $region60: #{tpu_custom_call.1} parent=1 // pred_region
      %s192 = ssub.s32 16, 16
      %193 = vsyncadd [#allocation18], %s192
      %s195 = sshll.u32 [#allocation17], 4
      %s196 = int_to_ptr.vmem [resolvable:$true] %s195
      %198 = dma.hbm_to_vmem [thread:$0]  %s29, 16, %s196, [#allocation18]
    $region61: #{tpu_custom_call.1} parent=1 // pred_fallthru
      _
    // Predicated region
    $region62: #{tpu_custom_call.1} parent=1 // pred_check
      _
    $region63: #{tpu_custom_call.1} parent=1 // pred_check_branch
      %200 = sbr.rel (0) target = $region65
    $region64: #{tpu_custom_call.1} parent=1 // pred_region
      %s202 = ssub.s32 2048, 2048
      %203 = vsyncadd [#allocation18], %s202
      %s204 = sshll.u32 [#allocation19], 4
      %s205 = int_to_ptr.vmem [resolvable:$true] %s204
      %210 = dma.hbm_to_vmem [thread:$0]  %s31, 2048, %s205, [#allocation18], 128, 128, 8
    $region65: #{tpu_custom_call.1} parent=1 // pred_fallthru
      _
    // Predicated region
    $region66: #{tpu_custom_call.1} parent=1 // pred_check
      _
    $region67: #{tpu_custom_call.1} parent=1 // pred_check_branch
      %212 = sbr.rel (0) target = $region69
    $region68: #{tpu_custom_call.1} parent=1 // pred_region
      %s214 = ssub.s32 16, 16
      %215 = vsyncadd [#allocation21], %s214
      %s217 = sshll.u32 [#allocation20], 4
      %s218 = int_to_ptr.vmem [resolvable:$true] %s217
      %220 = dma.hbm_to_vmem [thread:$0]  %s33, 16, %s218, [#allocation21]
    $region69: #{tpu_custom_call.1} parent=1 // pred_fallthru
      _
    // Predicated region
    $region70: #{tpu_custom_call.1} parent=1 // pred_check
      _
    $region71: #{tpu_custom_call.1} parent=1 // pred_check_branch
      %222 = sbr.rel (0) target = $region73
    $region72: #{tpu_custom_call.1} parent=1 // pred_region
      _
    $region73: #{tpu_custom_call.1} parent=1 // pred_fallthru
      _
    // Predicated region
    $region74: #{tpu_custom_call.1} parent=1 // pred_check
      _
    $region75: #{tpu_custom_call.1} parent=1 // pred_check_branch
      %224 = sbr.rel (0) target = $region77
    $region76: #{tpu_custom_call.1} parent=1 // pred_region
      %s226 = ssub.s32 2048, 2048
      %227 = vsyncadd [#allocation21], %s226
      %s228 = sshll.u32 [#allocation22], 4
      %s229 = int_to_ptr.vmem [resolvable:$true] %s228
      %234 = dma.hbm_to_vmem [thread:$0]  %s37, 2048, %s229, [#allocation21], 128, 128, 8
    $region77: #{tpu_custom_call.1} parent=1 // pred_fallthru
      _
    // Predicated region
    $region78: #{tpu_custom_call.1} parent=1 // pred_check
      _
    $region79: #{tpu_custom_call.1} parent=1 // pred_check_branch
      %236 = sbr.rel (0) target = $region81
    $region80: #{tpu_custom_call.1} parent=1 // pred_region
      _
    $region81: #{tpu_custom_call.1} parent=1 // pred_fallthru
      _
    // Predicated region
    $region82: #{tpu_custom_call.1} parent=1 // pred_check
      _
    $region83: #{tpu_custom_call.1} parent=1 // pred_check_branch
      %238 = sbr.rel (0) target = $region85
    $region84: #{tpu_custom_call.1} parent=1 // pred_region
      %s240 = ssub.s32 2048, 2048
      %241 = vsyncadd [#allocation24], %s240
      %s242 = sshll.u32 [#allocation23], 4
      %s243 = int_to_ptr.vmem [resolvable:$true] %s242
      %248 = dma.hbm_to_vmem [thread:$0]  %s41, 2048, %s243, [#allocation24], 128, 128, 8
    $region85: #{tpu_custom_call.1} parent=1 // pred_fallthru
      _
    // Predicated region
    $region86: #{tpu_custom_call.1} parent=1 // pred_check
      _
    $region87: #{tpu_custom_call.1} parent=1 // pred_check_branch
      %250 = sbr.rel (0) target = $region89
    $region88: #{tpu_custom_call.1} parent=1 // pred_region
      _
    $region89: #{tpu_custom_call.1} parent=1 // pred_fallthru
      _
    // Predicated region
    $region90: #{tpu_custom_call.1} parent=1 // pred_check
      _
    $region91: #{tpu_custom_call.1} parent=1 // pred_check_branch
      %252 = sbr.rel (0) target = $region93
    $region92: #{tpu_custom_call.1} parent=1 // pred_region
      %s254 = ssub.s32 2048, 2048
      %255 = vsyncadd [#allocation24], %s254
      %s256 = sshll.u32 [#allocation25], 4
      %s257 = int_to_ptr.vmem [resolvable:$true] %s256
      %262 = dma.hbm_to_vmem [thread:$0]  %s45, 2048, %s257, [#allocation24], 128, 128, 8
    $region93: #{tpu_custom_call.1} parent=1 // pred_fallthru
      _
    // Predicated region
    $region94: #{tpu_custom_call.1} parent=1 // pred_check
      _
    $region95: #{tpu_custom_call.1} parent=1 // pred_check_branch
      %264 = sbr.rel (0) target = $region97
    $region96: #{tpu_custom_call.1} parent=1 // pred_region
      %s266 = ssub.s32 2048, 2048
      %267 = vsyncadd [#allocation27], %s266
      %s268 = sshll.u32 [#allocation26], 4
      %s269 = int_to_ptr.vmem [resolvable:$true] %s268
      %274 = dma.hbm_to_vmem [thread:$0]  %s47, 2048, %s269, [#allocation27], 128, 128, 8
    $region97: #{tpu_custom_call.1} parent=1 // pred_fallthru
      _
    // Predicated region
    $region98: #{tpu_custom_call.1} parent=1 // pred_check
      _
    $region99: #{tpu_custom_call.1} parent=1 // pred_check_branch
      %276 = sbr.rel (0) target = $region101
    $region100: #{tpu_custom_call.1} parent=1 // pred_region
      _
    $region101: #{tpu_custom_call.1} parent=1 // pred_fallthru
      _
    // Predicated region
    $region102: #{tpu_custom_call.1} parent=1 // pred_check
      _
    $region103: #{tpu_custom_call.1} parent=1 // pred_check_branch
      %278 = sbr.rel (0) target = $region105
    $region104: #{tpu_custom_call.1} parent=1 // pred_region
      %s280 = ssub.s32 2048, 2048
      %281 = vsyncadd [#allocation27], %s280
      %s282 = sshll.u32 [#allocation28], 4
      %s283 = int_to_ptr.vmem [resolvable:$true] %s282
      %288 = dma.hbm_to_vmem [thread:$0]  %s51, 2048, %s283, [#allocation27], 128, 128, 8
    $region105: #{tpu_custom_call.1} parent=1 // pred_fallthru
      _
    // Predicated region
    $region106: #{tpu_custom_call.1} parent=1 // pred_check
      _
    $region107: #{tpu_custom_call.1} parent=1 // pred_check_branch
      %290 = sbr.rel (0) target = $region109
    $region108: #{tpu_custom_call.1} parent=1 // pred_region
      _
    $region109: #{tpu_custom_call.1} parent=1 // pred_fallthru
      _
    // Predicated region
    $region110: #{tpu_custom_call.1} parent=1 // pred_check
      _
    $region111: #{tpu_custom_call.1} parent=1 // pred_check_branch
      %292 = sbr.rel (0) target = $region113
    $region112: #{tpu_custom_call.1} parent=1 // pred_region
      %s294 = ssub.s32 2048, 2048
      %295 = vsyncadd [#allocation30], %s294
      %s296 = sshll.u32 [#allocation29], 4
      %s297 = int_to_ptr.vmem [resolvable:$true] %s296
      %302 = dma.hbm_to_vmem [thread:$0]  %s55, 2048, %s297, [#allocation30], 128, 128, 8
    $region113: #{tpu_custom_call.1} parent=1 // pred_fallthru
      _
    // Predicated region
    $region114: #{tpu_custom_call.1} parent=1 // pred_check
      _
    $region115: #{tpu_custom_call.1} parent=1 // pred_check_branch
      %304 = sbr.rel (0) target = $region117
    $region116: #{tpu_custom_call.1} parent=1 // pred_region
      _
    $region117: #{tpu_custom_call.1} parent=1 // pred_fallthru
      _
    // Predicated region
    $region118: #{tpu_custom_call.1} parent=1 // pred_check
      _
    $region119: #{tpu_custom_call.1} parent=1 // pred_check_branch
      %306 = sbr.rel (0) target = $region121
    $region120: #{tpu_custom_call.1} parent=1 // pred_region
      %s308 = ssub.s32 2048, 2048
      %309 = vsyncadd [#allocation30], %s308
      %s310 = sshll.u32 [#allocation31], 4
      %s311 = int_to_ptr.vmem [resolvable:$true] %s310
      %316 = dma.hbm_to_vmem [thread:$0]  %s59, 2048, %s311, [#allocation30], 128, 128, 8
    $region121: #{tpu_custom_call.1} parent=1 // pred_fallthru
      _
    // Predicated region
    $region122: #{tpu_custom_call.1} parent=1 // pred_check
      _
    $region123: #{tpu_custom_call.1} parent=1 // pred_check_branch
      %318 = sbr.rel (0) target = $region125
    $region124: #{tpu_custom_call.1} parent=1 // pred_region
      _
    $region125: #{tpu_custom_call.1} parent=1 // pred_fallthru
      _
    // Predicated region
    $region126: #{tpu_custom_call.1} parent=1 // pred_check
      _
    $region127: #{tpu_custom_call.1} parent=1 // pred_check_branch
      %320 = sbr.rel (0) target = $region129
    $region128: #{tpu_custom_call.1} parent=1 // pred_region
      %321 = dma.done [#allocation3], 512
    $region129: #{tpu_custom_call.1} parent=1 // pred_fallthru
      _
    // Predicated region
    $region130: #{tpu_custom_call.1} parent=1 // pred_check
      _
    $region131: #{tpu_custom_call.1} parent=1 // pred_check_branch
      %323 = sbr.rel (0) target = $region133
    $region132: #{tpu_custom_call.1} parent=1 // pred_region
      %324 = dma.done [#allocation6], 16
    $region133: #{tpu_custom_call.1} parent=1 // pred_fallthru
      _
    // Predicated region
    $region134: #{tpu_custom_call.1} parent=1 // pred_check
      _
    $region135: #{tpu_custom_call.1} parent=1 // pred_check_branch
      %326 = sbr.rel (0) target = $region137
    $region136: #{tpu_custom_call.1} parent=1 // pred_region
      %327 = dma.done [#allocation6], 16
    $region137: #{tpu_custom_call.1} parent=1 // pred_fallthru
      _
    // Predicated region
    $region138: #{tpu_custom_call.1} parent=1 // pred_check
      _
    $region139: #{tpu_custom_call.1} parent=1 // pred_check_branch
      %329 = sbr.rel (0) target = $region141
    $region140: #{tpu_custom_call.1} parent=1 // pred_region
      %330 = dma.done [#allocation9], 2048
    $region141: #{tpu_custom_call.1} parent=1 // pred_fallthru
      _
    // Predicated region
    $region142: #{tpu_custom_call.1} parent=1 // pred_check
      _
    $region143: #{tpu_custom_call.1} parent=1 // pred_check_branch
      %332 = sbr.rel (0) target = $region145
    $region144: #{tpu_custom_call.1} parent=1 // pred_region
      %333 = dma.done [#allocation9], 16
    $region145: #{tpu_custom_call.1} parent=1 // pred_fallthru
      _
    // Predicated region
    $region146: #{tpu_custom_call.1} parent=1 // pred_check
      _
    $region147: #{tpu_custom_call.1} parent=1 // pred_check_branch
      %335 = sbr.rel (0) target = $region149
    $region148: #{tpu_custom_call.1} parent=1 // pred_region
      %336 = dma.done [#allocation12], 2048
    $region149: #{tpu_custom_call.1} parent=1 // pred_fallthru
      _
    // Predicated region
    $region150: #{tpu_custom_call.1} parent=1 // pred_check
      _
    $region151: #{tpu_custom_call.1} parent=1 // pred_check_branch
      %338 = sbr.rel (0) target = $region153
    $region152: #{tpu_custom_call.1} parent=1 // pred_region
      %339 = dma.done [#allocation12], 16
    $region153: #{tpu_custom_call.1} parent=1 // pred_fallthru
      _
    // Predicated region
    $region154: #{tpu_custom_call.1} parent=1 // pred_check
      _
    $region155: #{tpu_custom_call.1} parent=1 // pred_check_branch
      %341 = sbr.rel (0) target = $region157
    $region156: #{tpu_custom_call.1} parent=1 // pred_region
      %342 = dma.done [#allocation15], 2048
    $region157: #{tpu_custom_call.1} parent=1 // pred_fallthru
      _
    // Predicated region
    $region158: #{tpu_custom_call.1} parent=1 // pred_check
      _
    $region159: #{tpu_custom_call.1} parent=1 // pred_check_branch
      %344 = sbr.rel (0) target = $region161
    $region160: #{tpu_custom_call.1} parent=1 // pred_region
      %345 = dma.done [#allocation15], 2048
    $region161: #{tpu_custom_call.1} parent=1 // pred_fallthru
      _
    // Predicated region
    $region162: #{tpu_custom_call.1} parent=1 // pred_check
      _
    $region163: #{tpu_custom_call.1} parent=1 // pred_check_branch
      %347 = sbr.rel (0) target = $region165
    $region164: #{tpu_custom_call.1} parent=1 // pred_region
      %348 = dma.done [#allocation18], 16
    $region165: #{tpu_custom_call.1} parent=1 // pred_fallthru
      _
    // Predicated region
    $region166: #{tpu_custom_call.1} parent=1 // pred_check
      _
    $region167: #{tpu_custom_call.1} parent=1 // pred_check_branch
      %350 = sbr.rel (0) target = $region169
    $region168: #{tpu_custom_call.1} parent=1 // pred_region
      %351 = dma.done [#allocation18], 2048
    $region169: #{tpu_custom_call.1} parent=1 // pred_fallthru
      _
    // Predicated region
    $region170: #{tpu_custom_call.1} parent=1 // pred_check
      _
    $region171: #{tpu_custom_call.1} parent=1 // pred_check_branch
      %353 = sbr.rel (0) target = $region173
    $region172: #{tpu_custom_call.1} parent=1 // pred_region
      %354 = dma.done [#allocation21], 16
    $region173: #{tpu_custom_call.1} parent=1 // pred_fallthru
      _
    // Predicated region
    $region174: #{tpu_custom_call.1} parent=1 // pred_check
      _
    $region175: #{tpu_custom_call.1} parent=1 // pred_check_branch
      %356 = sbr.rel (0) target = $region177
    $region176: #{tpu_custom_call.1} parent=1 // pred_region
      %357 = dma.done [#allocation21], 2048
    $region177: #{tpu_custom_call.1} parent=1 // pred_fallthru
      _
    // Predicated region
    $region178: #{tpu_custom_call.1} parent=1 // pred_check
      _
    $region179: #{tpu_custom_call.1} parent=1 // pred_check_branch
      %359 = sbr.rel (0) target = $region181
    $region180: #{tpu_custom_call.1} parent=1 // pred_region
      %360 = dma.done [#allocation24], 2048
    $region181: #{tpu_custom_call.1} parent=1 // pred_fallthru
      _
    // Predicated region
    $region182: #{tpu_custom_call.1} parent=1 // pred_check
      _
    $region183: #{tpu_custom_call.1} parent=1 // pred_check_branch
      %362 = sbr.rel (0) target = $region185
    $region184: #{tpu_custom_call.1} parent=1 // pred_region
      %363 = dma.done [#allocation24], 2048
    $region185: #{tpu_custom_call.1} parent=1 // pred_fallthru
      _
    // Predicated region
    $region186: #{tpu_custom_call.1} parent=1 // pred_check
      _
    $region187: #{tpu_custom_call.1} parent=1 // pred_check_branch
      %365 = sbr.rel (0) target = $region189
    $region188: #{tpu_custom_call.1} parent=1 // pred_region
      %366 = dma.done [#allocation27], 2048
    $region189: #{tpu_custom_call.1} parent=1 // pred_fallthru
      _
    // Predicated region
    $region190: #{tpu_custom_call.1} parent=1 // pred_check
      _
    $region191: #{tpu_custom_call.1} parent=1 // pred_check_branch
      %368 = sbr.rel (0) target = $region193
    $region192: #{tpu_custom_call.1} parent=1 // pred_region
      %369 = dma.done [#allocation27], 2048
    $region193: #{tpu_custom_call.1} parent=1 // pred_fallthru
      _
    // Predicated region
    $region194: #{tpu_custom_call.1} parent=1 // pred_check
      _
    $region195: #{tpu_custom_call.1} parent=1 // pred_check_branch
      %371 = sbr.rel (0) target = $region197
    $region196: #{tpu_custom_call.1} parent=1 // pred_region
      %372 = dma.done [#allocation30], 2048
    $region197: #{tpu_custom_call.1} parent=1 // pred_fallthru
      _
    // Predicated region
    $region198: #{tpu_custom_call.1} parent=1 // pred_check
      _
    $region199: #{tpu_custom_call.1} parent=1 // pred_check_branch
      %374 = sbr.rel (0) target = $region201
    $region200: #{tpu_custom_call.1} parent=1 // pred_region
      %375 = dma.done [#allocation30], 2048
    $region201: #{tpu_custom_call.1} parent=1 // pred_fallthru
      _
    %v376 = vld [vmem:[#allocation2] sm:$0xff]
    %v377 = vld [vmem:[#allocation2 + $0x8] sm:$0xff]
    %v378 = vld [vmem:[#allocation2 + $0x10] sm:$0xff]
    %v379 = vld [vmem:[#allocation2 + $0x18] sm:$0xff]
    %v380 = vlaneseq
    %v381 = vand.u32 %v380, 127
    %v382 = vld [vmem:[%s3] sm:$0xff]
    %v383 = vld [vmem:[%s3 + $0x8] sm:$0xff]
    %v384 = vld [vmem:[%s3 + $0x10] sm:$0xff]
    %v385 = vld [vmem:[%s3 + $0x18] sm:$0xff]
    %v386 = vld [vmem:[%s3 + $0x20] sm:$0xff]
    %v387 = vld [vmem:[%s3 + $0x28] sm:$0xff]
    %v388 = vld [vmem:[%s3 + $0x30] sm:$0xff]
    %v389 = vld [vmem:[%s3 + $0x38] sm:$0xff]
    %390 = vset.pattern.permute.xlu0 0
    %391 = vperm.xlu0 %390, %v382
    %v392 = vpop.permute.xlu0 %391
    %393 = vset.pattern.permute.xlu0 0
    %394 = vperm.xlu0 %393, %v383
    %v395 = vpop.permute.xlu0 %394
    %396 = vset.pattern.permute.xlu0 0
    %397 = vperm.xlu0 %396, %v384
    %v398 = vpop.permute.xlu0 %397
    %399 = vset.pattern.permute.xlu0 0
    %400 = vperm.xlu0 %399, %v385
    %v401 = vpop.permute.xlu0 %400
    %402 = vset.pattern.permute.xlu0 0
    %403 = vperm.xlu0 %402, %v386
    %v404 = vpop.permute.xlu0 %403
    %405 = vset.pattern.permute.xlu0 0
    %406 = vperm.xlu0 %405, %v387
    %v407 = vpop.permute.xlu0 %406
    %408 = vset.pattern.permute.xlu0 0
    %409 = vperm.xlu0 %408, %v388
    %v410 = vpop.permute.xlu0 %409
    %411 = vset.pattern.permute.xlu0 0
    %412 = vperm.xlu0 %411, %v389
    %v413 = vpop.permute.xlu0 %412
    %vm414 = vcmp.eq.s32.totalorder %v381, %v392
    %vm415 = vcmp.eq.s32.totalorder %v381, %v395
    %vm416 = vcmp.eq.s32.totalorder %v381, %v398
    %vm417 = vcmp.eq.s32.totalorder %v381, %v401
    %vm418 = vcmp.eq.s32.totalorder %v381, %v404
    %vm419 = vcmp.eq.s32.totalorder %v381, %v407
    %vm420 = vcmp.eq.s32.totalorder %v381, %v410
    %vm421 = vcmp.eq.s32.totalorder %v381, %v413
    %v422 = vsel %vm414, 1, 0
    %v423 = vsel %vm415, 1, 0
    %v424 = vsel %vm416, 1, 0
    %v425 = vsel %vm417, 1, 0
    %v426 = vsel %vm418, 1, 0
    %v427 = vsel %vm419, 1, 0
    %v428 = vsel %vm420, 1, 0
    %v429 = vsel %vm421, 1, 0
    %v430 = vcvt.s32.f32 %v422
    %v431 = vcvt.s32.f32 %v423
    %v432 = vcvt.s32.f32 %v424
    %v433 = vcvt.s32.f32 %v425
    %v434 = vcvt.s32.f32 %v426
    %v435 = vcvt.s32.f32 %v427
    %v436 = vcvt.s32.f32 %v428
    %v437 = vcvt.s32.f32 %v429
    %v438 = vld [vmem:[%s5] sm:$0xff]
    %v439 = vld [vmem:[%s5 + $0x8] sm:$0xff]
    %v440 = vld [vmem:[%s5 + $0x10] sm:$0xff]
    %v441 = vld [vmem:[%s5 + $0x18] sm:$0xff]
    %v442 = vld [vmem:[%s5 + $0x20] sm:$0xff]
    %v443 = vld [vmem:[%s5 + $0x28] sm:$0xff]
    %v444 = vld [vmem:[%s5 + $0x30] sm:$0xff]
    %v445 = vld [vmem:[%s5 + $0x38] sm:$0xff]
    %446 = vset.pattern.permute.xlu0 0
    %447 = vperm.xlu0 %446, %v438
    %v448 = vpop.permute.xlu0 %447
    %449 = vset.pattern.permute.xlu0 0
    %450 = vperm.xlu0 %449, %v439
    %v451 = vpop.permute.xlu0 %450
    %452 = vset.pattern.permute.xlu0 0
    %453 = vperm.xlu0 %452, %v440
    %v454 = vpop.permute.xlu0 %453
    %455 = vset.pattern.permute.xlu0 0
    %456 = vperm.xlu0 %455, %v441
    %v457 = vpop.permute.xlu0 %456
    %458 = vset.pattern.permute.xlu0 0
    %459 = vperm.xlu0 %458, %v442
    %v460 = vpop.permute.xlu0 %459
    %461 = vset.pattern.permute.xlu0 0
    %462 = vperm.xlu0 %461, %v443
    %v463 = vpop.permute.xlu0 %462
    %464 = vset.pattern.permute.xlu0 0
    %465 = vperm.xlu0 %464, %v444
    %v466 = vpop.permute.xlu0 %465
    %467 = vset.pattern.permute.xlu0 0
    %468 = vperm.xlu0 %467, %v445
    %v469 = vpop.permute.xlu0 %468
    %vm470 = vcmp.eq.s32.totalorder %v381, %v448
    %vm471 = vcmp.eq.s32.totalorder %v381, %v451
    %vm472 = vcmp.eq.s32.totalorder %v381, %v454
    %vm473 = vcmp.eq.s32.totalorder %v381, %v457
    %vm474 = vcmp.eq.s32.totalorder %v381, %v460
    %vm475 = vcmp.eq.s32.totalorder %v381, %v463
    %vm476 = vcmp.eq.s32.totalorder %v381, %v466
    %vm477 = vcmp.eq.s32.totalorder %v381, %v469
    %v478 = vsel %vm470, 1, 0
    %v479 = vsel %vm471, 1, 0
    %v480 = vsel %vm472, 1, 0
    %v481 = vsel %vm473, 1, 0
    %v482 = vsel %vm474, 1, 0
    %v483 = vsel %vm475, 1, 0
    %v484 = vsel %vm476, 1, 0
    %v485 = vsel %vm477, 1, 0
    %v486 = vcvt.s32.f32 %v478
    %v487 = vcvt.s32.f32 %v479
    %v488 = vcvt.s32.f32 %v480
    %v489 = vcvt.s32.f32 %v481
    %v490 = vcvt.s32.f32 %v482
    %v491 = vcvt.s32.f32 %v483
    %v492 = vcvt.s32.f32 %v484
    %v493 = vcvt.s32.f32 %v485
    %vm494 = vcmask 261120
    %v496 = vsel %vm494, %v430, 0
    %v499 = vsel %vm494, %v431, 0
    %v502 = vsel %vm494, %v432, 0
    %v505 = vsel %vm494, %v433, 0
    %v508 = vsel %vm494, %v434, 0
    %v511 = vsel %vm494, %v435, 0
    %v514 = vsel %vm494, %v436, 0
    %v517 = vsel %vm494, %v437, 0
    %519 = vmatprep.subr.mxu0 0.0
    %520 = vmatpush1.msra.mxu0 %v376
    %521 = vmatprep.subr.mxu0 0.0
    %522 = vmatpush1.msra.mxu0 %v377
    %523 = vmatprep.subr.mxu0 0.0
    %524 = vmatpush1.msra.mxu0 %v378
    %525 = vmatprep.subr.mxu0 0.0
    %526 = vmatpush1.msra.mxu0 %v379
    %527 = vmatprep.subr.mxu0 0.0
    %528 = vmatpush1.msra.mxu0 0.0
    %529 = vmatprep.subr.mxu0 0.0
    %530 = vmatpush1.msra.mxu0 0.0
    %531 = vmatprep.subr.mxu0 0.0
    %532 = vmatpush1.msra.mxu0 0.0
    %533 = vmatprep.subr.mxu0 0.0
    %534 = vmatpush1.msra.mxu0 0.0
    %535 = vmatprep.subr.mxu0 0.0
    %536 = vmatpush1.msra.mxu0 0.0
    %537 = vmatprep.subr.mxu0 0.0
    %538 = vmatpush1.msra.mxu0 0.0
    %539 = vmatprep.subr.mxu0 0.0
    %540 = vmatpush1.msra.mxu0 0.0
    %541 = vmatprep.subr.mxu0 0.0
    %542 = vmatpush1.msra.mxu0 0.0
    %543 = vmatprep.subr.mxu0 0.0
    %544 = vmatpush1.msra.mxu0 0.0
    %545 = vmatprep.subr.mxu0 0.0
    %546 = vmatpush1.msra.mxu0 0.0
    %547 = vmatprep.subr.mxu0 0.0
    %548 = vmatpush1.msra.mxu0 0.0
    %549 = vmatprep.subr.mxu0 0.0
    %550 = vmatpush1.msra.mxu0 0.0
    %551 = vmatprep.subr.mxu0 0.0
    %552 = vmatpush1.msra.mxu0 0.0
    %553 = vmatprep.subr.mxu0 0.0
    %554 = vmatpush1.msra.mxu0 0.0
    %555 = vmatprep.subr.mxu0 0.0
    %556 = vmatpush1.msra.mxu0 0.0
    %557 = vmatprep.subr.mxu0 0.0
    %558 = vmatpush1.msra.mxu0 0.0
    %559 = vmatprep.subr.mxu0 0.0
    %560 = vmatpush1.msra.mxu0 0.0
    %561 = vmatprep.subr.mxu0 0.0
    %562 = vmatpush1.msra.mxu0 0.0
    %563 = vmatprep.subr.mxu0 0.0
    %564 = vmatpush1.msra.mxu0 0.0
    %565 = vmatprep.subr.mxu0 0.0
    %566 = vmatpush1.msra.mxu0 0.0
    %567 = vmatprep.subr.mxu0 0.0
    %568 = vmatpush1.msra.mxu0 0.0
    %569 = vmatprep.subr.mxu0 0.0
    %570 = vmatpush1.msra.mxu0 0.0
    %571 = vmatprep.subr.mxu0 0.0
    %572 = vmatpush1.msra.mxu0 0.0
    %573 = vmatprep.subr.mxu0 0.0
    %574 = vmatpush1.msra.mxu0 0.0
    %575 = vmatprep.subr.mxu0 0.0
    %576 = vmatpush1.msra.mxu0 0.0
    %577 = vmatprep.subr.mxu0 0.0
    %578 = vmatpush1.msra.mxu0 0.0
    %579 = vmatprep.subr.mxu0 0.0
    %580 = vmatpush1.msra.mxu0 0.0
    %581 = vmatprep.subr.mxu0 0.0
    %582 = vmatpush1.msra.mxu0 0.0
    %583 = vmatprep.mubr.f32.mxu0 0.0
    %584 = vmatmul.mubr.f32.gmra.mrb[0].mxu0 %v496
    %v585 = vpop.f32.mrb[0].mxu0
    %v586 = vadd.f32 0.0, %v585
    %v587 = vpop.f32.mrb[0].mxu0
    %588 = vmatprep.mubr.f32.mxu0 0.0
    %589 = vmatmul.mubr.f32.gmra.mrb[0].mxu0 %v499
    %v590 = vpop.f32.mrb[0].mxu0
    %v591 = vadd.f32 0.0, %v590
    %v592 = vpop.f32.mrb[0].mxu0
    %593 = vmatprep.mubr.f32.mxu0 0.0
    %594 = vmatmul.mubr.f32.gmra.mrb[0].mxu0 %v502
    %v595 = vpop.f32.mrb[0].mxu0
    %v596 = vadd.f32 0.0, %v595
    %v597 = vpop.f32.mrb[0].mxu0
    %598 = vmatprep.mubr.f32.mxu0 0.0
    %599 = vmatmul.mubr.f32.gmra.mrb[0].mxu0 %v505
    %v600 = vpop.f32.mrb[0].mxu0
    %v601 = vadd.f32 0.0, %v600
    %v602 = vpop.f32.mrb[0].mxu0
    %603 = vmatprep.mubr.f32.mxu0 0.0
    %604 = vmatmul.mubr.f32.gmra.mrb[0].mxu0 %v508
    %v605 = vpop.f32.mrb[0].mxu0
    %v606 = vadd.f32 0.0, %v605
    %v607 = vpop.f32.mrb[0].mxu0
    %608 = vmatprep.mubr.f32.mxu0 0.0
    %609 = vmatmul.mubr.f32.gmra.mrb[0].mxu0 %v511
    %v610 = vpop.f32.mrb[0].mxu0
    %v611 = vadd.f32 0.0, %v610
    %v612 = vpop.f32.mrb[0].mxu0
    %613 = vmatprep.mubr.f32.mxu0 0.0
    %614 = vmatmul.mubr.f32.gmra.mrb[0].mxu0 %v514
    %v615 = vpop.f32.mrb[0].mxu0
    %v616 = vadd.f32 0.0, %v615
    %v617 = vpop.f32.mrb[0].mxu0
    %618 = vmatprep.mubr.f32.mxu0 0.0
    %619 = vmatmul.mubr.f32.gmra.mrb[0].mxu0 %v517
    %v620 = vpop.f32.mrb[0].mxu0
    %v621 = vadd.f32 0.0, %v620
    %v622 = vpop.f32.mrb[0].mxu0
    %623 = vdwg.mxu0
    %v625 = vsel %vm494, %v486, 0
    %v628 = vsel %vm494, %v487, 0
    %v631 = vsel %vm494, %v488, 0
    %v634 = vsel %vm494, %v489, 0
    %v637 = vsel %vm494, %v490, 0
    %v640 = vsel %vm494, %v491, 0
    %v643 = vsel %vm494, %v492, 0
    %v646 = vsel %vm494, %v493, 0
    %648 = vmatprep.subr.mxu0 0.0
    %649 = vmatpush1.msra.mxu0 %v376
    %650 = vmatprep.subr.mxu0 0.0
    %651 = vmatpush1.msra.mxu0 %v377
    %652 = vmatprep.subr.mxu0 0.0
    %653 = vmatpush1.msra.mxu0 %v378
    %654 = vmatprep.subr.mxu0 0.0
    %655 = vmatpush1.msra.mxu0 %v379
    %656 = vmatprep.subr.mxu0 0.0
    %657 = vmatpush1.msra.mxu0 0.0
    %658 = vmatprep.subr.mxu0 0.0
    %659 = vmatpush1.msra.mxu0 0.0
    %660 = vmatprep.subr.mxu0 0.0
    %661 = vmatpush1.msra.mxu0 0.0
    %662 = vmatprep.subr.mxu0 0.0
    %663 = vmatpush1.msra.mxu0 0.0
    %664 = vmatprep.subr.mxu0 0.0
    %665 = vmatpush1.msra.mxu0 0.0
    %666 = vmatprep.subr.mxu0 0.0
    %667 = vmatpush1.msra.mxu0 0.0
    %668 = vmatprep.subr.mxu0 0.0
    %669 = vmatpush1.msra.mxu0 0.0
    %670 = vmatprep.subr.mxu0 0.0
    %671 = vmatpush1.msra.mxu0 0.0
    %672 = vmatprep.subr.mxu0 0.0
    %673 = vmatpush1.msra.mxu0 0.0
    %674 = vmatprep.subr.mxu0 0.0
    %675 = vmatpush1.msra.mxu0 0.0
    %676 = vmatprep.subr.mxu0 0.0
    %677 = vmatpush1.msra.mxu0 0.0
    %678 = vmatprep.subr.mxu0 0.0
    %679 = vmatpush1.msra.mxu0 0.0
    %680 = vmatprep.subr.mxu0 0.0
    %681 = vmatpush1.msra.mxu0 0.0
    %682 = vmatprep.subr.mxu0 0.0
    %683 = vmatpush1.msra.mxu0 0.0
    %684 = vmatprep.subr.mxu0 0.0
    %685 = vmatpush1.msra.mxu0 0.0
    %686 = vmatprep.subr.mxu0 0.0
    %687 = vmatpush1.msra.mxu0 0.0
    %688 = vmatprep.subr.mxu0 0.0
    %689 = vmatpush1.msra.mxu0 0.0
    %690 = vmatprep.subr.mxu0 0.0
    %691 = vmatpush1.msra.mxu0 0.0
    %692 = vmatprep.subr.mxu0 0.0
    %693 = vmatpush1.msra.mxu0 0.0
    %694 = vmatprep.subr.mxu0 0.0
    %695 = vmatpush1.msra.mxu0 0.0
    %696 = vmatprep.subr.mxu0 0.0
    %697 = vmatpush1.msra.mxu0 0.0
    %698 = vmatprep.subr.mxu0 0.0
    %699 = vmatpush1.msra.mxu0 0.0
    %700 = vmatprep.subr.mxu0 0.0
    %701 = vmatpush1.msra.mxu0 0.0
    %702 = vmatprep.subr.mxu0 0.0
    %703 = vmatpush1.msra.mxu0 0.0
    %704 = vmatprep.subr.mxu0 0.0
    %705 = vmatpush1.msra.mxu0 0.0
    %706 = vmatprep.subr.mxu0 0.0
    %707 = vmatpush1.msra.mxu0 0.0
    %708 = vmatprep.subr.mxu0 0.0
    %709 = vmatpush1.msra.mxu0 0.0
    %710 = vmatprep.subr.mxu0 0.0
    %711 = vmatpush1.msra.mxu0 0.0
    %712 = vmatprep.mubr.f32.mxu0 0.0
    %713 = vmatmul.mubr.f32.gmra.mrb[0].mxu0 %v625
    %v714 = vpop.f32.mrb[0].mxu0
    %v715 = vadd.f32 0.0, %v714
    %v716 = vpop.f32.mrb[0].mxu0
    %717 = vmatprep.mubr.f32.mxu0 0.0
    %718 = vmatmul.mubr.f32.gmra.mrb[0].mxu0 %v628
    %v719 = vpop.f32.mrb[0].mxu0
    %v720 = vadd.f32 0.0, %v719
    %v721 = vpop.f32.mrb[0].mxu0
    %722 = vmatprep.mubr.f32.mxu0 0.0
    %723 = vmatmul.mubr.f32.gmra.mrb[0].mxu0 %v631
    %v724 = vpop.f32.mrb[0].mxu0
    %v725 = vadd.f32 0.0, %v724
    %v726 = vpop.f32.mrb[0].mxu0
    %727 = vmatprep.mubr.f32.mxu0 0.0
    %728 = vmatmul.mubr.f32.gmra.mrb[0].mxu0 %v634
    %v729 = vpop.f32.mrb[0].mxu0
    %v730 = vadd.f32 0.0, %v729
    %v731 = vpop.f32.mrb[0].mxu0
    %732 = vmatprep.mubr.f32.mxu0 0.0
    %733 = vmatmul.mubr.f32.gmra.mrb[0].mxu0 %v637
    %v734 = vpop.f32.mrb[0].mxu0
    %v735 = vadd.f32 0.0, %v734
    %v736 = vpop.f32.mrb[0].mxu0
    %737 = vmatprep.mubr.f32.mxu0 0.0
    %738 = vmatmul.mubr.f32.gmra.mrb[0].mxu0 %v640
    %v739 = vpop.f32.mrb[0].mxu0
    %v740 = vadd.f32 0.0, %v739
    %v741 = vpop.f32.mrb[0].mxu0
    %742 = vmatprep.mubr.f32.mxu0 0.0
    %743 = vmatmul.mubr.f32.gmra.mrb[0].mxu0 %v643
    %v744 = vpop.f32.mrb[0].mxu0
    %v745 = vadd.f32 0.0, %v744
    %v746 = vpop.f32.mrb[0].mxu0
    %747 = vmatprep.mubr.f32.mxu0 0.0
    %748 = vmatmul.mubr.f32.gmra.mrb[0].mxu0 %v646
    %v749 = vpop.f32.mrb[0].mxu0
    %v750 = vadd.f32 0.0, %v749
    %v751 = vpop.f32.mrb[0].mxu0
    %752 = vdwg.mxu0
    %v753 = vld [vmem:[%s15] sm:$0xff]
    %v754 = vld [vmem:[%s15 + $0x8] sm:$0xff]
    %v755 = vld [vmem:[%s15 + $0x10] sm:$0xff]
    %v756 = vld [vmem:[%s15 + $0x18] sm:$0xff]
    %v757 = vld [vmem:[%s15 + $0x20] sm:$0xff]
    %v758 = vld [vmem:[%s15 + $0x28] sm:$0xff]
    %v759 = vld [vmem:[%s15 + $0x30] sm:$0xff]
    %v760 = vld [vmem:[%s15 + $0x38] sm:$0xff]
    %v761 = vld [vmem:[%s15 + $0x40] sm:$0xff]
    %v762 = vld [vmem:[%s15 + $0x48] sm:$0xff]
    %v763 = vld [vmem:[%s15 + $0x50] sm:$0xff]
    %v764 = vld [vmem:[%s15 + $0x58] sm:$0xff]
    %v765 = vld [vmem:[%s15 + $0x60] sm:$0xff]
    %v766 = vld [vmem:[%s15 + $0x68] sm:$0xff]
    %v767 = vld [vmem:[%s15 + $0x70] sm:$0xff]
    %v768 = vld [vmem:[%s15 + $0x78] sm:$0xff]
    %v769 = vld [vmem:[#allocation8] sm:$0xff]
    %v770 = vld [vmem:[#allocation8 + $0x8] sm:$0xff]
    %v771 = vld [vmem:[#allocation8 + $0x10] sm:$0xff]
    %v772 = vld [vmem:[#allocation8 + $0x18] sm:$0xff]
    %v773 = vld [vmem:[#allocation8 + $0x20] sm:$0xff]
    %v774 = vld [vmem:[#allocation8 + $0x28] sm:$0xff]
    %v775 = vld [vmem:[#allocation8 + $0x30] sm:$0xff]
    %v776 = vld [vmem:[#allocation8 + $0x38] sm:$0xff]
    %v777 = vld [vmem:[#allocation8 + $0x40] sm:$0xff]
    %v778 = vld [vmem:[#allocation8 + $0x48] sm:$0xff]
    %v779 = vld [vmem:[#allocation8 + $0x50] sm:$0xff]
    %v780 = vld [vmem:[#allocation8 + $0x58] sm:$0xff]
    %v781 = vld [vmem:[#allocation8 + $0x60] sm:$0xff]
    %v782 = vld [vmem:[#allocation8 + $0x68] sm:$0xff]
    %v783 = vld [vmem:[#allocation8 + $0x70] sm:$0xff]
    %v784 = vld [vmem:[#allocation8 + $0x78] sm:$0xff]
    %785 = vmatprep.subr.mxu0 0.0
    %786 = vmatpush1.msra.mxu0 %v769
    %787 = vmatprep.subr.mxu0 0.0
    %788 = vmatpush1.msra.mxu0 %v770
    %789 = vmatprep.subr.mxu0 0.0
    %790 = vmatpush1.msra.mxu0 %v771
    %791 = vmatprep.subr.mxu0 0.0
    %792 = vmatpush1.msra.mxu0 %v772
    %793 = vmatprep.subr.mxu0 0.0
    %794 = vmatpush1.msra.mxu0 %v773
    %795 = vmatprep.subr.mxu0 0.0
    %796 = vmatpush1.msra.mxu0 %v774
    %797 = vmatprep.subr.mxu0 0.0
    %798 = vmatpush1.msra.mxu0 %v775
    %799 = vmatprep.subr.mxu0 0.0
    %800 = vmatpush1.msra.mxu0 %v776
    %801 = vmatprep.subr.mxu0 0.0
    %802 = vmatpush1.msra.mxu0 %v777
    %803 = vmatprep.subr.mxu0 0.0
    %804 = vmatpush1.msra.mxu0 %v778
    %805 = vmatprep.subr.mxu0 0.0
    %806 = vmatpush1.msra.mxu0 %v779
    %807 = vmatprep.subr.mxu0 0.0
    %808 = vmatpush1.msra.mxu0 %v780
    %809 = vmatprep.subr.mxu0 0.0
    %810 = vmatpush1.msra.mxu0 %v781
    %811 = vmatprep.subr.mxu0 0.0
    %812 = vmatpush1.msra.mxu0 %v782
    %813 = vmatprep.subr.mxu0 0.0
    %814 = vmatpush1.msra.mxu0 %v783
    %815 = vmatprep.subr.mxu0 0.0
    %816 = vmatpush1.msra.mxu0 %v784
    %817 = vmatprep.subr.mxu0 0.0
    %818 = vmatpush1.msra.mxu0 0.0
    %819 = vmatprep.subr.mxu0 0.0
    %820 = vmatpush1.msra.mxu0 0.0
    %821 = vmatprep.subr.mxu0 0.0
    %822 = vmatpush1.msra.mxu0 0.0
    %823 = vmatprep.subr.mxu0 0.0
    %824 = vmatpush1.msra.mxu0 0.0
    %825 = vmatprep.subr.mxu0 0.0
    %826 = vmatpush1.msra.mxu0 0.0
    %827 = vmatprep.subr.mxu0 0.0
    %828 = vmatpush1.msra.mxu0 0.0
    %829 = vmatprep.subr.mxu0 0.0
    %830 = vmatpush1.msra.mxu0 0.0
    %831 = vmatprep.subr.mxu0 0.0
    %832 = vmatpush1.msra.mxu0 0.0
    %833 = vmatprep.subr.mxu0 0.0
    %834 = vmatpush1.msra.mxu0 0.0
    %835 = vmatprep.subr.mxu0 0.0
    %836 = vmatpush1.msra.mxu0 0.0
    %837 = vmatprep.subr.mxu0 0.0
    %838 = vmatpush1.msra.mxu0 0.0
    %839 = vmatprep.subr.mxu0 0.0
    %840 = vmatpush1.msra.mxu0 0.0
    %841 = vmatprep.subr.mxu0 0.0
    %842 = vmatpush1.msra.mxu0 0.0
    %843 = vmatprep.subr.mxu0 0.0
    %844 = vmatpush1.msra.mxu0 0.0
    %845 = vmatprep.subr.mxu0 0.0
    %846 = vmatpush1.msra.mxu0 0.0
    %847 = vmatprep.subr.mxu0 0.0
    %848 = vmatpush1.msra.mxu0 0.0
    %849 = vmatprep.mubr.f32.mxu0 0.0
    %850 = vmatmul.mubr.f32.gmra.mrb[0].mxu0 %v715
    %v851 = vpop.f32.mrb[0].mxu0
    %v852 = vadd.f32 0.0, %v851
    %v853 = vpop.f32.mrb[0].mxu0
    %854 = vmatprep.mubr.f32.mxu0 0.0
    %855 = vmatmul.mubr.f32.gmra.mrb[0].mxu0 %v720
    %v856 = vpop.f32.mrb[0].mxu0
    %v857 = vadd.f32 0.0, %v856
    %v858 = vpop.f32.mrb[0].mxu0
    %859 = vmatprep.mubr.f32.mxu0 0.0
    %860 = vmatmul.mubr.f32.gmra.mrb[0].mxu0 %v725
    %v861 = vpop.f32.mrb[0].mxu0
    %v862 = vadd.f32 0.0, %v861
    %v863 = vpop.f32.mrb[0].mxu0
    %864 = vmatprep.mubr.f32.mxu0 0.0
    %865 = vmatmul.mubr.f32.gmra.mrb[0].mxu0 %v730
    %v866 = vpop.f32.mrb[0].mxu0
    %v867 = vadd.f32 0.0, %v866
    %v868 = vpop.f32.mrb[0].mxu0
    %869 = vmatprep.mubr.f32.mxu0 0.0
    %870 = vmatmul.mubr.f32.gmra.mrb[0].mxu0 %v735
    %v871 = vpop.f32.mrb[0].mxu0
    %v872 = vadd.f32 0.0, %v871
    %v873 = vpop.f32.mrb[0].mxu0
    %874 = vmatprep.mubr.f32.mxu0 0.0
    %875 = vmatmul.mubr.f32.gmra.mrb[0].mxu0 %v740
    %v876 = vpop.f32.mrb[0].mxu0
    %v877 = vadd.f32 0.0, %v876
    %v878 = vpop.f32.mrb[0].mxu0
    %879 = vmatprep.mubr.f32.mxu0 0.0
    %880 = vmatmul.mubr.f32.gmra.mrb[0].mxu0 %v745
    %v881 = vpop.f32.mrb[0].mxu0
    %v882 = vadd.f32 0.0, %v881
    %v883 = vpop.f32.mrb[0].mxu0
    %884 = vmatprep.mubr.f32.mxu0 0.0
    %885 = vmatmul.mubr.f32.gmra.mrb[0].mxu0 %v750
    %v886 = vpop.f32.mrb[0].mxu0
    %v887 = vadd.f32 0.0, %v886
    %v888 = vpop.f32.mrb[0].mxu0
    %889 = vdwg.mxu0
    %890 = vmatprep.subr.mxu0 0.0
    %891 = vmatpush1.msra.mxu0 %v753
    %892 = vmatprep.subr.mxu0 0.0
    %893 = vmatpush1.msra.mxu0 %v754
    %894 = vmatprep.subr.mxu0 0.0
    %895 = vmatpush1.msra.mxu0 %v755
    %896 = vmatprep.subr.mxu0 0.0
    %897 = vmatpush1.msra.mxu0 %v756
    %898 = vmatprep.subr.mxu0 0.0
    %899 = vmatpush1.msra.mxu0 %v757
    %900 = vmatprep.subr.mxu0 0.0
    %901 = vmatpush1.msra.mxu0 %v758
    %902 = vmatprep.subr.mxu0 0.0
    %903 = vmatpush1.msra.mxu0 %v759
    %904 = vmatprep.subr.mxu0 0.0
    %905 = vmatpush1.msra.mxu0 %v760
    %906 = vmatprep.subr.mxu0 0.0
    %907 = vmatpush1.msra.mxu0 %v761
    %908 = vmatprep.subr.mxu0 0.0
    %909 = vmatpush1.msra.mxu0 %v762
    %910 = vmatprep.subr.mxu0 0.0
    %911 = vmatpush1.msra.mxu0 %v763
    %912 = vmatprep.subr.mxu0 0.0
    %913 = vmatpush1.msra.mxu0 %v764
    %914 = vmatprep.subr.mxu0 0.0
    %915 = vmatpush1.msra.mxu0 %v765
    %916 = vmatprep.subr.mxu0 0.0
    %917 = vmatpush1.msra.mxu0 %v766
    %918 = vmatprep.subr.mxu0 0.0
    %919 = vmatpush1.msra.mxu0 %v767
    %920 = vmatprep.subr.mxu0 0.0
    %921 = vmatpush1.msra.mxu0 %v768
    %922 = vmatprep.subr.mxu0 0.0
    %923 = vmatpush1.msra.mxu0 0.0
    %924 = vmatprep.subr.mxu0 0.0
    %925 = vmatpush1.msra.mxu0 0.0
    %926 = vmatprep.subr.mxu0 0.0
    %927 = vmatpush1.msra.mxu0 0.0
    %928 = vmatprep.subr.mxu0 0.0
    %929 = vmatpush1.msra.mxu0 0.0
    %930 = vmatprep.subr.mxu0 0.0
    %931 = vmatpush1.msra.mxu0 0.0
    %932 = vmatprep.subr.mxu0 0.0
    %933 = vmatpush1.msra.mxu0 0.0
    %934 = vmatprep.subr.mxu0 0.0
    %935 = vmatpush1.msra.mxu0 0.0
    %936 = vmatprep.subr.mxu0 0.0
    %937 = vmatpush1.msra.mxu0 0.0
    %938 = vmatprep.subr.mxu0 0.0
    %939 = vmatpush1.msra.mxu0 0.0
    %940 = vmatprep.subr.mxu0 0.0
    %941 = vmatpush1.msra.mxu0 0.0
    %942 = vmatprep.subr.mxu0 0.0
    %943 = vmatpush1.msra.mxu0 0.0
    %944 = vmatprep.subr.mxu0 0.0
    %945 = vmatpush1.msra.mxu0 0.0
    %946 = vmatprep.subr.mxu0 0.0
    %947 = vmatpush1.msra.mxu0 0.0
    %948 = vmatprep.subr.mxu0 0.0
    %949 = vmatpush1.msra.mxu0 0.0
    %950 = vmatprep.subr.mxu0 0.0
    %951 = vmatpush1.msra.mxu0 0.0
    %952 = vmatprep.subr.mxu0 0.0
    %953 = vmatpush1.msra.mxu0 0.0
    %954 = vmatprep.mubr.f32.mxu0 0.0
    %955 = vmatmul.mubr.f32.gmra.mrb[0].mxu0 %v586
    %v956 = vpop.f32.mrb[0].mxu0
    %v957 = vadd.f32 %v852, %v956
    %v958 = vpop.f32.mrb[0].mxu0
    %959 = vmatprep.mubr.f32.mxu0 0.0
    %960 = vmatmul.mubr.f32.gmra.mrb[0].mxu0 %v591
    %v961 = vpop.f32.mrb[0].mxu0
    %v962 = vadd.f32 %v857, %v961
    %v963 = vpop.f32.mrb[0].mxu0
    %964 = vmatprep.mubr.f32.mxu0 0.0
    %965 = vmatmul.mubr.f32.gmra.mrb[0].mxu0 %v596
    %v966 = vpop.f32.mrb[0].mxu0
    %v967 = vadd.f32 %v862, %v966
    %v968 = vpop.f32.mrb[0].mxu0
    %969 = vmatprep.mubr.f32.mxu0 0.0
    %970 = vmatmul.mubr.f32.gmra.mrb[0].mxu0 %v601
    %v971 = vpop.f32.mrb[0].mxu0
    %v972 = vadd.f32 %v867, %v971
    %v973 = vpop.f32.mrb[0].mxu0
    %974 = vmatprep.mubr.f32.mxu0 0.0
    %975 = vmatmul.mubr.f32.gmra.mrb[0].mxu0 %v606
    %v976 = vpop.f32.mrb[0].mxu0
    %v977 = vadd.f32 %v872, %v976
    %v978 = vpop.f32.mrb[0].mxu0
    %979 = vmatprep.mubr.f32.mxu0 0.0
    %980 = vmatmul.mubr.f32.gmra.mrb[0].mxu0 %v611
    %v981 = vpop.f32.mrb[0].mxu0
    %v982 = vadd.f32 %v877, %v981
    %v983 = vpop.f32.mrb[0].mxu0
    %984 = vmatprep.mubr.f32.mxu0 0.0
    %985 = vmatmul.mubr.f32.gmra.mrb[0].mxu0 %v616
    %v986 = vpop.f32.mrb[0].mxu0
    %v987 = vadd.f32 %v882, %v986
    %v988 = vpop.f32.mrb[0].mxu0
    %989 = vmatprep.mubr.f32.mxu0 0.0
    %990 = vmatmul.mubr.f32.gmra.mrb[0].mxu0 %v621
    %v991 = vpop.f32.mrb[0].mxu0
    %v992 = vadd.f32 %v887, %v991
    %v993 = vpop.f32.mrb[0].mxu0
    %994 = vdwg.mxu0
    %v995 = vld [vmem:[#allocation10] sm:$0x1]
    %v997 = vlaneseq
    %v998 = vshrl.u32 %v997, 7
    %v999 = vsub.s32 0, %v998
    %v1000 = vrot.slane %v995, %v999
    %v1002 = vadd.f32 %v957, %v1000
    %v1003 = vadd.f32 %v962, %v1000
    %v1004 = vadd.f32 %v967, %v1000
    %v1005 = vadd.f32 %v972, %v1000
    %v1006 = vadd.f32 %v977, %v1000
    %v1007 = vadd.f32 %v982, %v1000
    %v1008 = vadd.f32 %v987, %v1000
    %v1009 = vadd.f32 %v992, %v1000
    %v1010 = vmax.f32 %v1002, 0.0
    %v1011 = vmax.f32 %v1003, 0.0
    %v1012 = vmax.f32 %v1004, 0.0
    %v1013 = vmax.f32 %v1005, 0.0
    %v1014 = vmax.f32 %v1006, 0.0
    %v1015 = vmax.f32 %v1007, 0.0
    %v1016 = vmax.f32 %v1008, 0.0
    %v1017 = vmax.f32 %v1009, 0.0
    %v1018 = vld [vmem:[#allocation11] sm:$0xff]
    %v1019 = vld [vmem:[#allocation11 + $0x8] sm:$0xff]
    %v1020 = vld [vmem:[#allocation11 + $0x10] sm:$0xff]
    %v1021 = vld [vmem:[#allocation11 + $0x18] sm:$0xff]
    %v1022 = vld [vmem:[#allocation11 + $0x20] sm:$0xff]
    %v1023 = vld [vmem:[#allocation11 + $0x28] sm:$0xff]
    %v1024 = vld [vmem:[#allocation11 + $0x30] sm:$0xff]
    %v1025 = vld [vmem:[#allocation11 + $0x38] sm:$0xff]
    %v1026 = vld [vmem:[#allocation11 + $0x40] sm:$0xff]
    %v1027 = vld [vmem:[#allocation11 + $0x48] sm:$0xff]
    %v1028 = vld [vmem:[#allocation11 + $0x50] sm:$0xff]
    %v1029 = vld [vmem:[#allocation11 + $0x58] sm:$0xff]
    %v1030 = vld [vmem:[#allocation11 + $0x60] sm:$0xff]
    %v1031 = vld [vmem:[#allocation11 + $0x68] sm:$0xff]
    %v1032 = vld [vmem:[#allocation11 + $0x70] sm:$0xff]
    %v1033 = vld [vmem:[#allocation11 + $0x78] sm:$0xff]
    %v1034 = vld [vmem:[#allocation13] sm:$0x1]
    %v1036 = vlaneseq
    %v1037 = vshrl.u32 %v1036, 7
    %v1038 = vsub.s32 0, %v1037
    %v1039 = vrot.slane %v1034, %v1038
    %1041 = vmatprep.subr.mxu0 0.0
    %1042 = vmatpush1.msra.mxu0 %v1018
    %1043 = vmatprep.subr.mxu0 0.0
    %1044 = vmatpush1.msra.mxu0 %v1019
    %1045 = vmatprep.subr.mxu0 0.0
    %1046 = vmatpush1.msra.mxu0 %v1020
    %1047 = vmatprep.subr.mxu0 0.0
    %1048 = vmatpush1.msra.mxu0 %v1021
    %1049 = vmatprep.subr.mxu0 0.0
    %1050 = vmatpush1.msra.mxu0 %v1022
    %1051 = vmatprep.subr.mxu0 0.0
    %1052 = vmatpush1.msra.mxu0 %v1023
    %1053 = vmatprep.subr.mxu0 0.0
    %1054 = vmatpush1.msra.mxu0 %v1024
    %1055 = vmatprep.subr.mxu0 0.0
    %1056 = vmatpush1.msra.mxu0 %v1025
    %1057 = vmatprep.subr.mxu0 0.0
    %1058 = vmatpush1.msra.mxu0 %v1026
    %1059 = vmatprep.subr.mxu0 0.0
    %1060 = vmatpush1.msra.mxu0 %v1027
    %1061 = vmatprep.subr.mxu0 0.0
    %1062 = vmatpush1.msra.mxu0 %v1028
    %1063 = vmatprep.subr.mxu0 0.0
    %1064 = vmatpush1.msra.mxu0 %v1029
    %1065 = vmatprep.subr.mxu0 0.0
    %1066 = vmatpush1.msra.mxu0 %v1030
    %1067 = vmatprep.subr.mxu0 0.0
    %1068 = vmatpush1.msra.mxu0 %v1031
    %1069 = vmatprep.subr.mxu0 0.0
    %1070 = vmatpush1.msra.mxu0 %v1032
    %1071 = vmatprep.subr.mxu0 0.0
    %1072 = vmatpush1.msra.mxu0 %v1033
    %1073 = vmatprep.subr.mxu0 0.0
    %1074 = vmatpush1.msra.mxu0 0.0
    %1075 = vmatprep.subr.mxu0 0.0
    %1076 = vmatpush1.msra.mxu0 0.0
    %1077 = vmatprep.subr.mxu0 0.0
    %1078 = vmatpush1.msra.mxu0 0.0
    %1079 = vmatprep.subr.mxu0 0.0
    %1080 = vmatpush1.msra.mxu0 0.0
    %1081 = vmatprep.subr.mxu0 0.0
    %1082 = vmatpush1.msra.mxu0 0.0
    %1083 = vmatprep.subr.mxu0 0.0
    %1084 = vmatpush1.msra.mxu0 0.0
    %1085 = vmatprep.subr.mxu0 0.0
    %1086 = vmatpush1.msra.mxu0 0.0
    %1087 = vmatprep.subr.mxu0 0.0
    %1088 = vmatpush1.msra.mxu0 0.0
    %1089 = vmatprep.subr.mxu0 0.0
    %1090 = vmatpush1.msra.mxu0 0.0
    %1091 = vmatprep.subr.mxu0 0.0
    %1092 = vmatpush1.msra.mxu0 0.0
    %1093 = vmatprep.subr.mxu0 0.0
    %1094 = vmatpush1.msra.mxu0 0.0
    %1095 = vmatprep.subr.mxu0 0.0
    %1096 = vmatpush1.msra.mxu0 0.0
    %1097 = vmatprep.subr.mxu0 0.0
    %1098 = vmatpush1.msra.mxu0 0.0
    %1099 = vmatprep.subr.mxu0 0.0
    %1100 = vmatpush1.msra.mxu0 0.0
    %1101 = vmatprep.subr.mxu0 0.0
    %1102 = vmatpush1.msra.mxu0 0.0
    %1103 = vmatprep.subr.mxu0 0.0
    %1104 = vmatpush1.msra.mxu0 0.0
    %1105 = vmatprep.mubr.f32.mxu0 0.0
    %1106 = vmatmul.mubr.f32.gmra.mrb[0].mxu0 %v1010
    %v1107 = vpop.f32.mrb[0].mxu0
    %v1108 = vadd.f32 %v1039, %v1107
    %v1109 = vpop.f32.mrb[0].mxu0
    %1110 = vmatprep.mubr.f32.mxu0 0.0
    %1111 = vmatmul.mubr.f32.gmra.mrb[0].mxu0 %v1011
    %v1112 = vpop.f32.mrb[0].mxu0
    %v1113 = vadd.f32 %v1039, %v1112
    %v1114 = vpop.f32.mrb[0].mxu0
    %1115 = vmatprep.mubr.f32.mxu0 0.0
    %1116 = vmatmul.mubr.f32.gmra.mrb[0].mxu0 %v1012
    %v1117 = vpop.f32.mrb[0].mxu0
    %v1118 = vadd.f32 %v1039, %v1117
    %v1119 = vpop.f32.mrb[0].mxu0
    %1120 = vmatprep.mubr.f32.mxu0 0.0
    %1121 = vmatmul.mubr.f32.gmra.mrb[0].mxu0 %v1013
    %v1122 = vpop.f32.mrb[0].mxu0
    %v1123 = vadd.f32 %v1039, %v1122
    %v1124 = vpop.f32.mrb[0].mxu0
    %1125 = vmatprep.mubr.f32.mxu0 0.0
    %1126 = vmatmul.mubr.f32.gmra.mrb[0].mxu0 %v1014
    %v1127 = vpop.f32.mrb[0].mxu0
    %v1128 = vadd.f32 %v1039, %v1127
    %v1129 = vpop.f32.mrb[0].mxu0
    %1130 = vmatprep.mubr.f32.mxu0 0.0
    %1131 = vmatmul.mubr.f32.gmra.mrb[0].mxu0 %v1015
    %v1132 = vpop.f32.mrb[0].mxu0
    %v1133 = vadd.f32 %v1039, %v1132
    %v1134 = vpop.f32.mrb[0].mxu0
    %1135 = vmatprep.mubr.f32.mxu0 0.0
    %1136 = vmatmul.mubr.f32.gmra.mrb[0].mxu0 %v1016
    %v1137 = vpop.f32.mrb[0].mxu0
    %v1138 = vadd.f32 %v1039, %v1137
    %v1139 = vpop.f32.mrb[0].mxu0
    %1140 = vmatprep.mubr.f32.mxu0 0.0
    %1141 = vmatmul.mubr.f32.gmra.mrb[0].mxu0 %v1017
    %v1142 = vpop.f32.mrb[0].mxu0
    %v1143 = vadd.f32 %v1039, %v1142
    %v1144 = vpop.f32.mrb[0].mxu0
    %1145 = vdwg.mxu0
    %v1146 = vlaneseq
    %v1147 = vshrl.u32 %v1146, 7
    %v1148 = vadd.s32 %v1147, 8
    %v1149 = vadd.s32 %v1147, 16
    %v1150 = vadd.s32 %v1147, 24
    %v1151 = vld [vmem:[#allocation5] sm:$0x1]
    %v1152 = vlaneseq
    %v1153 = vshrl.u32 %v1152, 7
    %v1154 = vsub.s32 0, %v1153
    %v1155 = vrot.slane %v1151, %v1154
    %vm1156 = vcmp.eq.s32.totalorder %v1147, %v1155
    %vm1157 = vcmp.eq.s32.totalorder %v1148, %v1155
    %vm1158 = vcmp.eq.s32.totalorder %v1149, %v1155
    %vm1159 = vcmp.eq.s32.totalorder %v1150, %v1155
    %v1160 = vsel %vm1156, 1, 0
    %v1161 = vsel %vm1157, 1, 0
    %v1162 = vsel %vm1158, 1, 0
    %v1163 = vsel %vm1159, 1, 0
    %v1164 = vcvt.s32.f32 %v1160
    %v1165 = vcvt.s32.f32 %v1161
    %v1166 = vcvt.s32.f32 %v1162
    %v1167 = vcvt.s32.f32 %v1163
    %vm1168 = vcmask 523264
    %v1170 = vsel %vm1168, %v1164, 0
    %v1173 = vsel %vm1168, %v1165, 0
    %v1176 = vsel %vm1168, %v1166, 0
    %v1179 = vsel %vm1168, %v1167, 0
    %1181 = vmatprep.subr.mxu0 0.0
    %1182 = vmatpush1.msra.mxu0 %v1108
    %1183 = vmatprep.subr.mxu0 0.0
    %1184 = vmatpush1.msra.mxu0 %v1113
    %1185 = vmatprep.subr.mxu0 0.0
    %1186 = vmatpush1.msra.mxu0 %v1118
    %1187 = vmatprep.subr.mxu0 0.0
    %1188 = vmatpush1.msra.mxu0 %v1123
    %1189 = vmatprep.subr.mxu0 0.0
    %1190 = vmatpush1.msra.mxu0 %v1128
    %1191 = vmatprep.subr.mxu0 0.0
    %1192 = vmatpush1.msra.mxu0 %v1133
    %1193 = vmatprep.subr.mxu0 0.0
    %1194 = vmatpush1.msra.mxu0 %v1138
    %1195 = vmatprep.subr.mxu0 0.0
    %1196 = vmatpush1.msra.mxu0 %v1143
    %1197 = vmatprep.subr.mxu0 0.0
    %1198 = vmatpush1.msra.mxu0 0.0
    %1199 = vmatprep.subr.mxu0 0.0
    %1200 = vmatpush1.msra.mxu0 0.0
    %1201 = vmatprep.subr.mxu0 0.0
    %1202 = vmatpush1.msra.mxu0 0.0
    %1203 = vmatprep.subr.mxu0 0.0
    %1204 = vmatpush1.msra.mxu0 0.0
    %1205 = vmatprep.subr.mxu0 0.0
    %1206 = vmatpush1.msra.mxu0 0.0
    %1207 = vmatprep.subr.mxu0 0.0
    %1208 = vmatpush1.msra.mxu0 0.0
    %1209 = vmatprep.subr.mxu0 0.0
    %1210 = vmatpush1.msra.mxu0 0.0
    %1211 = vmatprep.subr.mxu0 0.0
    %1212 = vmatpush1.msra.mxu0 0.0
    %1213 = vmatprep.subr.mxu0 0.0
    %1214 = vmatpush1.msra.mxu0 0.0
    %1215 = vmatprep.subr.mxu0 0.0
    %1216 = vmatpush1.msra.mxu0 0.0
    %1217 = vmatprep.subr.mxu0 0.0
    %1218 = vmatpush1.msra.mxu0 0.0
    %1219 = vmatprep.subr.mxu0 0.0
    %1220 = vmatpush1.msra.mxu0 0.0
    %1221 = vmatprep.subr.mxu0 0.0
    %1222 = vmatpush1.msra.mxu0 0.0
    %1223 = vmatprep.subr.mxu0 0.0
    %1224 = vmatpush1.msra.mxu0 0.0
    %1225 = vmatprep.subr.mxu0 0.0
    %1226 = vmatpush1.msra.mxu0 0.0
    %1227 = vmatprep.subr.mxu0 0.0
    %1228 = vmatpush1.msra.mxu0 0.0
    %1229 = vmatprep.subr.mxu0 0.0
    %1230 = vmatpush1.msra.mxu0 0.0
    %1231 = vmatprep.subr.mxu0 0.0
    %1232 = vmatpush1.msra.mxu0 0.0
    %1233 = vmatprep.subr.mxu0 0.0
    %1234 = vmatpush1.msra.mxu0 0.0
    %1235 = vmatprep.subr.mxu0 0.0
    %1236 = vmatpush1.msra.mxu0 0.0
    %1237 = vmatprep.subr.mxu0 0.0
    %1238 = vmatpush1.msra.mxu0 0.0
    %1239 = vmatprep.subr.mxu0 0.0
    %1240 = vmatpush1.msra.mxu0 0.0
    %1241 = vmatprep.subr.mxu0 0.0
    %1242 = vmatpush1.msra.mxu0 0.0
    %1243 = vmatprep.subr.mxu0 0.0
    %1244 = vmatpush1.msra.mxu0 0.0
    %1245 = vmatprep.mubr.f32.mxu0 0.0
    %1246 = vmatmul.mubr.f32.gmra.mrb[0].mxu0 %v1170
    %v1247 = vpop.f32.mrb[0].mxu0
    %v1248 = vadd.f32 0.0, %v1247
    %v1249 = vpop.f32.mrb[0].mxu0
    %1250 = vmatprep.mubr.f32.mxu0 0.0
    %1251 = vmatmul.mubr.f32.gmra.mrb[0].mxu0 %v1173
    %v1252 = vpop.f32.mrb[0].mxu0
    %v1253 = vadd.f32 0.0, %v1252
    %v1254 = vpop.f32.mrb[0].mxu0
    %1255 = vmatprep.mubr.f32.mxu0 0.0
    %1256 = vmatmul.mubr.f32.gmra.mrb[0].mxu0 %v1176
    %v1257 = vpop.f32.mrb[0].mxu0
    %v1258 = vadd.f32 0.0, %v1257
    %v1259 = vpop.f32.mrb[0].mxu0
    %1260 = vmatprep.mubr.f32.mxu0 0.0
    %1261 = vmatmul.mubr.f32.gmra.mrb[0].mxu0 %v1179
    %v1262 = vpop.f32.mrb[0].mxu0
    %v1263 = vadd.f32 0.0, %v1262
    %v1264 = vpop.f32.mrb[0].mxu0
    %1265 = vdwg.mxu0
    %v1266 = vld [vmem:[#allocation14] sm:$0xff]
    %v1267 = vld [vmem:[#allocation14 + $0x8] sm:$0xff]
    %v1268 = vld [vmem:[#allocation14 + $0x10] sm:$0xff]
    %v1269 = vld [vmem:[#allocation14 + $0x18] sm:$0xff]
    %v1270 = vld [vmem:[#allocation14 + $0x20] sm:$0xff]
    %v1271 = vld [vmem:[#allocation14 + $0x28] sm:$0xff]
    %v1272 = vld [vmem:[#allocation14 + $0x30] sm:$0xff]
    %v1273 = vld [vmem:[#allocation14 + $0x38] sm:$0xff]
    %v1274 = vld [vmem:[#allocation14 + $0x40] sm:$0xff]
    %v1275 = vld [vmem:[#allocation14 + $0x48] sm:$0xff]
    %v1276 = vld [vmem:[#allocation14 + $0x50] sm:$0xff]
    %v1277 = vld [vmem:[#allocation14 + $0x58] sm:$0xff]
    %v1278 = vld [vmem:[#allocation14 + $0x60] sm:$0xff]
    %v1279 = vld [vmem:[#allocation14 + $0x68] sm:$0xff]
    %v1280 = vld [vmem:[#allocation14 + $0x70] sm:$0xff]
    %v1281 = vld [vmem:[#allocation14 + $0x78] sm:$0xff]
    %v1282 = vld [vmem:[#allocation16] sm:$0xff]
    %v1283 = vld [vmem:[#allocation16 + $0x8] sm:$0xff]
    %v1284 = vld [vmem:[#allocation16 + $0x10] sm:$0xff]
    %v1285 = vld [vmem:[#allocation16 + $0x18] sm:$0xff]
    %v1286 = vld [vmem:[#allocation16 + $0x20] sm:$0xff]
    %v1287 = vld [vmem:[#allocation16 + $0x28] sm:$0xff]
    %v1288 = vld [vmem:[#allocation16 + $0x30] sm:$0xff]
    %v1289 = vld [vmem:[#allocation16 + $0x38] sm:$0xff]
    %v1290 = vld [vmem:[#allocation16 + $0x40] sm:$0xff]
    %v1291 = vld [vmem:[#allocation16 + $0x48] sm:$0xff]
    %v1292 = vld [vmem:[#allocation16 + $0x50] sm:$0xff]
    %v1293 = vld [vmem:[#allocation16 + $0x58] sm:$0xff]
    %v1294 = vld [vmem:[#allocation16 + $0x60] sm:$0xff]
    %v1295 = vld [vmem:[#allocation16 + $0x68] sm:$0xff]
    %v1296 = vld [vmem:[#allocation16 + $0x70] sm:$0xff]
    %v1297 = vld [vmem:[#allocation16 + $0x78] sm:$0xff]
    %1298 = vmatprep.subr.mxu0 0.0
    %1299 = vmatpush1.msra.mxu0 %v1282
    %1300 = vmatprep.subr.mxu0 0.0
    %1301 = vmatpush1.msra.mxu0 %v1283
    %1302 = vmatprep.subr.mxu0 0.0
    %1303 = vmatpush1.msra.mxu0 %v1284
    %1304 = vmatprep.subr.mxu0 0.0
    %1305 = vmatpush1.msra.mxu0 %v1285
    %1306 = vmatprep.subr.mxu0 0.0
    %1307 = vmatpush1.msra.mxu0 %v1286
    %1308 = vmatprep.subr.mxu0 0.0
    %1309 = vmatpush1.msra.mxu0 %v1287
    %1310 = vmatprep.subr.mxu0 0.0
    %1311 = vmatpush1.msra.mxu0 %v1288
    %1312 = vmatprep.subr.mxu0 0.0
    %1313 = vmatpush1.msra.mxu0 %v1289
    %1314 = vmatprep.subr.mxu0 0.0
    %1315 = vmatpush1.msra.mxu0 %v1290
    %1316 = vmatprep.subr.mxu0 0.0
    %1317 = vmatpush1.msra.mxu0 %v1291
    %1318 = vmatprep.subr.mxu0 0.0
    %1319 = vmatpush1.msra.mxu0 %v1292
    %1320 = vmatprep.subr.mxu0 0.0
    %1321 = vmatpush1.msra.mxu0 %v1293
    %1322 = vmatprep.subr.mxu0 0.0
    %1323 = vmatpush1.msra.mxu0 %v1294
    %1324 = vmatprep.subr.mxu0 0.0
    %1325 = vmatpush1.msra.mxu0 %v1295
    %1326 = vmatprep.subr.mxu0 0.0
    %1327 = vmatpush1.msra.mxu0 %v1296
    %1328 = vmatprep.subr.mxu0 0.0
    %1329 = vmatpush1.msra.mxu0 %v1297
    %1330 = vmatprep.subr.mxu0 0.0
    %1331 = vmatpush1.msra.mxu0 0.0
    %1332 = vmatprep.subr.mxu0 0.0
    %1333 = vmatpush1.msra.mxu0 0.0
    %1334 = vmatprep.subr.mxu0 0.0
    %1335 = vmatpush1.msra.mxu0 0.0
    %1336 = vmatprep.subr.mxu0 0.0
    %1337 = vmatpush1.msra.mxu0 0.0
    %1338 = vmatprep.subr.mxu0 0.0
    %1339 = vmatpush1.msra.mxu0 0.0
    %1340 = vmatprep.subr.mxu0 0.0
    %1341 = vmatpush1.msra.mxu0 0.0
    %1342 = vmatprep.subr.mxu0 0.0
    %1343 = vmatpush1.msra.mxu0 0.0
    %1344 = vmatprep.subr.mxu0 0.0
    %1345 = vmatpush1.msra.mxu0 0.0
    %1346 = vmatprep.subr.mxu0 0.0
    %1347 = vmatpush1.msra.mxu0 0.0
    %1348 = vmatprep.subr.mxu0 0.0
    %1349 = vmatpush1.msra.mxu0 0.0
    %1350 = vmatprep.subr.mxu0 0.0
    %1351 = vmatpush1.msra.mxu0 0.0
    %1352 = vmatprep.subr.mxu0 0.0
    %1353 = vmatpush1.msra.mxu0 0.0
    %1354 = vmatprep.subr.mxu0 0.0
    %1355 = vmatpush1.msra.mxu0 0.0
    %1356 = vmatprep.subr.mxu0 0.0
    %1357 = vmatpush1.msra.mxu0 0.0
    %1358 = vmatprep.subr.mxu0 0.0
    %1359 = vmatpush1.msra.mxu0 0.0
    %1360 = vmatprep.subr.mxu0 0.0
    %1361 = vmatpush1.msra.mxu0 0.0
    %1362 = vmatprep.mubr.f32.mxu0 0.0
    %1363 = vmatmul.mubr.f32.gmra.mrb[0].mxu0 %v1248
    %v1364 = vpop.f32.mrb[0].mxu0
    %v1365 = vadd.f32 0.0, %v1364
    %v1366 = vpop.f32.mrb[0].mxu0
    %1367 = vmatprep.mubr.f32.mxu0 0.0
    %1368 = vmatmul.mubr.f32.gmra.mrb[0].mxu0 %v1253
    %v1369 = vpop.f32.mrb[0].mxu0
    %v1370 = vadd.f32 0.0, %v1369
    %v1371 = vpop.f32.mrb[0].mxu0
    %1372 = vmatprep.mubr.f32.mxu0 0.0
    %1373 = vmatmul.mubr.f32.gmra.mrb[0].mxu0 %v1258
    %v1374 = vpop.f32.mrb[0].mxu0
    %v1375 = vadd.f32 0.0, %v1374
    %v1376 = vpop.f32.mrb[0].mxu0
    %1377 = vmatprep.mubr.f32.mxu0 0.0
    %1378 = vmatmul.mubr.f32.gmra.mrb[0].mxu0 %v1263
    %v1379 = vpop.f32.mrb[0].mxu0
    %v1380 = vadd.f32 0.0, %v1379
    %v1381 = vpop.f32.mrb[0].mxu0
    %1382 = vdwg.mxu0
    %1383 = vmatprep.subr.mxu0 0.0
    %1384 = vmatpush1.msra.mxu0 %v1266
    %1385 = vmatprep.subr.mxu0 0.0
    %1386 = vmatpush1.msra.mxu0 %v1267
    %1387 = vmatprep.subr.mxu0 0.0
    %1388 = vmatpush1.msra.mxu0 %v1268
    %1389 = vmatprep.subr.mxu0 0.0
    %1390 = vmatpush1.msra.mxu0 %v1269
    %1391 = vmatprep.subr.mxu0 0.0
    %1392 = vmatpush1.msra.mxu0 %v1270
    %1393 = vmatprep.subr.mxu0 0.0
    %1394 = vmatpush1.msra.mxu0 %v1271
    %1395 = vmatprep.subr.mxu0 0.0
    %1396 = vmatpush1.msra.mxu0 %v1272
    %1397 = vmatprep.subr.mxu0 0.0
    %1398 = vmatpush1.msra.mxu0 %v1273
    %1399 = vmatprep.subr.mxu0 0.0
    %1400 = vmatpush1.msra.mxu0 %v1274
    %1401 = vmatprep.subr.mxu0 0.0
    %1402 = vmatpush1.msra.mxu0 %v1275
    %1403 = vmatprep.subr.mxu0 0.0
    %1404 = vmatpush1.msra.mxu0 %v1276
    %1405 = vmatprep.subr.mxu0 0.0
    %1406 = vmatpush1.msra.mxu0 %v1277
    %1407 = vmatprep.subr.mxu0 0.0
    %1408 = vmatpush1.msra.mxu0 %v1278
    %1409 = vmatprep.subr.mxu0 0.0
    %1410 = vmatpush1.msra.mxu0 %v1279
    %1411 = vmatprep.subr.mxu0 0.0
    %1412 = vmatpush1.msra.mxu0 %v1280
    %1413 = vmatprep.subr.mxu0 0.0
    %1414 = vmatpush1.msra.mxu0 %v1281
    %1415 = vmatprep.subr.mxu0 0.0
    %1416 = vmatpush1.msra.mxu0 0.0
    %1417 = vmatprep.subr.mxu0 0.0
    %1418 = vmatpush1.msra.mxu0 0.0
    %1419 = vmatprep.subr.mxu0 0.0
    %1420 = vmatpush1.msra.mxu0 0.0
    %1421 = vmatprep.subr.mxu0 0.0
    %1422 = vmatpush1.msra.mxu0 0.0
    %1423 = vmatprep.subr.mxu0 0.0
    %1424 = vmatpush1.msra.mxu0 0.0
    %1425 = vmatprep.subr.mxu0 0.0
    %1426 = vmatpush1.msra.mxu0 0.0
    %1427 = vmatprep.subr.mxu0 0.0
    %1428 = vmatpush1.msra.mxu0 0.0
    %1429 = vmatprep.subr.mxu0 0.0
    %1430 = vmatpush1.msra.mxu0 0.0
    %1431 = vmatprep.subr.mxu0 0.0
    %1432 = vmatpush1.msra.mxu0 0.0
    %1433 = vmatprep.subr.mxu0 0.0
    %1434 = vmatpush1.msra.mxu0 0.0
    %1435 = vmatprep.subr.mxu0 0.0
    %1436 = vmatpush1.msra.mxu0 0.0
    %1437 = vmatprep.subr.mxu0 0.0
    %1438 = vmatpush1.msra.mxu0 0.0
    %1439 = vmatprep.subr.mxu0 0.0
    %1440 = vmatpush1.msra.mxu0 0.0
    %1441 = vmatprep.subr.mxu0 0.0
    %1442 = vmatpush1.msra.mxu0 0.0
    %1443 = vmatprep.subr.mxu0 0.0
    %1444 = vmatpush1.msra.mxu0 0.0
    %1445 = vmatprep.subr.mxu0 0.0
    %1446 = vmatpush1.msra.mxu0 0.0
    %1447 = vmatprep.mubr.f32.mxu0 0.0
    %1448 = vmatmul.mubr.f32.gmra.mrb[0].mxu0 %v376
    %v1449 = vpop.f32.mrb[0].mxu0
    %v1450 = vadd.f32 %v1365, %v1449
    %v1451 = vpop.f32.mrb[0].mxu0
    %1452 = vmatprep.mubr.f32.mxu0 0.0
    %1453 = vmatmul.mubr.f32.gmra.mrb[0].mxu0 %v377
    %v1454 = vpop.f32.mrb[0].mxu0
    %v1455 = vadd.f32 %v1370, %v1454
    %v1456 = vpop.f32.mrb[0].mxu0
    %1457 = vmatprep.mubr.f32.mxu0 0.0
    %1458 = vmatmul.mubr.f32.gmra.mrb[0].mxu0 %v378
    %v1459 = vpop.f32.mrb[0].mxu0
    %v1460 = vadd.f32 %v1375, %v1459
    %v1461 = vpop.f32.mrb[0].mxu0
    %1462 = vmatprep.mubr.f32.mxu0 0.0
    %1463 = vmatmul.mubr.f32.gmra.mrb[0].mxu0 %v379
    %v1464 = vpop.f32.mrb[0].mxu0
    %v1465 = vadd.f32 %v1380, %v1464
    %v1466 = vpop.f32.mrb[0].mxu0
    %1467 = vdwg.mxu0
    %v1468 = vld [vmem:[#allocation17] sm:$0x1]
    %v1470 = vlaneseq
    %v1471 = vshrl.u32 %v1470, 7
    %v1472 = vsub.s32 0, %v1471
    %v1473 = vrot.slane %v1468, %v1472
    %v1475 = vadd.f32 %v1450, %v1473
    %v1476 = vadd.f32 %v1455, %v1473
    %v1477 = vadd.f32 %v1460, %v1473
    %v1478 = vadd.f32 %v1465, %v1473
    %v1479 = vmax.f32 %v1475, 0.0
    %v1480 = vmax.f32 %v1476, 0.0
    %v1481 = vmax.f32 %v1477, 0.0
    %v1482 = vmax.f32 %v1478, 0.0
    %v1483 = vld [vmem:[#allocation19] sm:$0xff]
    %v1484 = vld [vmem:[#allocation19 + $0x8] sm:$0xff]
    %v1485 = vld [vmem:[#allocation19 + $0x10] sm:$0xff]
    %v1486 = vld [vmem:[#allocation19 + $0x18] sm:$0xff]
    %v1487 = vld [vmem:[#allocation19 + $0x20] sm:$0xff]
    %v1488 = vld [vmem:[#allocation19 + $0x28] sm:$0xff]
    %v1489 = vld [vmem:[#allocation19 + $0x30] sm:$0xff]
    %v1490 = vld [vmem:[#allocation19 + $0x38] sm:$0xff]
    %v1491 = vld [vmem:[#allocation19 + $0x40] sm:$0xff]
    %v1492 = vld [vmem:[#allocation19 + $0x48] sm:$0xff]
    %v1493 = vld [vmem:[#allocation19 + $0x50] sm:$0xff]
    %v1494 = vld [vmem:[#allocation19 + $0x58] sm:$0xff]
    %v1495 = vld [vmem:[#allocation19 + $0x60] sm:$0xff]
    %v1496 = vld [vmem:[#allocation19 + $0x68] sm:$0xff]
    %v1497 = vld [vmem:[#allocation19 + $0x70] sm:$0xff]
    %v1498 = vld [vmem:[#allocation19 + $0x78] sm:$0xff]
    %v1499 = vld [vmem:[#allocation20] sm:$0x1]
    %v1501 = vlaneseq
    %v1502 = vshrl.u32 %v1501, 7
    %v1503 = vsub.s32 0, %v1502
    %v1504 = vrot.slane %v1499, %v1503
    %1506 = vmatprep.subr.mxu0 0.0
    %1507 = vmatpush1.msra.mxu0 %v1483
    %1508 = vmatprep.subr.mxu0 0.0
    %1509 = vmatpush1.msra.mxu0 %v1484
    %1510 = vmatprep.subr.mxu0 0.0
    %1511 = vmatpush1.msra.mxu0 %v1485
    %1512 = vmatprep.subr.mxu0 0.0
    %1513 = vmatpush1.msra.mxu0 %v1486
    %1514 = vmatprep.subr.mxu0 0.0
    %1515 = vmatpush1.msra.mxu0 %v1487
    %1516 = vmatprep.subr.mxu0 0.0
    %1517 = vmatpush1.msra.mxu0 %v1488
    %1518 = vmatprep.subr.mxu0 0.0
    %1519 = vmatpush1.msra.mxu0 %v1489
    %1520 = vmatprep.subr.mxu0 0.0
    %1521 = vmatpush1.msra.mxu0 %v1490
    %1522 = vmatprep.subr.mxu0 0.0
    %1523 = vmatpush1.msra.mxu0 %v1491
    %1524 = vmatprep.subr.mxu0 0.0
    %1525 = vmatpush1.msra.mxu0 %v1492
    %1526 = vmatprep.subr.mxu0 0.0
    %1527 = vmatpush1.msra.mxu0 %v1493
    %1528 = vmatprep.subr.mxu0 0.0
    %1529 = vmatpush1.msra.mxu0 %v1494
    %1530 = vmatprep.subr.mxu0 0.0
    %1531 = vmatpush1.msra.mxu0 %v1495
    %1532 = vmatprep.subr.mxu0 0.0
    %1533 = vmatpush1.msra.mxu0 %v1496
    %1534 = vmatprep.subr.mxu0 0.0
    %1535 = vmatpush1.msra.mxu0 %v1497
    %1536 = vmatprep.subr.mxu0 0.0
    %1537 = vmatpush1.msra.mxu0 %v1498
    %1538 = vmatprep.subr.mxu0 0.0
    %1539 = vmatpush1.msra.mxu0 0.0
    %1540 = vmatprep.subr.mxu0 0.0
    %1541 = vmatpush1.msra.mxu0 0.0
    %1542 = vmatprep.subr.mxu0 0.0
    %1543 = vmatpush1.msra.mxu0 0.0
    %1544 = vmatprep.subr.mxu0 0.0
    %1545 = vmatpush1.msra.mxu0 0.0
    %1546 = vmatprep.subr.mxu0 0.0
    %1547 = vmatpush1.msra.mxu0 0.0
    %1548 = vmatprep.subr.mxu0 0.0
    %1549 = vmatpush1.msra.mxu0 0.0
    %1550 = vmatprep.subr.mxu0 0.0
    %1551 = vmatpush1.msra.mxu0 0.0
    %1552 = vmatprep.subr.mxu0 0.0
    %1553 = vmatpush1.msra.mxu0 0.0
    %1554 = vmatprep.subr.mxu0 0.0
    %1555 = vmatpush1.msra.mxu0 0.0
    %1556 = vmatprep.subr.mxu0 0.0
    %1557 = vmatpush1.msra.mxu0 0.0
    %1558 = vmatprep.subr.mxu0 0.0
    %1559 = vmatpush1.msra.mxu0 0.0
    %1560 = vmatprep.subr.mxu0 0.0
    %1561 = vmatpush1.msra.mxu0 0.0
    %1562 = vmatprep.subr.mxu0 0.0
    %1563 = vmatpush1.msra.mxu0 0.0
    %1564 = vmatprep.subr.mxu0 0.0
    %1565 = vmatpush1.msra.mxu0 0.0
    %1566 = vmatprep.subr.mxu0 0.0
    %1567 = vmatpush1.msra.mxu0 0.0
    %1568 = vmatprep.subr.mxu0 0.0
    %1569 = vmatpush1.msra.mxu0 0.0
    %1570 = vmatprep.mubr.f32.mxu0 0.0
    %1571 = vmatmul.mubr.f32.gmra.mrb[0].mxu0 %v1479
    %v1572 = vpop.f32.mrb[0].mxu0
    %v1573 = vadd.f32 %v1504, %v1572
    %v1574 = vpop.f32.mrb[0].mxu0
    %1575 = vmatprep.mubr.f32.mxu0 0.0
    %1576 = vmatmul.mubr.f32.gmra.mrb[0].mxu0 %v1480
    %v1577 = vpop.f32.mrb[0].mxu0
    %v1578 = vadd.f32 %v1504, %v1577
    %v1579 = vpop.f32.mrb[0].mxu0
    %1580 = vmatprep.mubr.f32.mxu0 0.0
    %1581 = vmatmul.mubr.f32.gmra.mrb[0].mxu0 %v1481
    %v1582 = vpop.f32.mrb[0].mxu0
    %v1583 = vadd.f32 %v1504, %v1582
    %v1584 = vpop.f32.mrb[0].mxu0
    %1585 = vmatprep.mubr.f32.mxu0 0.0
    %1586 = vmatmul.mubr.f32.gmra.mrb[0].mxu0 %v1482
    %v1587 = vpop.f32.mrb[0].mxu0
    %v1588 = vadd.f32 %v1504, %v1587
    %v1589 = vpop.f32.mrb[0].mxu0
    %1590 = vdwg.mxu0
    %v1591 = vld [vmem:[%s9] sm:$0xff]
    %v1592 = vld [vmem:[%s9 + $0x8] sm:$0xff]
    %v1593 = vld [vmem:[%s9 + $0x10] sm:$0xff]
    %v1594 = vld [vmem:[%s9 + $0x18] sm:$0xff]
    %1595 = vset.pattern.permute.xlu0 0
    %1596 = vperm.xlu0 %1595, %v1591
    %v1597 = vpop.permute.xlu0 %1596
    %1598 = vset.pattern.permute.xlu0 0
    %1599 = vperm.xlu0 %1598, %v1592
    %v1600 = vpop.permute.xlu0 %1599
    %1601 = vset.pattern.permute.xlu0 0
    %1602 = vperm.xlu0 %1601, %v1593
    %v1603 = vpop.permute.xlu0 %1602
    %1604 = vset.pattern.permute.xlu0 0
    %1605 = vperm.xlu0 %1604, %v1594
    %v1606 = vpop.permute.xlu0 %1605
    %vm1607 = vcmp.eq.s32.totalorder %v381, %v1597
    %vm1608 = vcmp.eq.s32.totalorder %v381, %v1600
    %vm1609 = vcmp.eq.s32.totalorder %v381, %v1603
    %vm1610 = vcmp.eq.s32.totalorder %v381, %v1606
    %v1611 = vsel %vm1607, 1, 0
    %v1612 = vsel %vm1608, 1, 0
    %v1613 = vsel %vm1609, 1, 0
    %v1614 = vsel %vm1610, 1, 0
    %v1615 = vcvt.s32.f32 %v1611
    %v1616 = vcvt.s32.f32 %v1612
    %v1617 = vcvt.s32.f32 %v1613
    %v1618 = vcvt.s32.f32 %v1614
    %v1619 = vld [vmem:[%s11] sm:$0xff]
    %v1620 = vld [vmem:[%s11 + $0x8] sm:$0xff]
    %v1621 = vld [vmem:[%s11 + $0x10] sm:$0xff]
    %v1622 = vld [vmem:[%s11 + $0x18] sm:$0xff]
    %1623 = vset.pattern.permute.xlu0 0
    %1624 = vperm.xlu0 %1623, %v1619
    %v1625 = vpop.permute.xlu0 %1624
    %1626 = vset.pattern.permute.xlu0 0
    %1627 = vperm.xlu0 %1626, %v1620
    %v1628 = vpop.permute.xlu0 %1627
    %1629 = vset.pattern.permute.xlu0 0
    %1630 = vperm.xlu0 %1629, %v1621
    %v1631 = vpop.permute.xlu0 %1630
    %1632 = vset.pattern.permute.xlu0 0
    %1633 = vperm.xlu0 %1632, %v1622
    %v1634 = vpop.permute.xlu0 %1633
    %vm1635 = vcmp.eq.s32.totalorder %v381, %v1625
    %vm1636 = vcmp.eq.s32.totalorder %v381, %v1628
    %vm1637 = vcmp.eq.s32.totalorder %v381, %v1631
    %vm1638 = vcmp.eq.s32.totalorder %v381, %v1634
    %v1639 = vsel %vm1635, 1, 0
    %v1640 = vsel %vm1636, 1, 0
    %v1641 = vsel %vm1637, 1, 0
    %v1642 = vsel %vm1638, 1, 0
    %v1643 = vcvt.s32.f32 %v1639
    %v1644 = vcvt.s32.f32 %v1640
    %v1645 = vcvt.s32.f32 %v1641
    %v1646 = vcvt.s32.f32 %v1642
    %v1648 = vsel %vm494, %v1615, 0
    %v1651 = vsel %vm494, %v1616, 0
    %v1654 = vsel %vm494, %v1617, 0
    %v1657 = vsel %vm494, %v1618, 0
    %1659 = vmatprep.subr.mxu0 0.0
    %1660 = vmatpush1.msra.mxu0 %v1573
    %1661 = vmatprep.subr.mxu0 0.0
    %1662 = vmatpush1.msra.mxu0 %v1578
    %1663 = vmatprep.subr.mxu0 0.0
    %1664 = vmatpush1.msra.mxu0 %v1583
    %1665 = vmatprep.subr.mxu0 0.0
    %1666 = vmatpush1.msra.mxu0 %v1588
    %1667 = vmatprep.subr.mxu0 0.0
    %1668 = vmatpush1.msra.mxu0 0.0
    %1669 = vmatprep.subr.mxu0 0.0
    %1670 = vmatpush1.msra.mxu0 0.0
    %1671 = vmatprep.subr.mxu0 0.0
    %1672 = vmatpush1.msra.mxu0 0.0
    %1673 = vmatprep.subr.mxu0 0.0
    %1674 = vmatpush1.msra.mxu0 0.0
    %1675 = vmatprep.subr.mxu0 0.0
    %1676 = vmatpush1.msra.mxu0 0.0
    %1677 = vmatprep.subr.mxu0 0.0
    %1678 = vmatpush1.msra.mxu0 0.0
    %1679 = vmatprep.subr.mxu0 0.0
    %1680 = vmatpush1.msra.mxu0 0.0
    %1681 = vmatprep.subr.mxu0 0.0
    %1682 = vmatpush1.msra.mxu0 0.0
    %1683 = vmatprep.subr.mxu0 0.0
    %1684 = vmatpush1.msra.mxu0 0.0
    %1685 = vmatprep.subr.mxu0 0.0
    %1686 = vmatpush1.msra.mxu0 0.0
    %1687 = vmatprep.subr.mxu0 0.0
    %1688 = vmatpush1.msra.mxu0 0.0
    %1689 = vmatprep.subr.mxu0 0.0
    %1690 = vmatpush1.msra.mxu0 0.0
    %1691 = vmatprep.subr.mxu0 0.0
    %1692 = vmatpush1.msra.mxu0 0.0
    %1693 = vmatprep.subr.mxu0 0.0
    %1694 = vmatpush1.msra.mxu0 0.0
    %1695 = vmatprep.subr.mxu0 0.0
    %1696 = vmatpush1.msra.mxu0 0.0
    %1697 = vmatprep.subr.mxu0 0.0
    %1698 = vmatpush1.msra.mxu0 0.0
    %1699 = vmatprep.subr.mxu0 0.0
    %1700 = vmatpush1.msra.mxu0 0.0
    %1701 = vmatprep.subr.mxu0 0.0
    %1702 = vmatpush1.msra.mxu0 0.0
    %1703 = vmatprep.subr.mxu0 0.0
    %1704 = vmatpush1.msra.mxu0 0.0
    %1705 = vmatprep.subr.mxu0 0.0
    %1706 = vmatpush1.msra.mxu0 0.0
    %1707 = vmatprep.subr.mxu0 0.0
    %1708 = vmatpush1.msra.mxu0 0.0
    %1709 = vmatprep.subr.mxu0 0.0
    %1710 = vmatpush1.msra.mxu0 0.0
    %1711 = vmatprep.subr.mxu0 0.0
    %1712 = vmatpush1.msra.mxu0 0.0
    %1713 = vmatprep.subr.mxu0 0.0
    %1714 = vmatpush1.msra.mxu0 0.0
    %1715 = vmatprep.subr.mxu0 0.0
    %1716 = vmatpush1.msra.mxu0 0.0
    %1717 = vmatprep.subr.mxu0 0.0
    %1718 = vmatpush1.msra.mxu0 0.0
    %1719 = vmatprep.subr.mxu0 0.0
    %1720 = vmatpush1.msra.mxu0 0.0
    %1721 = vmatprep.subr.mxu0 0.0
    %1722 = vmatpush1.msra.mxu0 0.0
    %1723 = vmatprep.mubr.f32.mxu0 0.0
    %1724 = vmatmul.mubr.f32.gmra.mrb[0].mxu0 %v1648
    %v1725 = vpop.f32.mrb[0].mxu0
    %v1726 = vadd.f32 0.0, %v1725
    %v1727 = vpop.f32.mrb[0].mxu0
    %1728 = vmatprep.mubr.f32.mxu0 0.0
    %1729 = vmatmul.mubr.f32.gmra.mrb[0].mxu0 %v1651
    %v1730 = vpop.f32.mrb[0].mxu0
    %v1731 = vadd.f32 0.0, %v1730
    %v1732 = vpop.f32.mrb[0].mxu0
    %1733 = vmatprep.mubr.f32.mxu0 0.0
    %1734 = vmatmul.mubr.f32.gmra.mrb[0].mxu0 %v1654
    %v1735 = vpop.f32.mrb[0].mxu0
    %v1736 = vadd.f32 0.0, %v1735
    %v1737 = vpop.f32.mrb[0].mxu0
    %1738 = vmatprep.mubr.f32.mxu0 0.0
    %1739 = vmatmul.mubr.f32.gmra.mrb[0].mxu0 %v1657
    %v1740 = vpop.f32.mrb[0].mxu0
    %v1741 = vadd.f32 0.0, %v1740
    %v1742 = vpop.f32.mrb[0].mxu0
    %1743 = vdwg.mxu0
    %v1745 = vsel %vm494, %v1643, 0
    %v1748 = vsel %vm494, %v1644, 0
    %v1751 = vsel %vm494, %v1645, 0
    %v1754 = vsel %vm494, %v1646, 0
    %1756 = vmatprep.subr.mxu0 0.0
    %1757 = vmatpush1.msra.mxu0 %v1573
    %1758 = vmatprep.subr.mxu0 0.0
    %1759 = vmatpush1.msra.mxu0 %v1578
    %1760 = vmatprep.subr.mxu0 0.0
    %1761 = vmatpush1.msra.mxu0 %v1583
    %1762 = vmatprep.subr.mxu0 0.0
    %1763 = vmatpush1.msra.mxu0 %v1588
    %1764 = vmatprep.subr.mxu0 0.0
    %1765 = vmatpush1.msra.mxu0 0.0
    %1766 = vmatprep.subr.mxu0 0.0
    %1767 = vmatpush1.msra.mxu0 0.0
    %1768 = vmatprep.subr.mxu0 0.0
    %1769 = vmatpush1.msra.mxu0 0.0
    %1770 = vmatprep.subr.mxu0 0.0
    %1771 = vmatpush1.msra.mxu0 0.0
    %1772 = vmatprep.subr.mxu0 0.0
    %1773 = vmatpush1.msra.mxu0 0.0
    %1774 = vmatprep.subr.mxu0 0.0
    %1775 = vmatpush1.msra.mxu0 0.0
    %1776 = vmatprep.subr.mxu0 0.0
    %1777 = vmatpush1.msra.mxu0 0.0
    %1778 = vmatprep.subr.mxu0 0.0
    %1779 = vmatpush1.msra.mxu0 0.0
    %1780 = vmatprep.subr.mxu0 0.0
    %1781 = vmatpush1.msra.mxu0 0.0
    %1782 = vmatprep.subr.mxu0 0.0
    %1783 = vmatpush1.msra.mxu0 0.0
    %1784 = vmatprep.subr.mxu0 0.0
    %1785 = vmatpush1.msra.mxu0 0.0
    %1786 = vmatprep.subr.mxu0 0.0
    %1787 = vmatpush1.msra.mxu0 0.0
    %1788 = vmatprep.subr.mxu0 0.0
    %1789 = vmatpush1.msra.mxu0 0.0
    %1790 = vmatprep.subr.mxu0 0.0
    %1791 = vmatpush1.msra.mxu0 0.0
    %1792 = vmatprep.subr.mxu0 0.0
    %1793 = vmatpush1.msra.mxu0 0.0
    %1794 = vmatprep.subr.mxu0 0.0
    %1795 = vmatpush1.msra.mxu0 0.0
    %1796 = vmatprep.subr.mxu0 0.0
    %1797 = vmatpush1.msra.mxu0 0.0
    %1798 = vmatprep.subr.mxu0 0.0
    %1799 = vmatpush1.msra.mxu0 0.0
    %1800 = vmatprep.subr.mxu0 0.0
    %1801 = vmatpush1.msra.mxu0 0.0
    %1802 = vmatprep.subr.mxu0 0.0
    %1803 = vmatpush1.msra.mxu0 0.0
    %1804 = vmatprep.subr.mxu0 0.0
    %1805 = vmatpush1.msra.mxu0 0.0
    %1806 = vmatprep.subr.mxu0 0.0
    %1807 = vmatpush1.msra.mxu0 0.0
    %1808 = vmatprep.subr.mxu0 0.0
    %1809 = vmatpush1.msra.mxu0 0.0
    %1810 = vmatprep.subr.mxu0 0.0
    %1811 = vmatpush1.msra.mxu0 0.0
    %1812 = vmatprep.subr.mxu0 0.0
    %1813 = vmatpush1.msra.mxu0 0.0
    %1814 = vmatprep.subr.mxu0 0.0
    %1815 = vmatpush1.msra.mxu0 0.0
    %1816 = vmatprep.subr.mxu0 0.0
    %1817 = vmatpush1.msra.mxu0 0.0
    %1818 = vmatprep.subr.mxu0 0.0
    %1819 = vmatpush1.msra.mxu0 0.0
    %1820 = vmatprep.mubr.f32.mxu0 0.0
    %1821 = vmatmul.mubr.f32.gmra.mrb[0].mxu0 %v1745
    %v1822 = vpop.f32.mrb[0].mxu0
    %v1823 = vadd.f32 0.0, %v1822
    %v1824 = vpop.f32.mrb[0].mxu0
    %1825 = vmatprep.mubr.f32.mxu0 0.0
    %1826 = vmatmul.mubr.f32.gmra.mrb[0].mxu0 %v1748
    %v1827 = vpop.f32.mrb[0].mxu0
    %v1828 = vadd.f32 0.0, %v1827
    %v1829 = vpop.f32.mrb[0].mxu0
    %1830 = vmatprep.mubr.f32.mxu0 0.0
    %1831 = vmatmul.mubr.f32.gmra.mrb[0].mxu0 %v1751
    %v1832 = vpop.f32.mrb[0].mxu0
    %v1833 = vadd.f32 0.0, %v1832
    %v1834 = vpop.f32.mrb[0].mxu0
    %1835 = vmatprep.mubr.f32.mxu0 0.0
    %1836 = vmatmul.mubr.f32.gmra.mrb[0].mxu0 %v1754
    %v1837 = vpop.f32.mrb[0].mxu0
    %v1838 = vadd.f32 0.0, %v1837
    %v1839 = vpop.f32.mrb[0].mxu0
    %1840 = vdwg.mxu0
    %v1841 = vld [vmem:[%s35] sm:$0xff]
    %v1842 = vld [vmem:[%s35 + $0x8] sm:$0xff]
    %v1843 = vld [vmem:[%s35 + $0x10] sm:$0xff]
    %v1844 = vld [vmem:[%s35 + $0x18] sm:$0xff]
    %v1845 = vld [vmem:[%s35 + $0x20] sm:$0xff]
    %v1846 = vld [vmem:[%s35 + $0x28] sm:$0xff]
    %v1847 = vld [vmem:[%s35 + $0x30] sm:$0xff]
    %v1848 = vld [vmem:[%s35 + $0x38] sm:$0xff]
    %v1849 = vld [vmem:[%s35 + $0x40] sm:$0xff]
    %v1850 = vld [vmem:[%s35 + $0x48] sm:$0xff]
    %v1851 = vld [vmem:[%s35 + $0x50] sm:$0xff]
    %v1852 = vld [vmem:[%s35 + $0x58] sm:$0xff]
    %v1853 = vld [vmem:[%s35 + $0x60] sm:$0xff]
    %v1854 = vld [vmem:[%s35 + $0x68] sm:$0xff]
    %v1855 = vld [vmem:[%s35 + $0x70] sm:$0xff]
    %v1856 = vld [vmem:[%s35 + $0x78] sm:$0xff]
    %v1857 = vld [vmem:[#allocation22] sm:$0xff]
    %v1858 = vld [vmem:[#allocation22 + $0x8] sm:$0xff]
    %v1859 = vld [vmem:[#allocation22 + $0x10] sm:$0xff]
    %v1860 = vld [vmem:[#allocation22 + $0x18] sm:$0xff]
    %v1861 = vld [vmem:[#allocation22 + $0x20] sm:$0xff]
    %v1862 = vld [vmem:[#allocation22 + $0x28] sm:$0xff]
    %v1863 = vld [vmem:[#allocation22 + $0x30] sm:$0xff]
    %v1864 = vld [vmem:[#allocation22 + $0x38] sm:$0xff]
    %v1865 = vld [vmem:[#allocation22 + $0x40] sm:$0xff]
    %v1866 = vld [vmem:[#allocation22 + $0x48] sm:$0xff]
    %v1867 = vld [vmem:[#allocation22 + $0x50] sm:$0xff]
    %v1868 = vld [vmem:[#allocation22 + $0x58] sm:$0xff]
    %v1869 = vld [vmem:[#allocation22 + $0x60] sm:$0xff]
    %v1870 = vld [vmem:[#allocation22 + $0x68] sm:$0xff]
    %v1871 = vld [vmem:[#allocation22 + $0x70] sm:$0xff]
    %v1872 = vld [vmem:[#allocation22 + $0x78] sm:$0xff]
    %1873 = vmatprep.subr.mxu0 0.0
    %1874 = vmatpush1.msra.mxu0 %v1857
    %1875 = vmatprep.subr.mxu0 0.0
    %1876 = vmatpush1.msra.mxu0 %v1858
    %1877 = vmatprep.subr.mxu0 0.0
    %1878 = vmatpush1.msra.mxu0 %v1859
    %1879 = vmatprep.subr.mxu0 0.0
    %1880 = vmatpush1.msra.mxu0 %v1860
    %1881 = vmatprep.subr.mxu0 0.0
    %1882 = vmatpush1.msra.mxu0 %v1861
    %1883 = vmatprep.subr.mxu0 0.0
    %1884 = vmatpush1.msra.mxu0 %v1862
    %1885 = vmatprep.subr.mxu0 0.0
    %1886 = vmatpush1.msra.mxu0 %v1863
    %1887 = vmatprep.subr.mxu0 0.0
    %1888 = vmatpush1.msra.mxu0 %v1864
    %1889 = vmatprep.subr.mxu0 0.0
    %1890 = vmatpush1.msra.mxu0 %v1865
    %1891 = vmatprep.subr.mxu0 0.0
    %1892 = vmatpush1.msra.mxu0 %v1866
    %1893 = vmatprep.subr.mxu0 0.0
    %1894 = vmatpush1.msra.mxu0 %v1867
    %1895 = vmatprep.subr.mxu0 0.0
    %1896 = vmatpush1.msra.mxu0 %v1868
    %1897 = vmatprep.subr.mxu0 0.0
    %1898 = vmatpush1.msra.mxu0 %v1869
    %1899 = vmatprep.subr.mxu0 0.0
    %1900 = vmatpush1.msra.mxu0 %v1870
    %1901 = vmatprep.subr.mxu0 0.0
    %1902 = vmatpush1.msra.mxu0 %v1871
    %1903 = vmatprep.subr.mxu0 0.0
    %1904 = vmatpush1.msra.mxu0 %v1872
    %1905 = vmatprep.subr.mxu0 0.0
    %1906 = vmatpush1.msra.mxu0 0.0
    %1907 = vmatprep.subr.mxu0 0.0
    %1908 = vmatpush1.msra.mxu0 0.0
    %1909 = vmatprep.subr.mxu0 0.0
    %1910 = vmatpush1.msra.mxu0 0.0
    %1911 = vmatprep.subr.mxu0 0.0
    %1912 = vmatpush1.msra.mxu0 0.0
    %1913 = vmatprep.subr.mxu0 0.0
    %1914 = vmatpush1.msra.mxu0 0.0
    %1915 = vmatprep.subr.mxu0 0.0
    %1916 = vmatpush1.msra.mxu0 0.0
    %1917 = vmatprep.subr.mxu0 0.0
    %1918 = vmatpush1.msra.mxu0 0.0
    %1919 = vmatprep.subr.mxu0 0.0
    %1920 = vmatpush1.msra.mxu0 0.0
    %1921 = vmatprep.subr.mxu0 0.0
    %1922 = vmatpush1.msra.mxu0 0.0
    %1923 = vmatprep.subr.mxu0 0.0
    %1924 = vmatpush1.msra.mxu0 0.0
    %1925 = vmatprep.subr.mxu0 0.0
    %1926 = vmatpush1.msra.mxu0 0.0
    %1927 = vmatprep.subr.mxu0 0.0
    %1928 = vmatpush1.msra.mxu0 0.0
    %1929 = vmatprep.subr.mxu0 0.0
    %1930 = vmatpush1.msra.mxu0 0.0
    %1931 = vmatprep.subr.mxu0 0.0
    %1932 = vmatpush1.msra.mxu0 0.0
    %1933 = vmatprep.subr.mxu0 0.0
    %1934 = vmatpush1.msra.mxu0 0.0
    %1935 = vmatprep.subr.mxu0 0.0
    %1936 = vmatpush1.msra.mxu0 0.0
    %1937 = vmatprep.mubr.f32.mxu0 0.0
    %1938 = vmatmul.mubr.f32.gmra.mrb[0].mxu0 %v1823
    %v1939 = vpop.f32.mrb[0].mxu0
    %v1940 = vadd.f32 0.0, %v1939
    %v1941 = vpop.f32.mrb[0].mxu0
    %1942 = vmatprep.mubr.f32.mxu0 0.0
    %1943 = vmatmul.mubr.f32.gmra.mrb[0].mxu0 %v1828
    %v1944 = vpop.f32.mrb[0].mxu0
    %v1945 = vadd.f32 0.0, %v1944
    %v1946 = vpop.f32.mrb[0].mxu0
    %1947 = vmatprep.mubr.f32.mxu0 0.0
    %1948 = vmatmul.mubr.f32.gmra.mrb[0].mxu0 %v1833
    %v1949 = vpop.f32.mrb[0].mxu0
    %v1950 = vadd.f32 0.0, %v1949
    %v1951 = vpop.f32.mrb[0].mxu0
    %1952 = vmatprep.mubr.f32.mxu0 0.0
    %1953 = vmatmul.mubr.f32.gmra.mrb[0].mxu0 %v1838
    %v1954 = vpop.f32.mrb[0].mxu0
    %v1955 = vadd.f32 0.0, %v1954
    %v1956 = vpop.f32.mrb[0].mxu0
    %1957 = vdwg.mxu0
    %1958 = vmatprep.subr.mxu0 0.0
    %1959 = vmatpush1.msra.mxu0 %v1841
    %1960 = vmatprep.subr.mxu0 0.0
    %1961 = vmatpush1.msra.mxu0 %v1842
    %1962 = vmatprep.subr.mxu0 0.0
    %1963 = vmatpush1.msra.mxu0 %v1843
    %1964 = vmatprep.subr.mxu0 0.0
    %1965 = vmatpush1.msra.mxu0 %v1844
    %1966 = vmatprep.subr.mxu0 0.0
    %1967 = vmatpush1.msra.mxu0 %v1845
    %1968 = vmatprep.subr.mxu0 0.0
    %1969 = vmatpush1.msra.mxu0 %v1846
    %1970 = vmatprep.subr.mxu0 0.0
    %1971 = vmatpush1.msra.mxu0 %v1847
    %1972 = vmatprep.subr.mxu0 0.0
    %1973 = vmatpush1.msra.mxu0 %v1848
    %1974 = vmatprep.subr.mxu0 0.0
    %1975 = vmatpush1.msra.mxu0 %v1849
    %1976 = vmatprep.subr.mxu0 0.0
    %1977 = vmatpush1.msra.mxu0 %v1850
    %1978 = vmatprep.subr.mxu0 0.0
    %1979 = vmatpush1.msra.mxu0 %v1851
    %1980 = vmatprep.subr.mxu0 0.0
    %1981 = vmatpush1.msra.mxu0 %v1852
    %1982 = vmatprep.subr.mxu0 0.0
    %1983 = vmatpush1.msra.mxu0 %v1853
    %1984 = vmatprep.subr.mxu0 0.0
    %1985 = vmatpush1.msra.mxu0 %v1854
    %1986 = vmatprep.subr.mxu0 0.0
    %1987 = vmatpush1.msra.mxu0 %v1855
    %1988 = vmatprep.subr.mxu0 0.0
    %1989 = vmatpush1.msra.mxu0 %v1856
    %1990 = vmatprep.subr.mxu0 0.0
    %1991 = vmatpush1.msra.mxu0 0.0
    %1992 = vmatprep.subr.mxu0 0.0
    %1993 = vmatpush1.msra.mxu0 0.0
    %1994 = vmatprep.subr.mxu0 0.0
    %1995 = vmatpush1.msra.mxu0 0.0
    %1996 = vmatprep.subr.mxu0 0.0
    %1997 = vmatpush1.msra.mxu0 0.0
    %1998 = vmatprep.subr.mxu0 0.0
    %1999 = vmatpush1.msra.mxu0 0.0
    %2000 = vmatprep.subr.mxu0 0.0
    %2001 = vmatpush1.msra.mxu0 0.0
    %2002 = vmatprep.subr.mxu0 0.0
    %2003 = vmatpush1.msra.mxu0 0.0
    %2004 = vmatprep.subr.mxu0 0.0
    %2005 = vmatpush1.msra.mxu0 0.0
    %2006 = vmatprep.subr.mxu0 0.0
    %2007 = vmatpush1.msra.mxu0 0.0
    %2008 = vmatprep.subr.mxu0 0.0
    %2009 = vmatpush1.msra.mxu0 0.0
    %2010 = vmatprep.subr.mxu0 0.0
    %2011 = vmatpush1.msra.mxu0 0.0
    %2012 = vmatprep.subr.mxu0 0.0
    %2013 = vmatpush1.msra.mxu0 0.0
    %2014 = vmatprep.subr.mxu0 0.0
    %2015 = vmatpush1.msra.mxu0 0.0
    %2016 = vmatprep.subr.mxu0 0.0
    %2017 = vmatpush1.msra.mxu0 0.0
    %2018 = vmatprep.subr.mxu0 0.0
    %2019 = vmatpush1.msra.mxu0 0.0
    %2020 = vmatprep.subr.mxu0 0.0
    %2021 = vmatpush1.msra.mxu0 0.0
    %2022 = vmatprep.mubr.f32.mxu0 0.0
    %2023 = vmatmul.mubr.f32.gmra.mrb[0].mxu0 %v1726
    %v2024 = vpop.f32.mrb[0].mxu0
    %v2025 = vadd.f32 %v1940, %v2024
    %v2026 = vpop.f32.mrb[0].mxu0
    %2027 = vmatprep.mubr.f32.mxu0 0.0
    %2028 = vmatmul.mubr.f32.gmra.mrb[0].mxu0 %v1731
    %v2029 = vpop.f32.mrb[0].mxu0
    %v2030 = vadd.f32 %v1945, %v2029
    %v2031 = vpop.f32.mrb[0].mxu0
    %2032 = vmatprep.mubr.f32.mxu0 0.0
    %2033 = vmatmul.mubr.f32.gmra.mrb[0].mxu0 %v1736
    %v2034 = vpop.f32.mrb[0].mxu0
    %v2035 = vadd.f32 %v1950, %v2034
    %v2036 = vpop.f32.mrb[0].mxu0
    %2037 = vmatprep.mubr.f32.mxu0 0.0
    %2038 = vmatmul.mubr.f32.gmra.mrb[0].mxu0 %v1741
    %v2039 = vpop.f32.mrb[0].mxu0
    %v2040 = vadd.f32 %v1955, %v2039
    %v2041 = vpop.f32.mrb[0].mxu0
    %2042 = vdwg.mxu0
    %v2043 = vld [vmem:[%s39] sm:$0x1]
    %v2045 = vlaneseq
    %v2046 = vshrl.u32 %v2045, 7
    %v2047 = vsub.s32 0, %v2046
    %v2048 = vrot.slane %v2043, %v2047
    %v2050 = vadd.f32 %v2025, %v2048
    %v2051 = vadd.f32 %v2030, %v2048
    %v2052 = vadd.f32 %v2035, %v2048
    %v2053 = vadd.f32 %v2040, %v2048
    %v2054 = vmax.f32 %v2050, 0.0
    %v2055 = vmax.f32 %v2051, 0.0
    %v2056 = vmax.f32 %v2052, 0.0
    %v2057 = vmax.f32 %v2053, 0.0
    %v2058 = vld [vmem:[#allocation23] sm:$0xff]
    %v2059 = vld [vmem:[#allocation23 + $0x8] sm:$0xff]
    %v2060 = vld [vmem:[#allocation23 + $0x10] sm:$0xff]
    %v2061 = vld [vmem:[#allocation23 + $0x18] sm:$0xff]
    %v2062 = vld [vmem:[#allocation23 + $0x20] sm:$0xff]
    %v2063 = vld [vmem:[#allocation23 + $0x28] sm:$0xff]
    %v2064 = vld [vmem:[#allocation23 + $0x30] sm:$0xff]
    %v2065 = vld [vmem:[#allocation23 + $0x38] sm:$0xff]
    %v2066 = vld [vmem:[#allocation23 + $0x40] sm:$0xff]
    %v2067 = vld [vmem:[#allocation23 + $0x48] sm:$0xff]
    %v2068 = vld [vmem:[#allocation23 + $0x50] sm:$0xff]
    %v2069 = vld [vmem:[#allocation23 + $0x58] sm:$0xff]
    %v2070 = vld [vmem:[#allocation23 + $0x60] sm:$0xff]
    %v2071 = vld [vmem:[#allocation23 + $0x68] sm:$0xff]
    %v2072 = vld [vmem:[#allocation23 + $0x70] sm:$0xff]
    %v2073 = vld [vmem:[#allocation23 + $0x78] sm:$0xff]
    %v2074 = vld [vmem:[%s43] sm:$0x1]
    %v2076 = vlaneseq
    %v2077 = vshrl.u32 %v2076, 7
    %v2078 = vsub.s32 0, %v2077
    %v2079 = vrot.slane %v2074, %v2078
    %2081 = vmatprep.subr.mxu0 0.0
    %2082 = vmatpush1.msra.mxu0 %v2058
    %2083 = vmatprep.subr.mxu0 0.0
    %2084 = vmatpush1.msra.mxu0 %v2059
    %2085 = vmatprep.subr.mxu0 0.0
    %2086 = vmatpush1.msra.mxu0 %v2060
    %2087 = vmatprep.subr.mxu0 0.0
    %2088 = vmatpush1.msra.mxu0 %v2061
    %2089 = vmatprep.subr.mxu0 0.0
    %2090 = vmatpush1.msra.mxu0 %v2062
    %2091 = vmatprep.subr.mxu0 0.0
    %2092 = vmatpush1.msra.mxu0 %v2063
    %2093 = vmatprep.subr.mxu0 0.0
    %2094 = vmatpush1.msra.mxu0 %v2064
    %2095 = vmatprep.subr.mxu0 0.0
    %2096 = vmatpush1.msra.mxu0 %v2065
    %2097 = vmatprep.subr.mxu0 0.0
    %2098 = vmatpush1.msra.mxu0 %v2066
    %2099 = vmatprep.subr.mxu0 0.0
    %2100 = vmatpush1.msra.mxu0 %v2067
    %2101 = vmatprep.subr.mxu0 0.0
    %2102 = vmatpush1.msra.mxu0 %v2068
    %2103 = vmatprep.subr.mxu0 0.0
    %2104 = vmatpush1.msra.mxu0 %v2069
    %2105 = vmatprep.subr.mxu0 0.0
    %2106 = vmatpush1.msra.mxu0 %v2070
    %2107 = vmatprep.subr.mxu0 0.0
    %2108 = vmatpush1.msra.mxu0 %v2071
    %2109 = vmatprep.subr.mxu0 0.0
    %2110 = vmatpush1.msra.mxu0 %v2072
    %2111 = vmatprep.subr.mxu0 0.0
    %2112 = vmatpush1.msra.mxu0 %v2073
    %2113 = vmatprep.subr.mxu0 0.0
    %2114 = vmatpush1.msra.mxu0 0.0
    %2115 = vmatprep.subr.mxu0 0.0
    %2116 = vmatpush1.msra.mxu0 0.0
    %2117 = vmatprep.subr.mxu0 0.0
    %2118 = vmatpush1.msra.mxu0 0.0
    %2119 = vmatprep.subr.mxu0 0.0
    %2120 = vmatpush1.msra.mxu0 0.0
    %2121 = vmatprep.subr.mxu0 0.0
    %2122 = vmatpush1.msra.mxu0 0.0
    %2123 = vmatprep.subr.mxu0 0.0
    %2124 = vmatpush1.msra.mxu0 0.0
    %2125 = vmatprep.subr.mxu0 0.0
    %2126 = vmatpush1.msra.mxu0 0.0
    %2127 = vmatprep.subr.mxu0 0.0
    %2128 = vmatpush1.msra.mxu0 0.0
    %2129 = vmatprep.subr.mxu0 0.0
    %2130 = vmatpush1.msra.mxu0 0.0
    %2131 = vmatprep.subr.mxu0 0.0
    %2132 = vmatpush1.msra.mxu0 0.0
    %2133 = vmatprep.subr.mxu0 0.0
    %2134 = vmatpush1.msra.mxu0 0.0
    %2135 = vmatprep.subr.mxu0 0.0
    %2136 = vmatpush1.msra.mxu0 0.0
    %2137 = vmatprep.subr.mxu0 0.0
    %2138 = vmatpush1.msra.mxu0 0.0
    %2139 = vmatprep.subr.mxu0 0.0
    %2140 = vmatpush1.msra.mxu0 0.0
    %2141 = vmatprep.subr.mxu0 0.0
    %2142 = vmatpush1.msra.mxu0 0.0
    %2143 = vmatprep.subr.mxu0 0.0
    %2144 = vmatpush1.msra.mxu0 0.0
    %2145 = vmatprep.mubr.f32.mxu0 0.0
    %2146 = vmatmul.mubr.f32.gmra.mrb[0].mxu0 %v2054
    %v2147 = vpop.f32.mrb[0].mxu0
    %v2148 = vadd.f32 %v2079, %v2147
    %v2149 = vpop.f32.mrb[0].mxu0
    %2150 = vmatprep.mubr.f32.mxu0 0.0
    %2151 = vmatmul.mubr.f32.gmra.mrb[0].mxu0 %v2055
    %v2152 = vpop.f32.mrb[0].mxu0
    %v2153 = vadd.f32 %v2079, %v2152
    %v2154 = vpop.f32.mrb[0].mxu0
    %2155 = vmatprep.mubr.f32.mxu0 0.0
    %2156 = vmatmul.mubr.f32.gmra.mrb[0].mxu0 %v2056
    %v2157 = vpop.f32.mrb[0].mxu0
    %v2158 = vadd.f32 %v2079, %v2157
    %v2159 = vpop.f32.mrb[0].mxu0
    %2160 = vmatprep.mubr.f32.mxu0 0.0
    %2161 = vmatmul.mubr.f32.gmra.mrb[0].mxu0 %v2057
    %v2162 = vpop.f32.mrb[0].mxu0
    %v2163 = vadd.f32 %v2079, %v2162
    %v2164 = vpop.f32.mrb[0].mxu0
    %2165 = vdwg.mxu0
    %v2166 = vld [vmem:[#allocation7] sm:$0x1]
    %v2167 = vlaneseq
    %v2168 = vshrl.u32 %v2167, 7
    %v2169 = vsub.s32 0, %v2168
    %v2170 = vrot.slane %v2166, %v2169
    %vm2171 = vcmp.eq.s32.totalorder %v1147, %v2170
    %vm2172 = vcmp.eq.s32.totalorder %v1148, %v2170
    %v2173 = vsel %vm2171, 1, 0
    %v2174 = vsel %vm2172, 1, 0
    %v2175 = vcvt.s32.f32 %v2173
    %v2176 = vcvt.s32.f32 %v2174
    %v2178 = vsel %vm494, %v2175, 0
    %v2181 = vsel %vm494, %v2176, 0
    %2183 = vmatprep.subr.mxu0 0.0
    %2184 = vmatpush1.msra.mxu0 %v2148
    %2185 = vmatprep.subr.mxu0 0.0
    %2186 = vmatpush1.msra.mxu0 %v2153
    %2187 = vmatprep.subr.mxu0 0.0
    %2188 = vmatpush1.msra.mxu0 %v2158
    %2189 = vmatprep.subr.mxu0 0.0
    %2190 = vmatpush1.msra.mxu0 %v2163
    %2191 = vmatprep.subr.mxu0 0.0
    %2192 = vmatpush1.msra.mxu0 0.0
    %2193 = vmatprep.subr.mxu0 0.0
    %2194 = vmatpush1.msra.mxu0 0.0
    %2195 = vmatprep.subr.mxu0 0.0
    %2196 = vmatpush1.msra.mxu0 0.0
    %2197 = vmatprep.subr.mxu0 0.0
    %2198 = vmatpush1.msra.mxu0 0.0
    %2199 = vmatprep.subr.mxu0 0.0
    %2200 = vmatpush1.msra.mxu0 0.0
    %2201 = vmatprep.subr.mxu0 0.0
    %2202 = vmatpush1.msra.mxu0 0.0
    %2203 = vmatprep.subr.mxu0 0.0
    %2204 = vmatpush1.msra.mxu0 0.0
    %2205 = vmatprep.subr.mxu0 0.0
    %2206 = vmatpush1.msra.mxu0 0.0
    %2207 = vmatprep.subr.mxu0 0.0
    %2208 = vmatpush1.msra.mxu0 0.0
    %2209 = vmatprep.subr.mxu0 0.0
    %2210 = vmatpush1.msra.mxu0 0.0
    %2211 = vmatprep.subr.mxu0 0.0
    %2212 = vmatpush1.msra.mxu0 0.0
    %2213 = vmatprep.subr.mxu0 0.0
    %2214 = vmatpush1.msra.mxu0 0.0
    %2215 = vmatprep.subr.mxu0 0.0
    %2216 = vmatpush1.msra.mxu0 0.0
    %2217 = vmatprep.subr.mxu0 0.0
    %2218 = vmatpush1.msra.mxu0 0.0
    %2219 = vmatprep.subr.mxu0 0.0
    %2220 = vmatpush1.msra.mxu0 0.0
    %2221 = vmatprep.subr.mxu0 0.0
    %2222 = vmatpush1.msra.mxu0 0.0
    %2223 = vmatprep.subr.mxu0 0.0
    %2224 = vmatpush1.msra.mxu0 0.0
    %2225 = vmatprep.subr.mxu0 0.0
    %2226 = vmatpush1.msra.mxu0 0.0
    %2227 = vmatprep.subr.mxu0 0.0
    %2228 = vmatpush1.msra.mxu0 0.0
    %2229 = vmatprep.subr.mxu0 0.0
    %2230 = vmatpush1.msra.mxu0 0.0
    %2231 = vmatprep.subr.mxu0 0.0
    %2232 = vmatpush1.msra.mxu0 0.0
    %2233 = vmatprep.subr.mxu0 0.0
    %2234 = vmatpush1.msra.mxu0 0.0
    %2235 = vmatprep.subr.mxu0 0.0
    %2236 = vmatpush1.msra.mxu0 0.0
    %2237 = vmatprep.subr.mxu0 0.0
    %2238 = vmatpush1.msra.mxu0 0.0
    %2239 = vmatprep.subr.mxu0 0.0
    %2240 = vmatpush1.msra.mxu0 0.0
    %2241 = vmatprep.subr.mxu0 0.0
    %2242 = vmatpush1.msra.mxu0 0.0
    %2243 = vmatprep.subr.mxu0 0.0
    %2244 = vmatpush1.msra.mxu0 0.0
    %2245 = vmatprep.subr.mxu0 0.0
    %2246 = vmatpush1.msra.mxu0 0.0
    %2247 = vmatprep.mubr.f32.mxu0 0.0
    %2248 = vmatmul.mubr.f32.gmra.mrb[0].mxu0 %v2178
    %v2249 = vpop.f32.mrb[0].mxu0
    %v2250 = vadd.f32 0.0, %v2249
    %v2251 = vpop.f32.mrb[0].mxu0
    %2252 = vmatprep.mubr.f32.mxu0 0.0
    %2253 = vmatmul.mubr.f32.gmra.mrb[0].mxu0 %v2181
    %v2254 = vpop.f32.mrb[0].mxu0
    %v2255 = vadd.f32 0.0, %v2254
    %v2256 = vpop.f32.mrb[0].mxu0
    %2257 = vdwg.mxu0
    %v2258 = vld [vmem:[#allocation25] sm:$0xff]
    %v2259 = vld [vmem:[#allocation25 + $0x8] sm:$0xff]
    %v2260 = vld [vmem:[#allocation25 + $0x10] sm:$0xff]
    %v2261 = vld [vmem:[#allocation25 + $0x18] sm:$0xff]
    %v2262 = vld [vmem:[#allocation25 + $0x20] sm:$0xff]
    %v2263 = vld [vmem:[#allocation25 + $0x28] sm:$0xff]
    %v2264 = vld [vmem:[#allocation25 + $0x30] sm:$0xff]
    %v2265 = vld [vmem:[#allocation25 + $0x38] sm:$0xff]
    %v2266 = vld [vmem:[#allocation25 + $0x40] sm:$0xff]
    %v2267 = vld [vmem:[#allocation25 + $0x48] sm:$0xff]
    %v2268 = vld [vmem:[#allocation25 + $0x50] sm:$0xff]
    %v2269 = vld [vmem:[#allocation25 + $0x58] sm:$0xff]
    %v2270 = vld [vmem:[#allocation25 + $0x60] sm:$0xff]
    %v2271 = vld [vmem:[#allocation25 + $0x68] sm:$0xff]
    %v2272 = vld [vmem:[#allocation25 + $0x70] sm:$0xff]
    %v2273 = vld [vmem:[#allocation25 + $0x78] sm:$0xff]
    %v2274 = vld [vmem:[#allocation26] sm:$0xff]
    %v2275 = vld [vmem:[#allocation26 + $0x8] sm:$0xff]
    %v2276 = vld [vmem:[#allocation26 + $0x10] sm:$0xff]
    %v2277 = vld [vmem:[#allocation26 + $0x18] sm:$0xff]
    %v2278 = vld [vmem:[#allocation26 + $0x20] sm:$0xff]
    %v2279 = vld [vmem:[#allocation26 + $0x28] sm:$0xff]
    %v2280 = vld [vmem:[#allocation26 + $0x30] sm:$0xff]
    %v2281 = vld [vmem:[#allocation26 + $0x38] sm:$0xff]
    %v2282 = vld [vmem:[#allocation26 + $0x40] sm:$0xff]
    %v2283 = vld [vmem:[#allocation26 + $0x48] sm:$0xff]
    %v2284 = vld [vmem:[#allocation26 + $0x50] sm:$0xff]
    %v2285 = vld [vmem:[#allocation26 + $0x58] sm:$0xff]
    %v2286 = vld [vmem:[#allocation26 + $0x60] sm:$0xff]
    %v2287 = vld [vmem:[#allocation26 + $0x68] sm:$0xff]
    %v2288 = vld [vmem:[#allocation26 + $0x70] sm:$0xff]
    %v2289 = vld [vmem:[#allocation26 + $0x78] sm:$0xff]
    %2290 = vmatprep.subr.mxu0 0.0
    %2291 = vmatpush1.msra.mxu0 %v2274
    %2292 = vmatprep.subr.mxu0 0.0
    %2293 = vmatpush1.msra.mxu0 %v2275
    %2294 = vmatprep.subr.mxu0 0.0
    %2295 = vmatpush1.msra.mxu0 %v2276
    %2296 = vmatprep.subr.mxu0 0.0
    %2297 = vmatpush1.msra.mxu0 %v2277
    %2298 = vmatprep.subr.mxu0 0.0
    %2299 = vmatpush1.msra.mxu0 %v2278
    %2300 = vmatprep.subr.mxu0 0.0
    %2301 = vmatpush1.msra.mxu0 %v2279
    %2302 = vmatprep.subr.mxu0 0.0
    %2303 = vmatpush1.msra.mxu0 %v2280
    %2304 = vmatprep.subr.mxu0 0.0
    %2305 = vmatpush1.msra.mxu0 %v2281
    %2306 = vmatprep.subr.mxu0 0.0
    %2307 = vmatpush1.msra.mxu0 %v2282
    %2308 = vmatprep.subr.mxu0 0.0
    %2309 = vmatpush1.msra.mxu0 %v2283
    %2310 = vmatprep.subr.mxu0 0.0
    %2311 = vmatpush1.msra.mxu0 %v2284
    %2312 = vmatprep.subr.mxu0 0.0
    %2313 = vmatpush1.msra.mxu0 %v2285
    %2314 = vmatprep.subr.mxu0 0.0
    %2315 = vmatpush1.msra.mxu0 %v2286
    %2316 = vmatprep.subr.mxu0 0.0
    %2317 = vmatpush1.msra.mxu0 %v2287
    %2318 = vmatprep.subr.mxu0 0.0
    %2319 = vmatpush1.msra.mxu0 %v2288
    %2320 = vmatprep.subr.mxu0 0.0
    %2321 = vmatpush1.msra.mxu0 %v2289
    %2322 = vmatprep.subr.mxu0 0.0
    %2323 = vmatpush1.msra.mxu0 0.0
    %2324 = vmatprep.subr.mxu0 0.0
    %2325 = vmatpush1.msra.mxu0 0.0
    %2326 = vmatprep.subr.mxu0 0.0
    %2327 = vmatpush1.msra.mxu0 0.0
    %2328 = vmatprep.subr.mxu0 0.0
    %2329 = vmatpush1.msra.mxu0 0.0
    %2330 = vmatprep.subr.mxu0 0.0
    %2331 = vmatpush1.msra.mxu0 0.0
    %2332 = vmatprep.subr.mxu0 0.0
    %2333 = vmatpush1.msra.mxu0 0.0
    %2334 = vmatprep.subr.mxu0 0.0
    %2335 = vmatpush1.msra.mxu0 0.0
    %2336 = vmatprep.subr.mxu0 0.0
    %2337 = vmatpush1.msra.mxu0 0.0
    %2338 = vmatprep.subr.mxu0 0.0
    %2339 = vmatpush1.msra.mxu0 0.0
    %2340 = vmatprep.subr.mxu0 0.0
    %2341 = vmatpush1.msra.mxu0 0.0
    %2342 = vmatprep.subr.mxu0 0.0
    %2343 = vmatpush1.msra.mxu0 0.0
    %2344 = vmatprep.subr.mxu0 0.0
    %2345 = vmatpush1.msra.mxu0 0.0
    %2346 = vmatprep.subr.mxu0 0.0
    %2347 = vmatpush1.msra.mxu0 0.0
    %2348 = vmatprep.subr.mxu0 0.0
    %2349 = vmatpush1.msra.mxu0 0.0
    %2350 = vmatprep.subr.mxu0 0.0
    %2351 = vmatpush1.msra.mxu0 0.0
    %2352 = vmatprep.subr.mxu0 0.0
    %2353 = vmatpush1.msra.mxu0 0.0
    %2354 = vmatprep.mubr.f32.mxu0 0.0
    %2355 = vmatmul.mubr.f32.gmra.mrb[0].mxu0 %v2250
    %v2356 = vpop.f32.mrb[0].mxu0
    %v2357 = vadd.f32 0.0, %v2356
    %v2358 = vpop.f32.mrb[0].mxu0
    %2359 = vmatprep.mubr.f32.mxu0 0.0
    %2360 = vmatmul.mubr.f32.gmra.mrb[0].mxu0 %v2255
    %v2361 = vpop.f32.mrb[0].mxu0
    %v2362 = vadd.f32 0.0, %v2361
    %v2363 = vpop.f32.mrb[0].mxu0
    %2364 = vdwg.mxu0
    %2365 = vmatprep.subr.mxu0 0.0
    %2366 = vmatpush1.msra.mxu0 %v2258
    %2367 = vmatprep.subr.mxu0 0.0
    %2368 = vmatpush1.msra.mxu0 %v2259
    %2369 = vmatprep.subr.mxu0 0.0
    %2370 = vmatpush1.msra.mxu0 %v2260
    %2371 = vmatprep.subr.mxu0 0.0
    %2372 = vmatpush1.msra.mxu0 %v2261
    %2373 = vmatprep.subr.mxu0 0.0
    %2374 = vmatpush1.msra.mxu0 %v2262
    %2375 = vmatprep.subr.mxu0 0.0
    %2376 = vmatpush1.msra.mxu0 %v2263
    %2377 = vmatprep.subr.mxu0 0.0
    %2378 = vmatpush1.msra.mxu0 %v2264
    %2379 = vmatprep.subr.mxu0 0.0
    %2380 = vmatpush1.msra.mxu0 %v2265
    %2381 = vmatprep.subr.mxu0 0.0
    %2382 = vmatpush1.msra.mxu0 %v2266
    %2383 = vmatprep.subr.mxu0 0.0
    %2384 = vmatpush1.msra.mxu0 %v2267
    %2385 = vmatprep.subr.mxu0 0.0
    %2386 = vmatpush1.msra.mxu0 %v2268
    %2387 = vmatprep.subr.mxu0 0.0
    %2388 = vmatpush1.msra.mxu0 %v2269
    %2389 = vmatprep.subr.mxu0 0.0
    %2390 = vmatpush1.msra.mxu0 %v2270
    %2391 = vmatprep.subr.mxu0 0.0
    %2392 = vmatpush1.msra.mxu0 %v2271
    %2393 = vmatprep.subr.mxu0 0.0
    %2394 = vmatpush1.msra.mxu0 %v2272
    %2395 = vmatprep.subr.mxu0 0.0
    %2396 = vmatpush1.msra.mxu0 %v2273
    %2397 = vmatprep.subr.mxu0 0.0
    %2398 = vmatpush1.msra.mxu0 0.0
    %2399 = vmatprep.subr.mxu0 0.0
    %2400 = vmatpush1.msra.mxu0 0.0
    %2401 = vmatprep.subr.mxu0 0.0
    %2402 = vmatpush1.msra.mxu0 0.0
    %2403 = vmatprep.subr.mxu0 0.0
    %2404 = vmatpush1.msra.mxu0 0.0
    %2405 = vmatprep.subr.mxu0 0.0
    %2406 = vmatpush1.msra.mxu0 0.0
    %2407 = vmatprep.subr.mxu0 0.0
    %2408 = vmatpush1.msra.mxu0 0.0
    %2409 = vmatprep.subr.mxu0 0.0
    %2410 = vmatpush1.msra.mxu0 0.0
    %2411 = vmatprep.subr.mxu0 0.0
    %2412 = vmatpush1.msra.mxu0 0.0
    %2413 = vmatprep.subr.mxu0 0.0
    %2414 = vmatpush1.msra.mxu0 0.0
    %2415 = vmatprep.subr.mxu0 0.0
    %2416 = vmatpush1.msra.mxu0 0.0
    %2417 = vmatprep.subr.mxu0 0.0
    %2418 = vmatpush1.msra.mxu0 0.0
    %2419 = vmatprep.subr.mxu0 0.0
    %2420 = vmatpush1.msra.mxu0 0.0
    %2421 = vmatprep.subr.mxu0 0.0
    %2422 = vmatpush1.msra.mxu0 0.0
    %2423 = vmatprep.subr.mxu0 0.0
    %2424 = vmatpush1.msra.mxu0 0.0
    %2425 = vmatprep.subr.mxu0 0.0
    %2426 = vmatpush1.msra.mxu0 0.0
    %2427 = vmatprep.subr.mxu0 0.0
    %2428 = vmatpush1.msra.mxu0 0.0
    %2429 = vmatprep.mubr.f32.mxu0 0.0
    %2430 = vmatmul.mubr.f32.gmra.mrb[0].mxu0 %v1583
    %v2431 = vpop.f32.mrb[0].mxu0
    %v2432 = vadd.f32 %v2357, %v2431
    %v2433 = vpop.f32.mrb[0].mxu0
    %2434 = vmatprep.mubr.f32.mxu0 0.0
    %2435 = vmatmul.mubr.f32.gmra.mrb[0].mxu0 %v1588
    %v2436 = vpop.f32.mrb[0].mxu0
    %v2437 = vadd.f32 %v2362, %v2436
    %v2438 = vpop.f32.mrb[0].mxu0
    %2439 = vdwg.mxu0
    %v2440 = vld [vmem:[%s49] sm:$0x1]
    %v2442 = vlaneseq
    %v2443 = vshrl.u32 %v2442, 7
    %v2444 = vsub.s32 0, %v2443
    %v2445 = vrot.slane %v2440, %v2444
    %v2447 = vadd.f32 %v2432, %v2445
    %v2448 = vadd.f32 %v2437, %v2445
    %v2449 = vmax.f32 %v2447, 0.0
    %v2450 = vmax.f32 %v2448, 0.0
    %v2451 = vld [vmem:[#allocation28] sm:$0xff]
    %v2452 = vld [vmem:[#allocation28 + $0x8] sm:$0xff]
    %v2453 = vld [vmem:[#allocation28 + $0x10] sm:$0xff]
    %v2454 = vld [vmem:[#allocation28 + $0x18] sm:$0xff]
    %v2455 = vld [vmem:[#allocation28 + $0x20] sm:$0xff]
    %v2456 = vld [vmem:[#allocation28 + $0x28] sm:$0xff]
    %v2457 = vld [vmem:[#allocation28 + $0x30] sm:$0xff]
    %v2458 = vld [vmem:[#allocation28 + $0x38] sm:$0xff]
    %v2459 = vld [vmem:[#allocation28 + $0x40] sm:$0xff]
    %v2460 = vld [vmem:[#allocation28 + $0x48] sm:$0xff]
    %v2461 = vld [vmem:[#allocation28 + $0x50] sm:$0xff]
    %v2462 = vld [vmem:[#allocation28 + $0x58] sm:$0xff]
    %v2463 = vld [vmem:[#allocation28 + $0x60] sm:$0xff]
    %v2464 = vld [vmem:[#allocation28 + $0x68] sm:$0xff]
    %v2465 = vld [vmem:[#allocation28 + $0x70] sm:$0xff]
    %v2466 = vld [vmem:[#allocation28 + $0x78] sm:$0xff]
    %v2467 = vld [vmem:[%s53] sm:$0x1]
    %v2469 = vlaneseq
    %v2470 = vshrl.u32 %v2469, 7
    %v2471 = vsub.s32 0, %v2470
    %v2472 = vrot.slane %v2467, %v2471
    %2474 = vmatprep.subr.mxu0 0.0
    %2475 = vmatpush1.msra.mxu0 %v2451
    %2476 = vmatprep.subr.mxu0 0.0
    %2477 = vmatpush1.msra.mxu0 %v2452
    %2478 = vmatprep.subr.mxu0 0.0
    %2479 = vmatpush1.msra.mxu0 %v2453
    %2480 = vmatprep.subr.mxu0 0.0
    %2481 = vmatpush1.msra.mxu0 %v2454
    %2482 = vmatprep.subr.mxu0 0.0
    %2483 = vmatpush1.msra.mxu0 %v2455
    %2484 = vmatprep.subr.mxu0 0.0
    %2485 = vmatpush1.msra.mxu0 %v2456
    %2486 = vmatprep.subr.mxu0 0.0
    %2487 = vmatpush1.msra.mxu0 %v2457
    %2488 = vmatprep.subr.mxu0 0.0
    %2489 = vmatpush1.msra.mxu0 %v2458
    %2490 = vmatprep.subr.mxu0 0.0
    %2491 = vmatpush1.msra.mxu0 %v2459
    %2492 = vmatprep.subr.mxu0 0.0
    %2493 = vmatpush1.msra.mxu0 %v2460
    %2494 = vmatprep.subr.mxu0 0.0
    %2495 = vmatpush1.msra.mxu0 %v2461
    %2496 = vmatprep.subr.mxu0 0.0
    %2497 = vmatpush1.msra.mxu0 %v2462
    %2498 = vmatprep.subr.mxu0 0.0
    %2499 = vmatpush1.msra.mxu0 %v2463
    %2500 = vmatprep.subr.mxu0 0.0
    %2501 = vmatpush1.msra.mxu0 %v2464
    %2502 = vmatprep.subr.mxu0 0.0
    %2503 = vmatpush1.msra.mxu0 %v2465
    %2504 = vmatprep.subr.mxu0 0.0
    %2505 = vmatpush1.msra.mxu0 %v2466
    %2506 = vmatprep.subr.mxu0 0.0
    %2507 = vmatpush1.msra.mxu0 0.0
    %2508 = vmatprep.subr.mxu0 0.0
    %2509 = vmatpush1.msra.mxu0 0.0
    %2510 = vmatprep.subr.mxu0 0.0
    %2511 = vmatpush1.msra.mxu0 0.0
    %2512 = vmatprep.subr.mxu0 0.0
    %2513 = vmatpush1.msra.mxu0 0.0
    %2514 = vmatprep.subr.mxu0 0.0
    %2515 = vmatpush1.msra.mxu0 0.0
    %2516 = vmatprep.subr.mxu0 0.0
    %2517 = vmatpush1.msra.mxu0 0.0
    %2518 = vmatprep.subr.mxu0 0.0
    %2519 = vmatpush1.msra.mxu0 0.0
    %2520 = vmatprep.subr.mxu0 0.0
    %2521 = vmatpush1.msra.mxu0 0.0
    %2522 = vmatprep.subr.mxu0 0.0
    %2523 = vmatpush1.msra.mxu0 0.0
    %2524 = vmatprep.subr.mxu0 0.0
    %2525 = vmatpush1.msra.mxu0 0.0
    %2526 = vmatprep.subr.mxu0 0.0
    %2527 = vmatpush1.msra.mxu0 0.0
    %2528 = vmatprep.subr.mxu0 0.0
    %2529 = vmatpush1.msra.mxu0 0.0
    %2530 = vmatprep.subr.mxu0 0.0
    %2531 = vmatpush1.msra.mxu0 0.0
    %2532 = vmatprep.subr.mxu0 0.0
    %2533 = vmatpush1.msra.mxu0 0.0
    %2534 = vmatprep.subr.mxu0 0.0
    %2535 = vmatpush1.msra.mxu0 0.0
    %2536 = vmatprep.subr.mxu0 0.0
    %2537 = vmatpush1.msra.mxu0 0.0
    %2538 = vmatprep.mubr.f32.mxu0 0.0
    %2539 = vmatmul.mubr.f32.gmra.mrb[0].mxu0 %v2449
    %v2540 = vpop.f32.mrb[0].mxu0
    %v2541 = vadd.f32 %v2472, %v2540
    %v2542 = vpop.f32.mrb[0].mxu0
    %2543 = vmatprep.mubr.f32.mxu0 0.0
    %2544 = vmatmul.mubr.f32.gmra.mrb[0].mxu0 %v2450
    %v2545 = vpop.f32.mrb[0].mxu0
    %v2546 = vadd.f32 %v2472, %v2545
    %v2547 = vpop.f32.mrb[0].mxu0
    %2548 = vdwg.mxu0
    %v2549 = vld [vmem:[#allocation29] sm:$0xff]
    %v2550 = vld [vmem:[#allocation29 + $0x8] sm:$0xff]
    %v2551 = vld [vmem:[#allocation29 + $0x10] sm:$0xff]
    %v2552 = vld [vmem:[#allocation29 + $0x18] sm:$0xff]
    %v2553 = vld [vmem:[#allocation29 + $0x20] sm:$0xff]
    %v2554 = vld [vmem:[#allocation29 + $0x28] sm:$0xff]
    %v2555 = vld [vmem:[#allocation29 + $0x30] sm:$0xff]
    %v2556 = vld [vmem:[#allocation29 + $0x38] sm:$0xff]
    %v2557 = vld [vmem:[#allocation29 + $0x40] sm:$0xff]
    %v2558 = vld [vmem:[#allocation29 + $0x48] sm:$0xff]
    %v2559 = vld [vmem:[#allocation29 + $0x50] sm:$0xff]
    %v2560 = vld [vmem:[#allocation29 + $0x58] sm:$0xff]
    %v2561 = vld [vmem:[#allocation29 + $0x60] sm:$0xff]
    %v2562 = vld [vmem:[#allocation29 + $0x68] sm:$0xff]
    %v2563 = vld [vmem:[#allocation29 + $0x70] sm:$0xff]
    %v2564 = vld [vmem:[#allocation29 + $0x78] sm:$0xff]
    %v2565 = vld [vmem:[%s57] sm:$0x1]
    %v2567 = vlaneseq
    %v2568 = vshrl.u32 %v2567, 7
    %v2569 = vsub.s32 0, %v2568
    %v2570 = vrot.slane %v2565, %v2569
    %2572 = vmatprep.subr.mxu0 0.0
    %2573 = vmatpush1.msra.mxu0 %v2549
    %2574 = vmatprep.subr.mxu0 0.0
    %2575 = vmatpush1.msra.mxu0 %v2550
    %2576 = vmatprep.subr.mxu0 0.0
    %2577 = vmatpush1.msra.mxu0 %v2551
    %2578 = vmatprep.subr.mxu0 0.0
    %2579 = vmatpush1.msra.mxu0 %v2552
    %2580 = vmatprep.subr.mxu0 0.0
    %2581 = vmatpush1.msra.mxu0 %v2553
    %2582 = vmatprep.subr.mxu0 0.0
    %2583 = vmatpush1.msra.mxu0 %v2554
    %2584 = vmatprep.subr.mxu0 0.0
    %2585 = vmatpush1.msra.mxu0 %v2555
    %2586 = vmatprep.subr.mxu0 0.0
    %2587 = vmatpush1.msra.mxu0 %v2556
    %2588 = vmatprep.subr.mxu0 0.0
    %2589 = vmatpush1.msra.mxu0 %v2557
    %2590 = vmatprep.subr.mxu0 0.0
    %2591 = vmatpush1.msra.mxu0 %v2558
    %2592 = vmatprep.subr.mxu0 0.0
    %2593 = vmatpush1.msra.mxu0 %v2559
    %2594 = vmatprep.subr.mxu0 0.0
    %2595 = vmatpush1.msra.mxu0 %v2560
    %2596 = vmatprep.subr.mxu0 0.0
    %2597 = vmatpush1.msra.mxu0 %v2561
    %2598 = vmatprep.subr.mxu0 0.0
    %2599 = vmatpush1.msra.mxu0 %v2562
    %2600 = vmatprep.subr.mxu0 0.0
    %2601 = vmatpush1.msra.mxu0 %v2563
    %2602 = vmatprep.subr.mxu0 0.0
    %2603 = vmatpush1.msra.mxu0 %v2564
    %2604 = vmatprep.subr.mxu0 0.0
    %2605 = vmatpush1.msra.mxu0 0.0
    %2606 = vmatprep.subr.mxu0 0.0
    %2607 = vmatpush1.msra.mxu0 0.0
    %2608 = vmatprep.subr.mxu0 0.0
    %2609 = vmatpush1.msra.mxu0 0.0
    %2610 = vmatprep.subr.mxu0 0.0
    %2611 = vmatpush1.msra.mxu0 0.0
    %2612 = vmatprep.subr.mxu0 0.0
    %2613 = vmatpush1.msra.mxu0 0.0
    %2614 = vmatprep.subr.mxu0 0.0
    %2615 = vmatpush1.msra.mxu0 0.0
    %2616 = vmatprep.subr.mxu0 0.0
    %2617 = vmatpush1.msra.mxu0 0.0
    %2618 = vmatprep.subr.mxu0 0.0
    %2619 = vmatpush1.msra.mxu0 0.0
    %2620 = vmatprep.subr.mxu0 0.0
    %2621 = vmatpush1.msra.mxu0 0.0
    %2622 = vmatprep.subr.mxu0 0.0
    %2623 = vmatpush1.msra.mxu0 0.0
    %2624 = vmatprep.subr.mxu0 0.0
    %2625 = vmatpush1.msra.mxu0 0.0
    %2626 = vmatprep.subr.mxu0 0.0
    %2627 = vmatpush1.msra.mxu0 0.0
    %2628 = vmatprep.subr.mxu0 0.0
    %2629 = vmatpush1.msra.mxu0 0.0
    %2630 = vmatprep.subr.mxu0 0.0
    %2631 = vmatpush1.msra.mxu0 0.0
    %2632 = vmatprep.subr.mxu0 0.0
    %2633 = vmatpush1.msra.mxu0 0.0
    %2634 = vmatprep.subr.mxu0 0.0
    %2635 = vmatpush1.msra.mxu0 0.0
    %2636 = vmatprep.mubr.f32.mxu0 0.0
    %2637 = vmatmul.mubr.f32.gmra.mrb[0].mxu0 %v2541
    %v2638 = vpop.f32.mrb[0].mxu0
    %v2639 = vadd.f32 %v2570, %v2638
    %v2640 = vpop.f32.mrb[0].mxu0
    %2641 = vmatprep.mubr.f32.mxu0 0.0
    %2642 = vmatmul.mubr.f32.gmra.mrb[0].mxu0 %v2546
    %v2643 = vpop.f32.mrb[0].mxu0
    %v2644 = vadd.f32 %v2570, %v2643
    %v2645 = vpop.f32.mrb[0].mxu0
    %2646 = vdwg.mxu0
    %v2647 = vmax.f32 %v2639, 0.0
    %v2648 = vmax.f32 %v2644, 0.0
    %v2649 = vld [vmem:[#allocation31] sm:$0xff]
    %v2650 = vld [vmem:[#allocation31 + $0x8] sm:$0xff]
    %v2651 = vld [vmem:[#allocation31 + $0x10] sm:$0xff]
    %v2652 = vld [vmem:[#allocation31 + $0x18] sm:$0xff]
    %v2653 = vld [vmem:[#allocation31 + $0x20] sm:$0xff]
    %v2654 = vld [vmem:[#allocation31 + $0x28] sm:$0xff]
    %v2655 = vld [vmem:[#allocation31 + $0x30] sm:$0xff]
    %v2656 = vld [vmem:[#allocation31 + $0x38] sm:$0xff]
    %v2657 = vld [vmem:[#allocation31 + $0x40] sm:$0xff]
    %v2658 = vld [vmem:[#allocation31 + $0x48] sm:$0xff]
    %v2659 = vld [vmem:[#allocation31 + $0x50] sm:$0xff]
    %v2660 = vld [vmem:[#allocation31 + $0x58] sm:$0xff]
    %v2661 = vld [vmem:[#allocation31 + $0x60] sm:$0xff]
    %v2662 = vld [vmem:[#allocation31 + $0x68] sm:$0xff]
    %v2663 = vld [vmem:[#allocation31 + $0x70] sm:$0xff]
    %v2664 = vld [vmem:[#allocation31 + $0x78] sm:$0xff]
    %v2665 = vld [vmem:[%s61] sm:$0x1]
    %v2667 = vlaneseq
    %v2668 = vshrl.u32 %v2667, 7
    %v2669 = vsub.s32 0, %v2668
    %v2670 = vrot.slane %v2665, %v2669
    %2672 = vmatprep.subr.mxu0 0.0
    %2673 = vmatpush1.msra.mxu0 %v2649
    %2674 = vmatprep.subr.mxu0 0.0
    %2675 = vmatpush1.msra.mxu0 %v2650
    %2676 = vmatprep.subr.mxu0 0.0
    %2677 = vmatpush1.msra.mxu0 %v2651
    %2678 = vmatprep.subr.mxu0 0.0
    %2679 = vmatpush1.msra.mxu0 %v2652
    %2680 = vmatprep.subr.mxu0 0.0
    %2681 = vmatpush1.msra.mxu0 %v2653
    %2682 = vmatprep.subr.mxu0 0.0
    %2683 = vmatpush1.msra.mxu0 %v2654
    %2684 = vmatprep.subr.mxu0 0.0
    %2685 = vmatpush1.msra.mxu0 %v2655
    %2686 = vmatprep.subr.mxu0 0.0
    %2687 = vmatpush1.msra.mxu0 %v2656
    %2688 = vmatprep.subr.mxu0 0.0
    %2689 = vmatpush1.msra.mxu0 %v2657
    %2690 = vmatprep.subr.mxu0 0.0
    %2691 = vmatpush1.msra.mxu0 %v2658
    %2692 = vmatprep.subr.mxu0 0.0
    %2693 = vmatpush1.msra.mxu0 %v2659
    %2694 = vmatprep.subr.mxu0 0.0
    %2695 = vmatpush1.msra.mxu0 %v2660
    %2696 = vmatprep.subr.mxu0 0.0
    %2697 = vmatpush1.msra.mxu0 %v2661
    %2698 = vmatprep.subr.mxu0 0.0
    %2699 = vmatpush1.msra.mxu0 %v2662
    %2700 = vmatprep.subr.mxu0 0.0
    %2701 = vmatpush1.msra.mxu0 %v2663
    %2702 = vmatprep.subr.mxu0 0.0
    %2703 = vmatpush1.msra.mxu0 %v2664
    %2704 = vmatprep.subr.mxu0 0.0
    %2705 = vmatpush1.msra.mxu0 0.0
    %2706 = vmatprep.subr.mxu0 0.0
    %2707 = vmatpush1.msra.mxu0 0.0
    %2708 = vmatprep.subr.mxu0 0.0
    %2709 = vmatpush1.msra.mxu0 0.0
    %2710 = vmatprep.subr.mxu0 0.0
    %2711 = vmatpush1.msra.mxu0 0.0
    %2712 = vmatprep.subr.mxu0 0.0
    %2713 = vmatpush1.msra.mxu0 0.0
    %2714 = vmatprep.subr.mxu0 0.0
    %2715 = vmatpush1.msra.mxu0 0.0
    %2716 = vmatprep.subr.mxu0 0.0
    %2717 = vmatpush1.msra.mxu0 0.0
    %2718 = vmatprep.subr.mxu0 0.0
    %2719 = vmatpush1.msra.mxu0 0.0
    %2720 = vmatprep.subr.mxu0 0.0
    %2721 = vmatpush1.msra.mxu0 0.0
    %2722 = vmatprep.subr.mxu0 0.0
    %2723 = vmatpush1.msra.mxu0 0.0
    %2724 = vmatprep.subr.mxu0 0.0
    %2725 = vmatpush1.msra.mxu0 0.0
    %2726 = vmatprep.subr.mxu0 0.0
    %2727 = vmatpush1.msra.mxu0 0.0
    %2728 = vmatprep.subr.mxu0 0.0
    %2729 = vmatpush1.msra.mxu0 0.0
    %2730 = vmatprep.subr.mxu0 0.0
    %2731 = vmatpush1.msra.mxu0 0.0
    %2732 = vmatprep.subr.mxu0 0.0
    %2733 = vmatpush1.msra.mxu0 0.0
    %2734 = vmatprep.subr.mxu0 0.0
    %2735 = vmatpush1.msra.mxu0 0.0
    %2736 = vmatprep.mubr.f32.mxu0 0.0
    %2737 = vmatmul.mubr.f32.gmra.mrb[0].mxu0 %v2647
    %v2738 = vpop.f32.mrb[0].mxu0
    %v2739 = vadd.f32 %v2670, %v2738
    %v2740 = vpop.f32.mrb[0].mxu0
    %2741 = vmatprep.mubr.f32.mxu0 0.0
    %2742 = vmatmul.mubr.f32.gmra.mrb[0].mxu0 %v2648
    %v2743 = vpop.f32.mrb[0].mxu0
    %v2744 = vadd.f32 %v2670, %v2743
    %v2745 = vpop.f32.mrb[0].mxu0
    %2746 = vdwg.mxu0
    %2747 = vst [vmem:[#allocation32] sm:$0xff] %v2739
    %2748 = vst [vmem:[#allocation32 + $0x8] sm:$0xff] %v2744
    // Predicated region
    $region202: #{tpu_custom_call.1} parent=1 // pred_check
      _
    $region203: #{tpu_custom_call.1} parent=1 // pred_check_branch
      %2750 = sbr.rel (0) target = $region205
    $region204: #{tpu_custom_call.1} parent=1 // pred_region
      %s2752 = ssub.s32 256, 256
      %2753 = vsyncadd [#allocation4], %s2752
      %s2754 = sshll.u32 [#allocation32], 4
      %s2755 = int_to_ptr.vmem [resolvable:$true] %s2754
      %2760 = dma.vmem_to_hbm [thread:$0]  %s2755, 256, %s63, [#allocation4], 128, 128, 8
    $region205: #{tpu_custom_call.1} parent=1 // pred_fallthru
      _
    // Predicated region
    $region206: #{tpu_custom_call.1} parent=1 // pred_check
      _
    $region207: #{tpu_custom_call.1} parent=1 // pred_check_branch
      %2762 = sbr.rel (0) target = $region209
    $region208: #{tpu_custom_call.1} parent=1 // pred_region
      %2763 = dma.done [#allocation4], 256
    $region209: #{tpu_custom_call.1} parent=1 // pred_fallthru
      _
    %2764 = vsyncpa [#allocation3], 1
    %2765 = vsyncpa [#allocation6], 1
    %2766 = vsyncpa [#allocation9], 1
    %2767 = vsyncpa [#allocation12], 1
    %2768 = vsyncpa [#allocation15], 1
    %2769 = vsyncpa [#allocation18], 1
    %2770 = vsyncpa [#allocation21], 1
    %2771 = vsyncpa [#allocation24], 1
    %2772 = vsyncpa [#allocation27], 1
    %2773 = vsyncpa [#allocation30], 1
    %2774 = vsyncpa [#allocation4], 1

</llo_original>
